<compile_context>
chip_gen: v7x
topology: tpu7x:2x2x1
jax: 0.10.0
libtpu: 0.0.40
codegen_flags: <defaults>
</compile_context>

<pallas_src>
import functools
import numpy as np
import jax
import jax.numpy as jnp
from jax.experimental import pallas as pl
from jax.experimental.pallas import tpu as pltpu

EPS = 1e-5      # PyTorch BatchNorm2d default
C1_PAD = 128    # conv1 out-channels padded 64 -> 128 (lane dense)
K1_PAD = 256    # conv1 contraction padded 147 -> 256 (full-depth MXU passes)


# ---------------------------------------------------------------------------
# Fused kernel: conv1 + BN1 + ReLU + maxpool + conv2 + BN2 + ReLU
#               + conv3 + BN3 + ReLU + global average pool.
# All operands are whole-array VMEM blocks; no grid (tiny working set).
# ---------------------------------------------------------------------------
def _fused_cnn_kernel(p1_ref, w1_ref, g1_ref, b1_ref,        # conv1 + bn1
                      g2m_ref, w2_ref, g2_ref, b2_ref,        # conv2 + bn2
                      g3m_ref, w3_ref, g3_ref, b3_ref,        # conv3 + bn3
                      out_ref, *, n_batch):
    f32, bf16 = jnp.float32, jnp.bfloat16
    N = n_batch
    HP = 8                      # maxpool output spatial (32 -> conv1 16 -> pool 8)
    blk = N * HP * HP           # rows per (dr, dc) parity plane

    def bn_relu(y, g_ref, b_ref):
        # Training-mode BatchNorm (batch stats, biased variance) + ReLU.
        # Two sweeps: mean, then reuse the centered tensor for var & normalize.
        mean = jnp.mean(y, axis=0, keepdims=True)
        xc = y - mean
        var = jnp.mean(xc * xc, axis=0, keepdims=True)
        scale = jax.lax.rsqrt(var + EPS) * g_ref[...]
        return jnp.maximum(xc * scale + b_ref[...], 0.0)

    # ---- stage 1: conv1 7x7/s2/p3 as one bf16 im2col matmul (K=256, Cout=128) ----
    y1 = jnp.dot(p1_ref[...], w1_ref[...], preferred_element_type=f32)   # (4*blk, 128)
    a1 = bn_relu(y1, g1_ref, b1_ref)                                     # f32, lane-dense

    # ---- maxpool 3x3/s2/p1: zero matmuls --------------------------------------
    # p1 rows were emitted in (h%2, w%2, n, h//2, w//2) order, so each quarter of
    # a1 is one (dr, dc) parity plane of the conv1 output: plane[n, r, c, ch]
    # == conv1_out[n, 2r+dr, 2c+dc, ch].
    def plane(i):
        return a1[i * blk:(i + 1) * blk].reshape(N, HP, HP, C1_PAD)

    a00, a01, a10, a11 = plane(0), plane(1), plane(2), plane(3)

    # Zero-padding (instead of -inf) for the border taps is safe: a1 >= 0 post-ReLU
    # and the centre tap of every window is always in bounds.
    def shift_r(x):   # out[:, r] = x[:, r-1]; zero row at r=0
        return jnp.concatenate([jnp.zeros_like(x[:, :1]), x[:, :-1]], axis=1)

    def shift_c(x):   # out[:, :, c] = x[:, :, c-1]; zero col at c=0
        return jnp.concatenate([jnp.zeros_like(x[:, :, :1]), x[:, :, :-1]], axis=2)

    v0 = jnp.maximum(jnp.maximum(a00, a10), shift_r(a10))   # input cols 2c
    v1 = jnp.maximum(jnp.maximum(a01, a11), shift_r(a11))   # input cols 2c+1
    pooled = jnp.maximum(jnp.maximum(v0, v1), shift_c(v1))  # (N, 8, 8, 128) f32
    pooled = pooled.reshape(blk, C1_PAD).astype(bf16)        # rows (n, r, c)

    # ---- stage 2: conv2 3x3/s2/p1 = 9 bf16 one-hot gathers + ONE K=1152 matmul ----
    taps2 = [jnp.dot(g2m_ref[t], pooled, preferred_element_type=f32).astype(bf16)
             for t in range(9)]
    im2 = jnp.concatenate(taps2, axis=-1)                     # (N*16, 1152) bf16
    y2 = jnp.dot(im2, w2_ref[...], preferred_element_type=f32)
    a2 = bn_relu(y2, g2_ref, b2_ref).astype(bf16)             # (N*16, 128)

    # ---- stage 3: conv3 3x3/s2/p1 ----
    taps3 = [jnp.dot(g3m_ref[t], a2, preferred_element_type=f32).astype(bf16)
             for t in range(9)]
    im3 = jnp.concatenate(taps3, axis=-1)                     # (N*4, 1152) bf16
    y3 = jnp.dot(im3, w3_ref[...], preferred_element_type=f32)
    a3 = bn_relu(y3, g3_ref, b3_ref)                          # (N*4, 256) f32

    # ---- AdaptiveAvgPool2d((1,1)): exact f32 mean over each image's 4 rows ----
    rows = [jnp.mean(a3[n * 4:(n + 1) * 4], axis=0, keepdims=True) for n in range(N)]
    out_ref[...] = jnp.concatenate(rows, axis=0)              # (N, 256) lane-dense


def _fused_call(p1, params, n_batch):
    inputs = (p1,
              params["w1m"], params["g1"], params["b1"],
              params["g2m"], params["w2m"], params["g2"], params["b2"],
              params["g3m"], params["w3m"], params["g3"], params["b3"])
    m2 = params["g2m"].shape[1]
    m3 = params["g3m"].shape[1]
    flops = 2 * (p1.shape[0] * K1_PAD * C1_PAD                 # conv1
                 + 9 * m2 * params["g2m"].shape[2] * C1_PAD    # conv2 gathers
                 + m2 * 9 * C1_PAD * 128                       # conv2
                 + 9 * m3 * params["g3m"].shape[2] * 128       # conv3 gathers
                 + m3 * 9 * 128 * 256)                         # conv3
    bytes_accessed = sum(int(np.prod(a.shape)) * a.dtype.itemsize for a in inputs) \
        + n_batch * 256 * 4
    return pl.pallas_call(
        functools.partial(_fused_cnn_kernel, n_batch=n_batch),
        out_shape=jax.ShapeDtypeStruct((n_batch, 256), jnp.float32),
        in_specs=[pl.BlockSpec(memory_space=pltpu.MemorySpace.VMEM) for _ in inputs],
        out_specs=pl.BlockSpec(memory_space=pltpu.MemorySpace.VMEM),
        cost_estimate=pl.CostEstimate(flops=int(flops), transcendentals=512,
                                      bytes_accessed=int(bytes_accessed)),
    )(*inputs)


# ---------------------------------------------------------------------------
# Host/XLA-side glue (runs once per forward): conv1 im2col only.
# ---------------------------------------------------------------------------
def _conv1_patches(x_nhwc):
    """im2col for conv1 (7x7/s2/p3). Rows ordered (h%2, w%2, n, h//2, w//2) so the
    in-kernel maxpool needs no gathers; features (ki,kj,cin) padded 147 -> 256."""
    n, h, w, c = x_nhwc.shape
    kh = kw = 7
    stride, pad = 2, 3
    oh = (h + 2 * pad - kh) // stride + 1
    ow = (w + 2 * pad - kw) // stride + 1
    assert oh % 2 == 0 and ow % 2 == 0
    xp = jnp.pad(x_nhwc, ((0, 0), (pad, pad), (pad, pad), (0, 0)))
    slabs = []
    for ki in range(kh):
        for kj in range(kw):
            slabs.append(xp[:, ki:ki + stride * (oh - 1) + 1:stride,
                             kj:kj + stride * (ow - 1) + 1:stride, :])
    patches = jnp.concatenate(slabs, axis=-1)                   # (n, oh, ow, 147)
    k_feat = kh * kw * c
    p = patches.reshape(n, oh // 2, 2, ow // 2, 2, k_feat)      # (n, r, dr, c, dc, K)
    p = jnp.transpose(p, (2, 4, 0, 1, 3, 5)).reshape(n * oh * ow, k_feat)
    return jnp.pad(p, ((0, 0), (0, K1_PAD - k_feat)))


def custom_cnn_forward(x_nchw, params):
    n = x_nchw.shape[0]
    x = jnp.transpose(x_nchw, (0, 2, 3, 1)).astype(jnp.float32)   # NCHW -> NHWC
    p1 = _conv1_patches(x).astype(jnp.bfloat16)                   # (N*256, 256)
    out = _fused_call(p1, params, n)                              # (N, 256)
    return out.reshape(n, 256, 1, 1)                              # like PyTorch


# ---------------------------------------------------------------------------
# One-time parameter / constant preparation.
# ---------------------------------------------------------------------------
def _tap_gather(n, hin, hout):
    """bf16 one-hot row-gathers (9, n*hout^2, n*hin^2) for a 3x3/s2/p1 window over
    row-major (n, h, w). Out-of-bounds taps are all-zero rows (== zero padding)."""
    # TODO(synk): block-diagonal per image; store a single (hout^2, hin^2) block to
    #             make VMEM O(1) in batch if N ever grows (v7x 64 MiB VMEM concern).
    g = np.zeros((9, n * hout * hout, n * hin * hin), np.float32)
    for ki in range(3):
        for kj in range(3):
            t = ki * 3 + kj
            for b in range(n):
                for r in range(hout):
                    for cc in range(hout):
                        ih, iw = 2 * r + ki - 1, 2 * cc + kj - 1
                        if 0 <= ih < hin and 0 <= iw < hin:
                            g[t, b * hout * hout + r * hout + cc,
                                 b * hin * hin + ih * hin + iw] = 1.0
    return jnp.asarray(g, jnp.bfloat16)


def init_params(key, n_batch=2, in_hw=32):
    assert in_hw == 32, "kernel spatial constants assume 32x32 inputs (16->8->4->2)"
    k1, k2, k3 = jax.random.split(key, 3)

    def conv_w(k, cout, cin, kh, kw):
        bound = 1.0 / ((cin * kh * kw) ** 0.5)
        return jax.random.uniform(k, (cout, cin, kh, kw), jnp.float32, -bound, bound)

    w1 = conv_w(k1, 64, 3, 7, 7)
    w2 = conv_w(k2, 128, 64, 3, 3)
    w3 = conv_w(k3, 256, 128, 3, 3)

    # conv1 -> matmul layout rows (ki*7+kj)*3+cin, zero-padded to K=256 / Cout=128.
    w1m = jnp.transpose(w1, (2, 3, 1, 0)).reshape(147, 64)
    w1m = jnp.pad(w1m, ((0, K1_PAD - 147), (0, C1_PAD - 64))).astype(jnp.bfloat16)
    # conv2 / conv3 -> per-tap (cin, cout) blocks stacked along K (tap-major),
    # matching the lane order of the in-kernel tap concatenation.
    w2m = jnp.transpose(w2, (2, 3, 1, 0)).reshape(9, 64, 128)
    w2m = jnp.pad(w2m, ((0, 0), (0, C1_PAD - 64), (0, 0)))
    w2m = w2m.reshape(9 * C1_PAD, 128).astype(jnp.bfloat16)
    w3m = jnp.transpose(w3, (2, 3, 1, 0)).reshape(9 * 128, 256).astype(jnp.bfloat16)

    return {
        "w1m": w1m, "w2m": w2m, "w3m": w3m,
        # BatchNorm affine params (PyTorch defaults gamma=1, beta=0), f32.
        "g1": jnp.ones((1, C1_PAD), jnp.float32), "b1": jnp.zeros((1, C1_PAD), jnp.float32),
        "g2": jnp.ones((1, 128), jnp.float32), "b2": jnp.zeros((1, 128), jnp.float32),
        "g3": jnp.ones((1, 256), jnp.float32), "b3": jnp.zeros((1, 256), jnp.float32),
        # Exact bf16 one-hot im2col gathers for conv2 / conv3 (tiny).
        "g2m": _tap_gather(n_batch, 8, 4),   # (9, N*16, N*64)
        "g3m": _tap_gather(n_batch, 4, 2),   # (9, N*4,  N*16)
        # Raw f32 weights kept only for the pure-JAX reference check below.
        "w1": w1, "w2": w2, "w3": w3,
    }


# ---------------------------------------------------------------------------
# Pure-JAX f32 reference (training-mode BN, gamma=1, beta=0) for validation.
# ---------------------------------------------------------------------------
def reference_forward(x_nchw, params):
    def conv(x, w, stride, pad):
        return jax.lax.conv_general_dilated(
            x, w, (stride, stride), ((pad, pad), (pad, pad)),
            dimension_numbers=("NCHW", "OIHW", "NCHW"),
            precision=jax.lax.Precision.HIGHEST)

    def bn_relu(x):
        mean = jnp.mean(x, axis=(0, 2, 3), keepdims=True)
        var = jnp.mean((x - mean) ** 2, axis=(0, 2, 3), keepdims=True)
        return jnp.maximum((x - mean) * jax.lax.rsqrt(var + EPS), 0.0)

    y = bn_relu(conv(x_nchw, params["w1"], 2, 3))
    y = jax.lax.reduce_window(y, -jnp.inf, jax.lax.max, (1, 1, 3, 3), (1, 1, 2, 2),
                              ((0, 0), (0, 0), (1, 1), (1, 1)))
    y = bn_relu(conv(y, params["w2"], 2, 1))
    y = bn_relu(conv(y, params["w3"], 2, 1))
    return jnp.mean(y, axis=(2, 3), keepdims=True)   # (N, 256, 1, 1)


if __name__ == "__main__":
    key = jax.random.PRNGKey(0)
    kp, kx = jax.random.split(key)
    params = init_params(kp, n_batch=2, in_hw=32)
    x = jax.random.normal(kx, (2, 3, 32, 32), jnp.float32)   # NCHW, num_channels=3

    out = jax.jit(custom_cnn_forward)(x, params)
    out = jax.block_until_ready(out)

    assert out.shape == (2, 256, 1, 1), out.shape
    assert bool(jnp.all(jnp.isfinite(out)))

    ref = reference_forward(x, params)
    rel = float(jnp.linalg.norm(out - ref) / (jnp.linalg.norm(ref) + 1e-12))
    assert rel < 0.1, f"relative L2 error vs f32 reference too large: {rel}"
    print("KERNEL_OK")
</pallas_src>

<mosaic_0001>
module attributes {stable_mosaic.version = 11 : i64} {
  func.func @_fused_cnn_kernel(%arg0: memref<512x256xbf16, #tpu.memory_space<vmem>>, %arg1: memref<256x128xbf16, #tpu.memory_space<vmem>>, %arg2: memref<1x128xf32, #tpu.memory_space<vmem>>, %arg3: memref<1x128xf32, #tpu.memory_space<vmem>>, %arg4: memref<9x32x128xbf16, #tpu.memory_space<vmem>>, %arg5: memref<1152x128xbf16, #tpu.memory_space<vmem>>, %arg6: memref<1x128xf32, #tpu.memory_space<vmem>>, %arg7: memref<1x128xf32, #tpu.memory_space<vmem>>, %arg8: memref<9x8x32xbf16, #tpu.memory_space<vmem>>, %arg9: memref<1152x256xbf16, #tpu.memory_space<vmem>>, %arg10: memref<1x256xf32, #tpu.memory_space<vmem>>, %arg11: memref<1x256xf32, #tpu.memory_space<vmem>>, %arg12: memref<2x256xf32, #tpu.memory_space<vmem>>) attributes {dimension_semantics = [], scalar_prefetch = 0 : i64, scratch_operands = 0 : i64, tpu.core_type = #tpu.core_type<tc>} {
    %c0 = arith.constant 0 : index
    %c0_0 = arith.constant 0 : index
    %0 = vector.load %arg0[%c0, %c0_0] : memref<512x256xbf16, #tpu.memory_space<vmem>>, vector<512x256xbf16>
    %c0_1 = arith.constant 0 : index
    %c0_2 = arith.constant 0 : index
    %1 = vector.load %arg1[%c0_1, %c0_2] : memref<256x128xbf16, #tpu.memory_space<vmem>>, vector<256x128xbf16>
    %cst = arith.constant dense<0.000000e+00> : vector<512x128xf32>
    %2 = tpu.matmul %0, %1, %cst {dimension_numbers = #tpu.dot_dimension_numbers<[1], [0], [0], [1], [0, 0, 1, 1], [], []>} : vector<512x256xbf16>, vector<256x128xbf16>, vector<512x128xf32> -> vector<512x128xf32>
    %cst_3 = arith.constant dense<0.000000e+00> : vector<128xf32>
    %3 = vector.multi_reduction <add>, %2, %cst_3 [0] : vector<512x128xf32> to vector<128xf32>
    %4 = vector.shape_cast %3 : vector<128xf32> to vector<1x128xf32>
    %cst_4 = arith.constant 5.120000e+02 : f32
    %5 = vector.broadcast %cst_4 : f32 to vector<1x128xf32>
    %6 = arith.divf %4, %5 : vector<1x128xf32>
    %7 = vector.broadcast %6 : vector<1x128xf32> to vector<512x128xf32>
    %8 = arith.subf %2, %7 : vector<512x128xf32>
    %9 = arith.mulf %8, %8 : vector<512x128xf32>
    %cst_5 = arith.constant dense<0.000000e+00> : vector<128xf32>
    %10 = vector.multi_reduction <add>, %9, %cst_5 [0] : vector<512x128xf32> to vector<128xf32>
    %11 = vector.shape_cast %10 : vector<128xf32> to vector<1x128xf32>
    %cst_6 = arith.constant 5.120000e+02 : f32
    %12 = vector.broadcast %cst_6 : f32 to vector<1x128xf32>
    %13 = arith.divf %11, %12 : vector<1x128xf32>
    %cst_7 = arith.constant 9.99999974E-6 : f32
    %14 = vector.broadcast %cst_7 : f32 to vector<1x128xf32>
    %15 = arith.addf %13, %14 : vector<1x128xf32>
    %16 = math.rsqrt %15 : vector<1x128xf32>
    %c0_8 = arith.constant 0 : index
    %c0_9 = arith.constant 0 : index
    %17 = vector.load %arg2[%c0_8, %c0_9] : memref<1x128xf32, #tpu.memory_space<vmem>>, vector<1x128xf32>
    %18 = arith.mulf %16, %17 : vector<1x128xf32>
    %19 = vector.broadcast %18 : vector<1x128xf32> to vector<512x128xf32>
    %20 = arith.mulf %8, %19 : vector<512x128xf32>
    %c0_10 = arith.constant 0 : index
    %c0_11 = arith.constant 0 : index
    %21 = vector.load %arg3[%c0_10, %c0_11] : memref<1x128xf32, #tpu.memory_space<vmem>>, vector<1x128xf32>
    %22 = vector.broadcast %21 : vector<1x128xf32> to vector<512x128xf32>
    %23 = arith.addf %20, %22 : vector<512x128xf32>
    %cst_12 = arith.constant 0.000000e+00 : f32
    %24 = vector.broadcast %cst_12 : f32 to vector<512x128xf32>
    %25 = arith.maximumf %23, %24 : vector<512x128xf32>
    %26 = vector.extract_strided_slice %25 {offsets = [0, 0], sizes = [128, 128], strides = [1, 1]} : vector<512x128xf32> to vector<128x128xf32>
    %27 = vector.shape_cast %26 : vector<128x128xf32> to vector<2x8x8x128xf32>
    %28 = vector.extract_strided_slice %25 {offsets = [128, 0], sizes = [128, 128], strides = [1, 1]} : vector<512x128xf32> to vector<128x128xf32>
    %29 = vector.shape_cast %28 : vector<128x128xf32> to vector<2x8x8x128xf32>
    %30 = vector.extract_strided_slice %25 {offsets = [256, 0], sizes = [128, 128], strides = [1, 1]} : vector<512x128xf32> to vector<128x128xf32>
    %31 = vector.shape_cast %30 : vector<128x128xf32> to vector<2x8x8x128xf32>
    %32 = vector.extract_strided_slice %25 {offsets = [384, 0], sizes = [128, 128], strides = [1, 1]} : vector<512x128xf32> to vector<128x128xf32>
    %33 = vector.shape_cast %32 : vector<128x128xf32> to vector<2x8x8x128xf32>
    %34 = arith.maximumf %27, %31 : vector<2x8x8x128xf32>
    %cst_13 = arith.constant 0.000000e+00 : f32
    %35 = vector.broadcast %cst_13 : f32 to vector<2x1x8x128xf32>
    %36 = vector.extract_strided_slice %31 {offsets = [0, 0, 0, 0], sizes = [2, 7, 8, 128], strides = [1, 1, 1, 1]} : vector<2x8x8x128xf32> to vector<2x7x8x128xf32>
    %37 = tpu.concatenate %35, %36 in 1 : vector<2x1x8x128xf32>, vector<2x7x8x128xf32> -> vector<2x8x8x128xf32>
    %38 = arith.maximumf %34, %37 : vector<2x8x8x128xf32>
    %39 = arith.maximumf %29, %33 : vector<2x8x8x128xf32>
    %cst_14 = arith.constant 0.000000e+00 : f32
    %40 = vector.broadcast %cst_14 : f32 to vector<2x1x8x128xf32>
    %41 = vector.extract_strided_slice %33 {offsets = [0, 0, 0, 0], sizes = [2, 7, 8, 128], strides = [1, 1, 1, 1]} : vector<2x8x8x128xf32> to vector<2x7x8x128xf32>
    %42 = tpu.concatenate %40, %41 in 1 : vector<2x1x8x128xf32>, vector<2x7x8x128xf32> -> vector<2x8x8x128xf32>
    %43 = arith.maximumf %39, %42 : vector<2x8x8x128xf32>
    %44 = arith.maximumf %38, %43 : vector<2x8x8x128xf32>
    %cst_15 = arith.constant 0.000000e+00 : f32
    %45 = vector.broadcast %cst_15 : f32 to vector<2x8x1x128xf32>
    %46 = vector.extract_strided_slice %43 {offsets = [0, 0, 0, 0], sizes = [2, 8, 7, 128], strides = [1, 1, 1, 1]} : vector<2x8x8x128xf32> to vector<2x8x7x128xf32>
    %47 = tpu.concatenate %45, %46 in 2 : vector<2x8x1x128xf32>, vector<2x8x7x128xf32> -> vector<2x8x8x128xf32>
    %48 = arith.maximumf %44, %47 : vector<2x8x8x128xf32>
    %49 = vector.shape_cast %48 : vector<2x8x8x128xf32> to vector<128x128xf32>
    %50 = arith.truncf %49 : vector<128x128xf32> to vector<128x128xbf16>
    %c0_16 = arith.constant 0 : index
    %c0_17 = arith.constant 0 : index
    %c0_18 = arith.constant 0 : index
    %51 = vector.load %arg4[%c0_16, %c0_17, %c0_18] : memref<9x32x128xbf16, #tpu.memory_space<vmem>>, vector<1x32x128xbf16>
    %52 = vector.shape_cast %51 : vector<1x32x128xbf16> to vector<32x128xbf16>
    %cst_19 = arith.constant dense<0.000000e+00> : vector<32x128xf32>
    %53 = tpu.matmul %52, %50, %cst_19 {dimension_numbers = #tpu.dot_dimension_numbers<[1], [0], [0], [1], [0, 0, 1, 1], [], []>} : vector<32x128xbf16>, vector<128x128xbf16>, vector<32x128xf32> -> vector<32x128xf32>
    %54 = arith.truncf %53 : vector<32x128xf32> to vector<32x128xbf16>
    %c1 = arith.constant 1 : index
    %c0_20 = arith.constant 0 : index
    %c0_21 = arith.constant 0 : index
    %55 = vector.load %arg4[%c1, %c0_20, %c0_21] : memref<9x32x128xbf16, #tpu.memory_space<vmem>>, vector<1x32x128xbf16>
    %56 = vector.shape_cast %55 : vector<1x32x128xbf16> to vector<32x128xbf16>
    %cst_22 = arith.constant dense<0.000000e+00> : vector<32x128xf32>
    %57 = tpu.matmul %56, %50, %cst_22 {dimension_numbers = #tpu.dot_dimension_numbers<[1], [0], [0], [1], [0, 0, 1, 1], [], []>} : vector<32x128xbf16>, vector<128x128xbf16>, vector<32x128xf32> -> vector<32x128xf32>
    %58 = arith.truncf %57 : vector<32x128xf32> to vector<32x128xbf16>
    %c2 = arith.constant 2 : index
    %c0_23 = arith.constant 0 : index
    %c0_24 = arith.constant 0 : index
    %59 = vector.load %arg4[%c2, %c0_23, %c0_24] : memref<9x32x128xbf16, #tpu.memory_space<vmem>>, vector<1x32x128xbf16>
    %60 = vector.shape_cast %59 : vector<1x32x128xbf16> to vector<32x128xbf16>
    %cst_25 = arith.constant dense<0.000000e+00> : vector<32x128xf32>
    %61 = tpu.matmul %60, %50, %cst_25 {dimension_numbers = #tpu.dot_dimension_numbers<[1], [0], [0], [1], [0, 0, 1, 1], [], []>} : vector<32x128xbf16>, vector<128x128xbf16>, vector<32x128xf32> -> vector<32x128xf32>
    %62 = arith.truncf %61 : vector<32x128xf32> to vector<32x128xbf16>
    %c3 = arith.constant 3 : index
    %c0_26 = arith.constant 0 : index
    %c0_27 = arith.constant 0 : index
    %63 = vector.load %arg4[%c3, %c0_26, %c0_27] : memref<9x32x128xbf16, #tpu.memory_space<vmem>>, vector<1x32x128xbf16>
    %64 = vector.shape_cast %63 : vector<1x32x128xbf16> to vector<32x128xbf16>
    %cst_28 = arith.constant dense<0.000000e+00> : vector<32x128xf32>
    %65 = tpu.matmul %64, %50, %cst_28 {dimension_numbers = #tpu.dot_dimension_numbers<[1], [0], [0], [1], [0, 0, 1, 1], [], []>} : vector<32x128xbf16>, vector<128x128xbf16>, vector<32x128xf32> -> vector<32x128xf32>
    %66 = arith.truncf %65 : vector<32x128xf32> to vector<32x128xbf16>
    %c4 = arith.constant 4 : index
    %c0_29 = arith.constant 0 : index
    %c0_30 = arith.constant 0 : index
    %67 = vector.load %arg4[%c4, %c0_29, %c0_30] : memref<9x32x128xbf16, #tpu.memory_space<vmem>>, vector<1x32x128xbf16>
    %68 = vector.shape_cast %67 : vector<1x32x128xbf16> to vector<32x128xbf16>
    %cst_31 = arith.constant dense<0.000000e+00> : vector<32x128xf32>
    %69 = tpu.matmul %68, %50, %cst_31 {dimension_numbers = #tpu.dot_dimension_numbers<[1], [0], [0], [1], [0, 0, 1, 1], [], []>} : vector<32x128xbf16>, vector<128x128xbf16>, vector<32x128xf32> -> vector<32x128xf32>
    %70 = arith.truncf %69 : vector<32x128xf32> to vector<32x128xbf16>
    %c5 = arith.constant 5 : index
    %c0_32 = arith.constant 0 : index
    %c0_33 = arith.constant 0 : index
    %71 = vector.load %arg4[%c5, %c0_32, %c0_33] : memref<9x32x128xbf16, #tpu.memory_space<vmem>>, vector<1x32x128xbf16>
    %72 = vector.shape_cast %71 : vector<1x32x128xbf16> to vector<32x128xbf16>
    %cst_34 = arith.constant dense<0.000000e+00> : vector<32x128xf32>
    %73 = tpu.matmul %72, %50, %cst_34 {dimension_numbers = #tpu.dot_dimension_numbers<[1], [0], [0], [1], [0, 0, 1, 1], [], []>} : vector<32x128xbf16>, vector<128x128xbf16>, vector<32x128xf32> -> vector<32x128xf32>
    %74 = arith.truncf %73 : vector<32x128xf32> to vector<32x128xbf16>
    %c6 = arith.constant 6 : index
    %c0_35 = arith.constant 0 : index
    %c0_36 = arith.constant 0 : index
    %75 = vector.load %arg4[%c6, %c0_35, %c0_36] : memref<9x32x128xbf16, #tpu.memory_space<vmem>>, vector<1x32x128xbf16>
    %76 = vector.shape_cast %75 : vector<1x32x128xbf16> to vector<32x128xbf16>
    %cst_37 = arith.constant dense<0.000000e+00> : vector<32x128xf32>
    %77 = tpu.matmul %76, %50, %cst_37 {dimension_numbers = #tpu.dot_dimension_numbers<[1], [0], [0], [1], [0, 0, 1, 1], [], []>} : vector<32x128xbf16>, vector<128x128xbf16>, vector<32x128xf32> -> vector<32x128xf32>
    %78 = arith.truncf %77 : vector<32x128xf32> to vector<32x128xbf16>
    %c7 = arith.constant 7 : index
    %c0_38 = arith.constant 0 : index
    %c0_39 = arith.constant 0 : index
    %79 = vector.load %arg4[%c7, %c0_38, %c0_39] : memref<9x32x128xbf16, #tpu.memory_space<vmem>>, vector<1x32x128xbf16>
    %80 = vector.shape_cast %79 : vector<1x32x128xbf16> to vector<32x128xbf16>
    %cst_40 = arith.constant dense<0.000000e+00> : vector<32x128xf32>
    %81 = tpu.matmul %80, %50, %cst_40 {dimension_numbers = #tpu.dot_dimension_numbers<[1], [0], [0], [1], [0, 0, 1, 1], [], []>} : vector<32x128xbf16>, vector<128x128xbf16>, vector<32x128xf32> -> vector<32x128xf32>
    %82 = arith.truncf %81 : vector<32x128xf32> to vector<32x128xbf16>
    %c8 = arith.constant 8 : index
    %c0_41 = arith.constant 0 : index
    %c0_42 = arith.constant 0 : index
    %83 = vector.load %arg4[%c8, %c0_41, %c0_42] : memref<9x32x128xbf16, #tpu.memory_space<vmem>>, vector<1x32x128xbf16>
    %84 = vector.shape_cast %83 : vector<1x32x128xbf16> to vector<32x128xbf16>
    %cst_43 = arith.constant dense<0.000000e+00> : vector<32x128xf32>
    %85 = tpu.matmul %84, %50, %cst_43 {dimension_numbers = #tpu.dot_dimension_numbers<[1], [0], [0], [1], [0, 0, 1, 1], [], []>} : vector<32x128xbf16>, vector<128x128xbf16>, vector<32x128xf32> -> vector<32x128xf32>
    %86 = arith.truncf %85 : vector<32x128xf32> to vector<32x128xbf16>
    %87 = tpu.concatenate %54, %58, %62, %66, %70, %74, %78, %82, %86 in 1 : vector<32x128xbf16>, vector<32x128xbf16>, vector<32x128xbf16>, vector<32x128xbf16>, vector<32x128xbf16>, vector<32x128xbf16>, vector<32x128xbf16>, vector<32x128xbf16>, vector<32x128xbf16> -> vector<32x1152xbf16>
    %c0_44 = arith.constant 0 : index
    %c0_45 = arith.constant 0 : index
    %88 = vector.load %arg5[%c0_44, %c0_45] : memref<1152x128xbf16, #tpu.memory_space<vmem>>, vector<1152x128xbf16>
    %cst_46 = arith.constant dense<0.000000e+00> : vector<32x128xf32>
    %89 = tpu.matmul %87, %88, %cst_46 {dimension_numbers = #tpu.dot_dimension_numbers<[1], [0], [0], [1], [0, 0, 1, 1], [], []>} : vector<32x1152xbf16>, vector<1152x128xbf16>, vector<32x128xf32> -> vector<32x128xf32>
    %cst_47 = arith.constant dense<0.000000e+00> : vector<128xf32>
    %90 = vector.multi_reduction <add>, %89, %cst_47 [0] : vector<32x128xf32> to vector<128xf32>
    %91 = vector.shape_cast %90 : vector<128xf32> to vector<1x128xf32>
    %cst_48 = arith.constant 3.200000e+01 : f32
    %92 = vector.broadcast %cst_48 : f32 to vector<1x128xf32>
    %93 = arith.divf %91, %92 : vector<1x128xf32>
    %94 = vector.broadcast %93 : vector<1x128xf32> to vector<32x128xf32>
    %95 = arith.subf %89, %94 : vector<32x128xf32>
    %96 = arith.mulf %95, %95 : vector<32x128xf32>
    %cst_49 = arith.constant dense<0.000000e+00> : vector<128xf32>
    %97 = vector.multi_reduction <add>, %96, %cst_49 [0] : vector<32x128xf32> to vector<128xf32>
    %98 = vector.shape_cast %97 : vector<128xf32> to vector<1x128xf32>
    %cst_50 = arith.constant 3.200000e+01 : f32
    %99 = vector.broadcast %cst_50 : f32 to vector<1x128xf32>
    %100 = arith.divf %98, %99 : vector<1x128xf32>
    %cst_51 = arith.constant 9.99999974E-6 : f32
    %101 = vector.broadcast %cst_51 : f32 to vector<1x128xf32>
    %102 = arith.addf %100, %101 : vector<1x128xf32>
    %103 = math.rsqrt %102 : vector<1x128xf32>
    %c0_52 = arith.constant 0 : index
    %c0_53 = arith.constant 0 : index
    %104 = vector.load %arg6[%c0_52, %c0_53] : memref<1x128xf32, #tpu.memory_space<vmem>>, vector<1x128xf32>
    %105 = arith.mulf %103, %104 : vector<1x128xf32>
    %106 = vector.broadcast %105 : vector<1x128xf32> to vector<32x128xf32>
    %107 = arith.mulf %95, %106 : vector<32x128xf32>
    %c0_54 = arith.constant 0 : index
    %c0_55 = arith.constant 0 : index
    %108 = vector.load %arg7[%c0_54, %c0_55] : memref<1x128xf32, #tpu.memory_space<vmem>>, vector<1x128xf32>
    %109 = vector.broadcast %108 : vector<1x128xf32> to vector<32x128xf32>
    %110 = arith.addf %107, %109 : vector<32x128xf32>
    %cst_56 = arith.constant 0.000000e+00 : f32
    %111 = vector.broadcast %cst_56 : f32 to vector<32x128xf32>
    %112 = arith.maximumf %110, %111 : vector<32x128xf32>
    %113 = arith.truncf %112 : vector<32x128xf32> to vector<32x128xbf16>
    %c0_57 = arith.constant 0 : index
    %c0_58 = arith.constant 0 : index
    %c0_59 = arith.constant 0 : index
    %114 = vector.load %arg8[%c0_57, %c0_58, %c0_59] : memref<9x8x32xbf16, #tpu.memory_space<vmem>>, vector<1x8x32xbf16>
    %115 = vector.shape_cast %114 : vector<1x8x32xbf16> to vector<8x32xbf16>
    %cst_60 = arith.constant dense<0.000000e+00> : vector<8x128xf32>
    %116 = tpu.matmul %115, %113, %cst_60 {dimension_numbers = #tpu.dot_dimension_numbers<[1], [0], [0], [1], [0, 0, 1, 1], [], []>} : vector<8x32xbf16>, vector<32x128xbf16>, vector<8x128xf32> -> vector<8x128xf32>
    %117 = arith.truncf %116 : vector<8x128xf32> to vector<8x128xbf16>
    %c1_61 = arith.constant 1 : index
    %c0_62 = arith.constant 0 : index
    %c0_63 = arith.constant 0 : index
    %118 = vector.load %arg8[%c1_61, %c0_62, %c0_63] : memref<9x8x32xbf16, #tpu.memory_space<vmem>>, vector<1x8x32xbf16>
    %119 = vector.shape_cast %118 : vector<1x8x32xbf16> to vector<8x32xbf16>
    %cst_64 = arith.constant dense<0.000000e+00> : vector<8x128xf32>
    %120 = tpu.matmul %119, %113, %cst_64 {dimension_numbers = #tpu.dot_dimension_numbers<[1], [0], [0], [1], [0, 0, 1, 1], [], []>} : vector<8x32xbf16>, vector<32x128xbf16>, vector<8x128xf32> -> vector<8x128xf32>
    %121 = arith.truncf %120 : vector<8x128xf32> to vector<8x128xbf16>
    %c2_65 = arith.constant 2 : index
    %c0_66 = arith.constant 0 : index
    %c0_67 = arith.constant 0 : index
    %122 = vector.load %arg8[%c2_65, %c0_66, %c0_67] : memref<9x8x32xbf16, #tpu.memory_space<vmem>>, vector<1x8x32xbf16>
    %123 = vector.shape_cast %122 : vector<1x8x32xbf16> to vector<8x32xbf16>
    %cst_68 = arith.constant dense<0.000000e+00> : vector<8x128xf32>
    %124 = tpu.matmul %123, %113, %cst_68 {dimension_numbers = #tpu.dot_dimension_numbers<[1], [0], [0], [1], [0, 0, 1, 1], [], []>} : vector<8x32xbf16>, vector<32x128xbf16>, vector<8x128xf32> -> vector<8x128xf32>
    %125 = arith.truncf %124 : vector<8x128xf32> to vector<8x128xbf16>
    %c3_69 = arith.constant 3 : index
    %c0_70 = arith.constant 0 : index
    %c0_71 = arith.constant 0 : index
    %126 = vector.load %arg8[%c3_69, %c0_70, %c0_71] : memref<9x8x32xbf16, #tpu.memory_space<vmem>>, vector<1x8x32xbf16>
    %127 = vector.shape_cast %126 : vector<1x8x32xbf16> to vector<8x32xbf16>
    %cst_72 = arith.constant dense<0.000000e+00> : vector<8x128xf32>
    %128 = tpu.matmul %127, %113, %cst_72 {dimension_numbers = #tpu.dot_dimension_numbers<[1], [0], [0], [1], [0, 0, 1, 1], [], []>} : vector<8x32xbf16>, vector<32x128xbf16>, vector<8x128xf32> -> vector<8x128xf32>
    %129 = arith.truncf %128 : vector<8x128xf32> to vector<8x128xbf16>
    %c4_73 = arith.constant 4 : index
    %c0_74 = arith.constant 0 : index
    %c0_75 = arith.constant 0 : index
    %130 = vector.load %arg8[%c4_73, %c0_74, %c0_75] : memref<9x8x32xbf16, #tpu.memory_space<vmem>>, vector<1x8x32xbf16>
    %131 = vector.shape_cast %130 : vector<1x8x32xbf16> to vector<8x32xbf16>
    %cst_76 = arith.constant dense<0.000000e+00> : vector<8x128xf32>
    %132 = tpu.matmul %131, %113, %cst_76 {dimension_numbers = #tpu.dot_dimension_numbers<[1], [0], [0], [1], [0, 0, 1, 1], [], []>} : vector<8x32xbf16>, vector<32x128xbf16>, vector<8x128xf32> -> vector<8x128xf32>
    %133 = arith.truncf %132 : vector<8x128xf32> to vector<8x128xbf16>
    %c5_77 = arith.constant 5 : index
    %c0_78 = arith.constant 0 : index
    %c0_79 = arith.constant 0 : index
    %134 = vector.load %arg8[%c5_77, %c0_78, %c0_79] : memref<9x8x32xbf16, #tpu.memory_space<vmem>>, vector<1x8x32xbf16>
    %135 = vector.shape_cast %134 : vector<1x8x32xbf16> to vector<8x32xbf16>
    %cst_80 = arith.constant dense<0.000000e+00> : vector<8x128xf32>
    %136 = tpu.matmul %135, %113, %cst_80 {dimension_numbers = #tpu.dot_dimension_numbers<[1], [0], [0], [1], [0, 0, 1, 1], [], []>} : vector<8x32xbf16>, vector<32x128xbf16>, vector<8x128xf32> -> vector<8x128xf32>
    %137 = arith.truncf %136 : vector<8x128xf32> to vector<8x128xbf16>
    %c6_81 = arith.constant 6 : index
    %c0_82 = arith.constant 0 : index
    %c0_83 = arith.constant 0 : index
    %138 = vector.load %arg8[%c6_81, %c0_82, %c0_83] : memref<9x8x32xbf16, #tpu.memory_space<vmem>>, vector<1x8x32xbf16>
    %139 = vector.shape_cast %138 : vector<1x8x32xbf16> to vector<8x32xbf16>
    %cst_84 = arith.constant dense<0.000000e+00> : vector<8x128xf32>
    %140 = tpu.matmul %139, %113, %cst_84 {dimension_numbers = #tpu.dot_dimension_numbers<[1], [0], [0], [1], [0, 0, 1, 1], [], []>} : vector<8x32xbf16>, vector<32x128xbf16>, vector<8x128xf32> -> vector<8x128xf32>
    %141 = arith.truncf %140 : vector<8x128xf32> to vector<8x128xbf16>
    %c7_85 = arith.constant 7 : index
    %c0_86 = arith.constant 0 : index
    %c0_87 = arith.constant 0 : index
    %142 = vector.load %arg8[%c7_85, %c0_86, %c0_87] : memref<9x8x32xbf16, #tpu.memory_space<vmem>>, vector<1x8x32xbf16>
    %143 = vector.shape_cast %142 : vector<1x8x32xbf16> to vector<8x32xbf16>
    %cst_88 = arith.constant dense<0.000000e+00> : vector<8x128xf32>
    %144 = tpu.matmul %143, %113, %cst_88 {dimension_numbers = #tpu.dot_dimension_numbers<[1], [0], [0], [1], [0, 0, 1, 1], [], []>} : vector<8x32xbf16>, vector<32x128xbf16>, vector<8x128xf32> -> vector<8x128xf32>
    %145 = arith.truncf %144 : vector<8x128xf32> to vector<8x128xbf16>
    %c8_89 = arith.constant 8 : index
    %c0_90 = arith.constant 0 : index
    %c0_91 = arith.constant 0 : index
    %146 = vector.load %arg8[%c8_89, %c0_90, %c0_91] : memref<9x8x32xbf16, #tpu.memory_space<vmem>>, vector<1x8x32xbf16>
    %147 = vector.shape_cast %146 : vector<1x8x32xbf16> to vector<8x32xbf16>
    %cst_92 = arith.constant dense<0.000000e+00> : vector<8x128xf32>
    %148 = tpu.matmul %147, %113, %cst_92 {dimension_numbers = #tpu.dot_dimension_numbers<[1], [0], [0], [1], [0, 0, 1, 1], [], []>} : vector<8x32xbf16>, vector<32x128xbf16>, vector<8x128xf32> -> vector<8x128xf32>
    %149 = arith.truncf %148 : vector<8x128xf32> to vector<8x128xbf16>
    %150 = tpu.concatenate %117, %121, %125, %129, %133, %137, %141, %145, %149 in 1 : vector<8x128xbf16>, vector<8x128xbf16>, vector<8x128xbf16>, vector<8x128xbf16>, vector<8x128xbf16>, vector<8x128xbf16>, vector<8x128xbf16>, vector<8x128xbf16>, vector<8x128xbf16> -> vector<8x1152xbf16>
    %c0_93 = arith.constant 0 : index
    %c0_94 = arith.constant 0 : index
    %151 = vector.load %arg9[%c0_93, %c0_94] : memref<1152x256xbf16, #tpu.memory_space<vmem>>, vector<1152x256xbf16>
    %cst_95 = arith.constant dense<0.000000e+00> : vector<8x256xf32>
    %152 = tpu.matmul %150, %151, %cst_95 {dimension_numbers = #tpu.dot_dimension_numbers<[1], [0], [0], [1], [0, 0, 1, 1], [], []>} : vector<8x1152xbf16>, vector<1152x256xbf16>, vector<8x256xf32> -> vector<8x256xf32>
    %cst_96 = arith.constant dense<0.000000e+00> : vector<256xf32>
    %153 = vector.multi_reduction <add>, %152, %cst_96 [0] : vector<8x256xf32> to vector<256xf32>
    %154 = vector.shape_cast %153 : vector<256xf32> to vector<1x256xf32>
    %cst_97 = arith.constant 8.000000e+00 : f32
    %155 = vector.broadcast %cst_97 : f32 to vector<1x256xf32>
    %156 = arith.divf %154, %155 : vector<1x256xf32>
    %157 = vector.broadcast %156 : vector<1x256xf32> to vector<8x256xf32>
    %158 = arith.subf %152, %157 : vector<8x256xf32>
    %159 = arith.mulf %158, %158 : vector<8x256xf32>
    %cst_98 = arith.constant dense<0.000000e+00> : vector<256xf32>
    %160 = vector.multi_reduction <add>, %159, %cst_98 [0] : vector<8x256xf32> to vector<256xf32>
    %161 = vector.shape_cast %160 : vector<256xf32> to vector<1x256xf32>
    %cst_99 = arith.constant 8.000000e+00 : f32
    %162 = vector.broadcast %cst_99 : f32 to vector<1x256xf32>
    %163 = arith.divf %161, %162 : vector<1x256xf32>
    %cst_100 = arith.constant 9.99999974E-6 : f32
    %164 = vector.broadcast %cst_100 : f32 to vector<1x256xf32>
    %165 = arith.addf %163, %164 : vector<1x256xf32>
    %166 = math.rsqrt %165 : vector<1x256xf32>
    %c0_101 = arith.constant 0 : index
    %c0_102 = arith.constant 0 : index
    %167 = vector.load %arg10[%c0_101, %c0_102] : memref<1x256xf32, #tpu.memory_space<vmem>>, vector<1x256xf32>
    %168 = arith.mulf %166, %167 : vector<1x256xf32>
    %169 = vector.broadcast %168 : vector<1x256xf32> to vector<8x256xf32>
    %170 = arith.mulf %158, %169 : vector<8x256xf32>
    %c0_103 = arith.constant 0 : index
    %c0_104 = arith.constant 0 : index
    %171 = vector.load %arg11[%c0_103, %c0_104] : memref<1x256xf32, #tpu.memory_space<vmem>>, vector<1x256xf32>
    %172 = vector.broadcast %171 : vector<1x256xf32> to vector<8x256xf32>
    %173 = arith.addf %170, %172 : vector<8x256xf32>
    %cst_105 = arith.constant 0.000000e+00 : f32
    %174 = vector.broadcast %cst_105 : f32 to vector<8x256xf32>
    %175 = arith.maximumf %173, %174 : vector<8x256xf32>
    %176 = vector.extract_strided_slice %175 {offsets = [0, 0], sizes = [4, 256], strides = [1, 1]} : vector<8x256xf32> to vector<4x256xf32>
    %cst_106 = arith.constant dense<0.000000e+00> : vector<256xf32>
    %177 = vector.multi_reduction <add>, %176, %cst_106 [0] : vector<4x256xf32> to vector<256xf32>
    %178 = vector.shape_cast %177 : vector<256xf32> to vector<1x256xf32>
    %cst_107 = arith.constant 4.000000e+00 : f32
    %179 = vector.broadcast %cst_107 : f32 to vector<1x256xf32>
    %180 = arith.divf %178, %179 : vector<1x256xf32>
    %181 = vector.extract_strided_slice %175 {offsets = [4, 0], sizes = [4, 256], strides = [1, 1]} : vector<8x256xf32> to vector<4x256xf32>
    %cst_108 = arith.constant dense<0.000000e+00> : vector<256xf32>
    %182 = vector.multi_reduction <add>, %181, %cst_108 [0] : vector<4x256xf32> to vector<256xf32>
    %183 = vector.shape_cast %182 : vector<256xf32> to vector<1x256xf32>
    %cst_109 = arith.constant 4.000000e+00 : f32
    %184 = vector.broadcast %cst_109 : f32 to vector<1x256xf32>
    %185 = arith.divf %183, %184 : vector<1x256xf32>
    %186 = tpu.concatenate %180, %185 in 0 : vector<1x256xf32>, vector<1x256xf32> -> vector<2x256xf32>
    %c0_110 = arith.constant 0 : index
    %c0_111 = arith.constant 0 : index
    %187 = vector.load %arg12[%c0_110, %c0_111] : memref<2x256xf32, #tpu.memory_space<vmem>>, vector<2x256xf32>
    tpu.vector_store %arg12[%c0_110, %c0_111], %186 {strides = array<i32>} : memref<2x256xf32, #tpu.memory_space<vmem>>, vector<2x256xf32>,
    return
  }
}

</mosaic_0001>

<llo_original>
// kernel: custom_cnn_forward.1
$region0: #{custom_cnn_forward.1}
  #allocation0 [shape = 'u32[]', space=smem, size = 0x4, offset = 0x4, fixed_abs, tag = 'smem constant byte address 0x4 - core index']
  #allocation1 [shape = 'u32[144,128]{1,0:T(1,128)}', space=vmem, size = 0x12000, scoped, tag = 'internal scratch']
  %s0 = inlined_call_operand.vmem [shape: bf16[512,256], index: 0, kind: input, shape index: {}]
  %s1 = inlined_call_operand.vmem [shape: bf16[256,128], index: 1, kind: input, shape index: {}]
  %s2 = inlined_call_operand.vmem [shape: f32[1,128], index: 2, kind: input, shape index: {}]
  %s3 = inlined_call_operand.vmem [shape: f32[1,128], index: 3, kind: input, shape index: {}]
  %s4 = inlined_call_operand.vmem [shape: bf16[9,32,128], index: 4, kind: input, shape index: {}]
  %s5 = inlined_call_operand.vmem [shape: bf16[1152,128], index: 5, kind: input, shape index: {}]
  %s6 = inlined_call_operand.vmem [shape: f32[1,128], index: 6, kind: input, shape index: {}]
  %s7 = inlined_call_operand.vmem [shape: f32[1,128], index: 7, kind: input, shape index: {}]
  %s8 = inlined_call_operand.vmem [shape: bf16[9,8,32], index: 8, kind: input, shape index: {}]
  %s9 = inlined_call_operand.vmem [shape: bf16[1152,256], index: 9, kind: input, shape index: {}]
  %s10 = inlined_call_operand.vmem [shape: f32[1,256], index: 10, kind: input, shape index: {}]
  %s11 = inlined_call_operand.vmem [shape: f32[1,256], index: 11, kind: input, shape index: {}]
  %s12 = inlined_call_operand.vmem [shape: f32[2,256], index: 12, kind: output, shape index: {}]
  %s13 = sld [smem:[#allocation0]]
  $region58: #{custom_cnn_forward.1} parent=0
    _
  %s15 = ssub.s32 1, %s13
  %s16 = scalar_select 0, %s15, %s13
  // Predicated region
  $region2: #{custom_cnn_forward.1} parent=0 // pred_check
    _
  $region3: #{custom_cnn_forward.1} parent=0 // pred_check_branch
    %18 = sbr.rel (0) target = $region5
  $region4: #{custom_cnn_forward.1} parent=0 // pred_region
    _
  $region5: #{custom_cnn_forward.1} parent=0 // pred_fallthru
    _
  // Predicated region
  $region6: #{custom_cnn_forward.1} parent=0 // pred_check
    _
  $region7: #{custom_cnn_forward.1} parent=0 // pred_check_branch
    %20 = sbr.rel (0) target = $region9
  $region8: #{custom_cnn_forward.1} parent=0 // pred_region
    _
  $region9: #{custom_cnn_forward.1} parent=0 // pred_fallthru
    _
  // Predicated region
  $region10: #{custom_cnn_forward.1} parent=0 // pred_check
    _
  $region11: #{custom_cnn_forward.1} parent=0 // pred_check_branch
    %22 = sbr.rel (0) target = $region13
  $region12: #{custom_cnn_forward.1} parent=0 // pred_region
    _
  $region13: #{custom_cnn_forward.1} parent=0 // pred_fallthru
    _
  // Predicated region
  $region14: #{custom_cnn_forward.1} parent=0 // pred_check
    _
  $region15: #{custom_cnn_forward.1} parent=0 // pred_check_branch
    %24 = sbr.rel (0) target = $region17
  $region16: #{custom_cnn_forward.1} parent=0 // pred_region
    _
  $region17: #{custom_cnn_forward.1} parent=0 // pred_fallthru
    _
  // Predicated region
  $region18: #{custom_cnn_forward.1} parent=0 // pred_check
    _
  $region19: #{custom_cnn_forward.1} parent=0 // pred_check_branch
    %26 = sbr.rel (0) target = $region21
  $region20: #{custom_cnn_forward.1} parent=0 // pred_region
    _
  $region21: #{custom_cnn_forward.1} parent=0 // pred_fallthru
    _
  // Predicated region
  $region22: #{custom_cnn_forward.1} parent=0 // pred_check
    _
  $region23: #{custom_cnn_forward.1} parent=0 // pred_check_branch
    %28 = sbr.rel (0) target = $region25
  $region24: #{custom_cnn_forward.1} parent=0 // pred_region
    _
  $region25: #{custom_cnn_forward.1} parent=0 // pred_fallthru
    _
  // Predicated region
  $region26: #{custom_cnn_forward.1} parent=0 // pred_check
    _
  $region27: #{custom_cnn_forward.1} parent=0 // pred_check_branch
    %30 = sbr.rel (0) target = $region29
  $region28: #{custom_cnn_forward.1} parent=0 // pred_region
    _
  $region29: #{custom_cnn_forward.1} parent=0 // pred_fallthru
    _
  // Predicated region
  $region30: #{custom_cnn_forward.1} parent=0 // pred_check
    _
  $region31: #{custom_cnn_forward.1} parent=0 // pred_check_branch
    %32 = sbr.rel (0) target = $region33
  $region32: #{custom_cnn_forward.1} parent=0 // pred_region
    _
  $region33: #{custom_cnn_forward.1} parent=0 // pred_fallthru
    _
  // Predicated region
  $region34: #{custom_cnn_forward.1} parent=0 // pred_check
    _
  $region35: #{custom_cnn_forward.1} parent=0 // pred_check_branch
    %34 = sbr.rel (0) target = $region37
  $region36: #{custom_cnn_forward.1} parent=0 // pred_region
    _
  $region37: #{custom_cnn_forward.1} parent=0 // pred_fallthru
    _
  // Predicated region
  $region38: #{custom_cnn_forward.1} parent=0 // pred_check
    _
  $region39: #{custom_cnn_forward.1} parent=0 // pred_check_branch
    %36 = sbr.rel (0) target = $region41
  $region40: #{custom_cnn_forward.1} parent=0 // pred_region
    _
  $region41: #{custom_cnn_forward.1} parent=0 // pred_fallthru
    _
  // Predicated region
  $region42: #{custom_cnn_forward.1} parent=0 // pred_check
    _
  $region43: #{custom_cnn_forward.1} parent=0 // pred_check_branch
    %38 = sbr.rel (0) target = $region45
  $region44: #{custom_cnn_forward.1} parent=0 // pred_region
    _
  $region45: #{custom_cnn_forward.1} parent=0 // pred_fallthru
    _
  // Predicated region
  $region46: #{custom_cnn_forward.1} parent=0 // pred_check
    _
  $region47: #{custom_cnn_forward.1} parent=0 // pred_check_branch
    %40 = sbr.rel (0) target = $region49
  $region48: #{custom_cnn_forward.1} parent=0 // pred_region
    _
  $region49: #{custom_cnn_forward.1} parent=0 // pred_fallthru
    _
  %v42 = vld [vmem:[%s0] sm:$0xff]
  %v43 = vld [vmem:[%s0 + $0x8] sm:$0xff]
  %v44 = vld [vmem:[%s0 + $0x10] sm:$0xff]
  %v45 = vld [vmem:[%s0 + $0x18] sm:$0xff]
  %v46 = vld [vmem:[%s0 + $0x20] sm:$0xff]
  %v47 = vld [vmem:[%s0 + $0x28] sm:$0xff]
  %v48 = vld [vmem:[%s0 + $0x30] sm:$0xff]
  %v49 = vld [vmem:[%s0 + $0x38] sm:$0xff]
  %v50 = vld [vmem:[%s0 + $0x40] sm:$0xff]
  %v51 = vld [vmem:[%s0 + $0x48] sm:$0xff]
  %v52 = vld [vmem:[%s0 + $0x50] sm:$0xff]
  %v53 = vld [vmem:[%s0 + $0x58] sm:$0xff]
  %v54 = vld [vmem:[%s0 + $0x60] sm:$0xff]
  %v55 = vld [vmem:[%s0 + $0x68] sm:$0xff]
  %v56 = vld [vmem:[%s0 + $0x70] sm:$0xff]
  %v57 = vld [vmem:[%s0 + $0x78] sm:$0xff]
  %v58 = vld [vmem:[%s0 + $0x80] sm:$0xff]
  %v59 = vld [vmem:[%s0 + $0x88] sm:$0xff]
  %v60 = vld [vmem:[%s0 + $0x90] sm:$0xff]
  %v61 = vld [vmem:[%s0 + $0x98] sm:$0xff]
  %v62 = vld [vmem:[%s0 + $0xa0] sm:$0xff]
  %v63 = vld [vmem:[%s0 + $0xa8] sm:$0xff]
  %v64 = vld [vmem:[%s0 + $0xb0] sm:$0xff]
  %v65 = vld [vmem:[%s0 + $0xb8] sm:$0xff]
  %v66 = vld [vmem:[%s0 + $0xc0] sm:$0xff]
  %v67 = vld [vmem:[%s0 + $0xc8] sm:$0xff]
  %v68 = vld [vmem:[%s0 + $0xd0] sm:$0xff]
  %v69 = vld [vmem:[%s0 + $0xd8] sm:$0xff]
  %v70 = vld [vmem:[%s0 + $0xe0] sm:$0xff]
  %v71 = vld [vmem:[%s0 + $0xe8] sm:$0xff]
  %v72 = vld [vmem:[%s0 + $0xf0] sm:$0xff]
  %v73 = vld [vmem:[%s0 + $0xf8] sm:$0xff]
  %v74 = vld [vmem:[%s0 + $0x100] sm:$0xff]
  %v75 = vld [vmem:[%s0 + $0x108] sm:$0xff]
  %v76 = vld [vmem:[%s0 + $0x110] sm:$0xff]
  %v77 = vld [vmem:[%s0 + $0x118] sm:$0xff]
  %v78 = vld [vmem:[%s0 + $0x120] sm:$0xff]
  %v79 = vld [vmem:[%s0 + $0x128] sm:$0xff]
  %v80 = vld [vmem:[%s0 + $0x130] sm:$0xff]
  %v81 = vld [vmem:[%s0 + $0x138] sm:$0xff]
  %v82 = vld [vmem:[%s0 + $0x140] sm:$0xff]
  %v83 = vld [vmem:[%s0 + $0x148] sm:$0xff]
  %v84 = vld [vmem:[%s0 + $0x150] sm:$0xff]
  %v85 = vld [vmem:[%s0 + $0x158] sm:$0xff]
  %v86 = vld [vmem:[%s0 + $0x160] sm:$0xff]
  %v87 = vld [vmem:[%s0 + $0x168] sm:$0xff]
  %v88 = vld [vmem:[%s0 + $0x170] sm:$0xff]
  %v89 = vld [vmem:[%s0 + $0x178] sm:$0xff]
  %v90 = vld [vmem:[%s0 + $0x180] sm:$0xff]
  %v91 = vld [vmem:[%s0 + $0x188] sm:$0xff]
  %v92 = vld [vmem:[%s0 + $0x190] sm:$0xff]
  %v93 = vld [vmem:[%s0 + $0x198] sm:$0xff]
  %v94 = vld [vmem:[%s0 + $0x1a0] sm:$0xff]
  %v95 = vld [vmem:[%s0 + $0x1a8] sm:$0xff]
  %v96 = vld [vmem:[%s0 + $0x1b0] sm:$0xff]
  %v97 = vld [vmem:[%s0 + $0x1b8] sm:$0xff]
  %v98 = vld [vmem:[%s0 + $0x1c0] sm:$0xff]
  %v99 = vld [vmem:[%s0 + $0x1c8] sm:$0xff]
  %v100 = vld [vmem:[%s0 + $0x1d0] sm:$0xff]
  %v101 = vld [vmem:[%s0 + $0x1d8] sm:$0xff]
  %v102 = vld [vmem:[%s0 + $0x1e0] sm:$0xff]
  %v103 = vld [vmem:[%s0 + $0x1e8] sm:$0xff]
  %v104 = vld [vmem:[%s0 + $0x1f0] sm:$0xff]
  %v105 = vld [vmem:[%s0 + $0x1f8] sm:$0xff]
  %v106 = vld [vmem:[%s1] sm:$0xf]
  %v107 = vld [vmem:[%s1 + $0x4] sm:$0xf]
  %v108 = vld [vmem:[%s1 + $0x8] sm:$0xf]
  %v109 = vld [vmem:[%s1 + $0xc] sm:$0xf]
  %v110 = vld [vmem:[%s1 + $0x10] sm:$0xf]
  %v111 = vld [vmem:[%s1 + $0x14] sm:$0xf]
  %v112 = vld [vmem:[%s1 + $0x18] sm:$0xf]
  %v113 = vld [vmem:[%s1 + $0x1c] sm:$0xf]
  %v114 = vld [vmem:[%s1 + $0x20] sm:$0xf]
  %v115 = vld [vmem:[%s1 + $0x24] sm:$0xf]
  %v116 = vld [vmem:[%s1 + $0x28] sm:$0xf]
  %v117 = vld [vmem:[%s1 + $0x2c] sm:$0xf]
  %v118 = vld [vmem:[%s1 + $0x30] sm:$0xf]
  %v119 = vld [vmem:[%s1 + $0x34] sm:$0xf]
  %v120 = vld [vmem:[%s1 + $0x38] sm:$0xf]
  %v121 = vld [vmem:[%s1 + $0x3c] sm:$0xf]
  %v122 = vld [vmem:[%s1 + $0x40] sm:$0xf]
  %v123 = vld [vmem:[%s1 + $0x44] sm:$0xf]
  %v124 = vld [vmem:[%s1 + $0x48] sm:$0xf]
  %v125 = vld [vmem:[%s1 + $0x4c] sm:$0xf]
  %v126 = vld [vmem:[%s1 + $0x50] sm:$0xf]
  %v127 = vld [vmem:[%s1 + $0x54] sm:$0xf]
  %v128 = vld [vmem:[%s1 + $0x58] sm:$0xf]
  %v129 = vld [vmem:[%s1 + $0x5c] sm:$0xf]
  %v130 = vld [vmem:[%s1 + $0x60] sm:$0xf]
  %v131 = vld [vmem:[%s1 + $0x64] sm:$0xf]
  %v132 = vld [vmem:[%s1 + $0x68] sm:$0xf]
  %v133 = vld [vmem:[%s1 + $0x6c] sm:$0xf]
  %v134 = vld [vmem:[%s1 + $0x70] sm:$0xf]
  %v135 = vld [vmem:[%s1 + $0x74] sm:$0xf]
  %v136 = vld [vmem:[%s1 + $0x78] sm:$0xf]
  %v137 = vld [vmem:[%s1 + $0x7c] sm:$0xf]
  %v202 = vunpack.c.l.b16 %v42
  %v203 = vunpack.c.h.b16 %v42
  %v204 = vunpack.c.l.b16 %v43
  %v205 = vunpack.c.h.b16 %v43
  %v206 = vunpack.c.l.b16 %v44
  %v207 = vunpack.c.h.b16 %v44
  %v208 = vunpack.c.l.b16 %v45
  %v209 = vunpack.c.h.b16 %v45
  %v210 = vunpack.c.l.b16 %v46
  %v211 = vunpack.c.h.b16 %v46
  %v212 = vunpack.c.l.b16 %v47
  %v213 = vunpack.c.h.b16 %v47
  %v214 = vunpack.c.l.b16 %v48
  %v215 = vunpack.c.h.b16 %v48
  %v216 = vunpack.c.l.b16 %v49
  %v217 = vunpack.c.h.b16 %v49
  %v218 = vunpack.c.l.b16 %v50
  %v219 = vunpack.c.h.b16 %v50
  %v220 = vunpack.c.l.b16 %v51
  %v221 = vunpack.c.h.b16 %v51
  %v222 = vunpack.c.l.b16 %v52
  %v223 = vunpack.c.h.b16 %v52
  %v224 = vunpack.c.l.b16 %v53
  %v225 = vunpack.c.h.b16 %v53
  %v226 = vunpack.c.l.b16 %v54
  %v227 = vunpack.c.h.b16 %v54
  %v228 = vunpack.c.l.b16 %v55
  %v229 = vunpack.c.h.b16 %v55
  %v230 = vunpack.c.l.b16 %v56
  %v231 = vunpack.c.h.b16 %v56
  %v232 = vunpack.c.l.b16 %v57
  %v233 = vunpack.c.h.b16 %v57
  %v234 = vunpack.c.l.b16 %v58
  %v235 = vunpack.c.h.b16 %v58
  %v236 = vunpack.c.l.b16 %v59
  %v237 = vunpack.c.h.b16 %v59
  %v238 = vunpack.c.l.b16 %v60
  %v239 = vunpack.c.h.b16 %v60
  %v240 = vunpack.c.l.b16 %v61
  %v241 = vunpack.c.h.b16 %v61
  %v242 = vunpack.c.l.b16 %v62
  %v243 = vunpack.c.h.b16 %v62
  %v244 = vunpack.c.l.b16 %v63
  %v245 = vunpack.c.h.b16 %v63
  %v246 = vunpack.c.l.b16 %v64
  %v247 = vunpack.c.h.b16 %v64
  %v248 = vunpack.c.l.b16 %v65
  %v249 = vunpack.c.h.b16 %v65
  %v250 = vunpack.c.l.b16 %v66
  %v251 = vunpack.c.h.b16 %v66
  %v252 = vunpack.c.l.b16 %v67
  %v253 = vunpack.c.h.b16 %v67
  %v254 = vunpack.c.l.b16 %v68
  %v255 = vunpack.c.h.b16 %v68
  %v256 = vunpack.c.l.b16 %v69
  %v257 = vunpack.c.h.b16 %v69
  %v258 = vunpack.c.l.b16 %v70
  %v259 = vunpack.c.h.b16 %v70
  %v260 = vunpack.c.l.b16 %v71
  %v261 = vunpack.c.h.b16 %v71
  %v262 = vunpack.c.l.b16 %v72
  %v263 = vunpack.c.h.b16 %v72
  %v264 = vunpack.c.l.b16 %v73
  %v265 = vunpack.c.h.b16 %v73
  %v266 = vunpack.c.l.b16 %v74
  %v267 = vunpack.c.h.b16 %v74
  %v268 = vunpack.c.l.b16 %v75
  %v269 = vunpack.c.h.b16 %v75
  %v270 = vunpack.c.l.b16 %v76
  %v271 = vunpack.c.h.b16 %v76
  %v272 = vunpack.c.l.b16 %v77
  %v273 = vunpack.c.h.b16 %v77
  %v274 = vunpack.c.l.b16 %v78
  %v275 = vunpack.c.h.b16 %v78
  %v276 = vunpack.c.l.b16 %v79
  %v277 = vunpack.c.h.b16 %v79
  %v278 = vunpack.c.l.b16 %v80
  %v279 = vunpack.c.h.b16 %v80
  %v280 = vunpack.c.l.b16 %v81
  %v281 = vunpack.c.h.b16 %v81
  %v282 = vunpack.c.l.b16 %v82
  %v283 = vunpack.c.h.b16 %v82
  %v284 = vunpack.c.l.b16 %v83
  %v285 = vunpack.c.h.b16 %v83
  %v286 = vunpack.c.l.b16 %v84
  %v287 = vunpack.c.h.b16 %v84
  %v288 = vunpack.c.l.b16 %v85
  %v289 = vunpack.c.h.b16 %v85
  %v290 = vunpack.c.l.b16 %v86
  %v291 = vunpack.c.h.b16 %v86
  %v292 = vunpack.c.l.b16 %v87
  %v293 = vunpack.c.h.b16 %v87
  %v294 = vunpack.c.l.b16 %v88
  %v295 = vunpack.c.h.b16 %v88
  %v296 = vunpack.c.l.b16 %v89
  %v297 = vunpack.c.h.b16 %v89
  %v298 = vunpack.c.l.b16 %v90
  %v299 = vunpack.c.h.b16 %v90
  %v300 = vunpack.c.l.b16 %v91
  %v301 = vunpack.c.h.b16 %v91
  %v302 = vunpack.c.l.b16 %v92
  %v303 = vunpack.c.h.b16 %v92
  %v304 = vunpack.c.l.b16 %v93
  %v305 = vunpack.c.h.b16 %v93
  %v306 = vunpack.c.l.b16 %v94
  %v307 = vunpack.c.h.b16 %v94
  %v308 = vunpack.c.l.b16 %v95
  %v309 = vunpack.c.h.b16 %v95
  %v310 = vunpack.c.l.b16 %v96
  %v311 = vunpack.c.h.b16 %v96
  %v312 = vunpack.c.l.b16 %v97
  %v313 = vunpack.c.h.b16 %v97
  %v314 = vunpack.c.l.b16 %v98
  %v315 = vunpack.c.h.b16 %v98
  %v316 = vunpack.c.l.b16 %v99
  %v317 = vunpack.c.h.b16 %v99
  %v318 = vunpack.c.l.b16 %v100
  %v319 = vunpack.c.h.b16 %v100
  %v320 = vunpack.c.l.b16 %v101
  %v321 = vunpack.c.h.b16 %v101
  %v322 = vunpack.c.l.b16 %v102
  %v323 = vunpack.c.h.b16 %v102
  %v324 = vunpack.c.l.b16 %v103
  %v325 = vunpack.c.h.b16 %v103
  %v326 = vunpack.c.l.b16 %v104
  %v327 = vunpack.c.h.b16 %v104
  %v328 = vunpack.c.l.b16 %v105
  %v329 = vunpack.c.h.b16 %v105
  %v330 = vpack.c.b16 %v204, %v202
  %v331 = vpack.c.b16 %v205, %v203
  %v332 = vpack.c.b16 %v208, %v206
  %v333 = vpack.c.b16 %v209, %v207
  %v334 = vpack.c.b16 %v212, %v210
  %v335 = vpack.c.b16 %v213, %v211
  %v336 = vpack.c.b16 %v216, %v214
  %v337 = vpack.c.b16 %v217, %v215
  %v338 = vpack.c.b16 %v220, %v218
  %v339 = vpack.c.b16 %v221, %v219
  %v340 = vpack.c.b16 %v224, %v222
  %v341 = vpack.c.b16 %v225, %v223
  %v342 = vpack.c.b16 %v228, %v226
  %v343 = vpack.c.b16 %v229, %v227
  %v344 = vpack.c.b16 %v232, %v230
  %v345 = vpack.c.b16 %v233, %v231
  %v346 = vpack.c.b16 %v236, %v234
  %v347 = vpack.c.b16 %v237, %v235
  %v348 = vpack.c.b16 %v240, %v238
  %v349 = vpack.c.b16 %v241, %v239
  %v350 = vpack.c.b16 %v244, %v242
  %v351 = vpack.c.b16 %v245, %v243
  %v352 = vpack.c.b16 %v248, %v246
  %v353 = vpack.c.b16 %v249, %v247
  %v354 = vpack.c.b16 %v252, %v250
  %v355 = vpack.c.b16 %v253, %v251
  %v356 = vpack.c.b16 %v256, %v254
  %v357 = vpack.c.b16 %v257, %v255
  %v358 = vpack.c.b16 %v260, %v258
  %v359 = vpack.c.b16 %v261, %v259
  %v360 = vpack.c.b16 %v264, %v262
  %v361 = vpack.c.b16 %v265, %v263
  %v362 = vpack.c.b16 %v268, %v266
  %v363 = vpack.c.b16 %v269, %v267
  %v364 = vpack.c.b16 %v272, %v270
  %v365 = vpack.c.b16 %v273, %v271
  %v366 = vpack.c.b16 %v276, %v274
  %v367 = vpack.c.b16 %v277, %v275
  %v368 = vpack.c.b16 %v280, %v278
  %v369 = vpack.c.b16 %v281, %v279
  %v370 = vpack.c.b16 %v284, %v282
  %v371 = vpack.c.b16 %v285, %v283
  %v372 = vpack.c.b16 %v288, %v286
  %v373 = vpack.c.b16 %v289, %v287
  %v374 = vpack.c.b16 %v292, %v290
  %v375 = vpack.c.b16 %v293, %v291
  %v376 = vpack.c.b16 %v296, %v294
  %v377 = vpack.c.b16 %v297, %v295
  %v378 = vpack.c.b16 %v300, %v298
  %v379 = vpack.c.b16 %v301, %v299
  %v380 = vpack.c.b16 %v304, %v302
  %v381 = vpack.c.b16 %v305, %v303
  %v382 = vpack.c.b16 %v308, %v306
  %v383 = vpack.c.b16 %v309, %v307
  %v384 = vpack.c.b16 %v312, %v310
  %v385 = vpack.c.b16 %v313, %v311
  %v386 = vpack.c.b16 %v316, %v314
  %v387 = vpack.c.b16 %v317, %v315
  %v388 = vpack.c.b16 %v320, %v318
  %v389 = vpack.c.b16 %v321, %v319
  %v390 = vpack.c.b16 %v324, %v322
  %v391 = vpack.c.b16 %v325, %v323
  %v392 = vpack.c.b16 %v328, %v326
  %v393 = vpack.c.b16 %v329, %v327
  %v490 = vunpack.c.l.b16 %v106
  %v491 = vunpack.c.l.b16 %v107
  %v492 = vunpack.c.l.b16 %v108
  %v493 = vunpack.c.l.b16 %v109
  %v494 = vunpack.c.l.b16 %v110
  %v495 = vunpack.c.l.b16 %v111
  %v496 = vunpack.c.l.b16 %v112
  %v497 = vunpack.c.l.b16 %v113
  %v498 = vunpack.c.l.b16 %v114
  %v499 = vunpack.c.l.b16 %v115
  %v500 = vunpack.c.l.b16 %v116
  %v501 = vunpack.c.l.b16 %v117
  %v502 = vunpack.c.l.b16 %v118
  %v503 = vunpack.c.l.b16 %v119
  %v504 = vunpack.c.l.b16 %v120
  %v505 = vunpack.c.l.b16 %v121
  %v506 = vunpack.c.l.b16 %v122
  %v507 = vunpack.c.l.b16 %v123
  %v508 = vunpack.c.l.b16 %v124
  %v509 = vunpack.c.l.b16 %v125
  %v510 = vunpack.c.l.b16 %v126
  %v511 = vunpack.c.l.b16 %v127
  %v512 = vunpack.c.l.b16 %v128
  %v513 = vunpack.c.l.b16 %v129
  %v514 = vunpack.c.l.b16 %v130
  %v515 = vunpack.c.l.b16 %v131
  %v516 = vunpack.c.l.b16 %v132
  %v517 = vunpack.c.l.b16 %v133
  %v518 = vunpack.c.l.b16 %v134
  %v519 = vunpack.c.l.b16 %v135
  %v520 = vunpack.c.l.b16 %v136
  %v521 = vunpack.c.l.b16 %v137
  %v522 = vpack.c.b16 %v491, %v490
  %v523 = vpack.c.b16 %v493, %v492
  %v524 = vpack.c.b16 %v495, %v494
  %v525 = vpack.c.b16 %v497, %v496
  %v526 = vpack.c.b16 %v499, %v498
  %v527 = vpack.c.b16 %v501, %v500
  %v528 = vpack.c.b16 %v503, %v502
  %v529 = vpack.c.b16 %v505, %v504
  %v530 = vpack.c.b16 %v507, %v506
  %v531 = vpack.c.b16 %v509, %v508
  %v532 = vpack.c.b16 %v511, %v510
  %v533 = vpack.c.b16 %v513, %v512
  %v534 = vpack.c.b16 %v515, %v514
  %v535 = vpack.c.b16 %v517, %v516
  %v536 = vpack.c.b16 %v519, %v518
  %v537 = vpack.c.b16 %v521, %v520
  %554 = vmatprep.subr.bf16.mxu0 0
  %555 = vmatpush1.bf16.msra.mxu0 %v522
  %556 = vmatprep.subr.bf16.mxu0 0
  %557 = vmatpush1.bf16.msra.mxu0 %v523
  %558 = vmatprep.subr.bf16.mxu0 0
  %559 = vmatpush1.bf16.msra.mxu0 %v524
  %560 = vmatprep.subr.bf16.mxu0 0
  %561 = vmatpush1.bf16.msra.mxu0 %v525
  %562 = vmatprep.subr.bf16.mxu0 0
  %563 = vmatpush1.bf16.msra.mxu0 %v526
  %564 = vmatprep.subr.bf16.mxu0 0
  %565 = vmatpush1.bf16.msra.mxu0 %v527
  %566 = vmatprep.subr.bf16.mxu0 0
  %567 = vmatpush1.bf16.msra.mxu0 %v528
  %568 = vmatprep.subr.bf16.mxu0 0
  %569 = vmatpush1.bf16.msra.mxu0 %v529
  %570 = vmatprep.subr.bf16.mxu0 0
  %571 = vmatpush1.bf16.msra.mxu0 %v530
  %572 = vmatprep.subr.bf16.mxu0 0
  %573 = vmatpush1.bf16.msra.mxu0 %v531
  %574 = vmatprep.subr.bf16.mxu0 0
  %575 = vmatpush1.bf16.msra.mxu0 %v532
  %576 = vmatprep.subr.bf16.mxu0 0
  %577 = vmatpush1.bf16.msra.mxu0 %v533
  %578 = vmatprep.subr.bf16.mxu0 0
  %579 = vmatpush1.bf16.msra.mxu0 %v534
  %580 = vmatprep.subr.bf16.mxu0 0
  %581 = vmatpush1.bf16.msra.mxu0 %v535
  %582 = vmatprep.subr.bf16.mxu0 0
  %583 = vmatpush1.bf16.msra.mxu0 %v536
  %584 = vmatprep.subr.bf16.mxu0 0
  %585 = vmatpush1.bf16.msra.mxu0 %v537
  %586 = vmatprep.mubr.bf16.mxu0 %v331
  %587 = vmatmul.mubr.bf16.gmra.mrb[0].mxu0 %v330
  %v588 = vpop.f32.mrb[0].mxu0
  %v589 = vadd.f32 0.0, %v588
  %v590 = vpop.f32.mrb[0].mxu0
  %v591 = vpop.f32.mrb[0].mxu0
  %v592 = vadd.f32 0.0, %v591
  %v593 = vpop.f32.mrb[0].mxu0
  %594 = vmatprep.mubr.bf16.mxu0 %v333
  %595 = vmatmul.mubr.bf16.gmra.mrb[0].mxu0 %v332
  %v596 = vpop.f32.mrb[0].mxu0
  %v597 = vadd.f32 0.0, %v596
  %v598 = vpop.f32.mrb[0].mxu0
  %v599 = vpop.f32.mrb[0].mxu0
  %v600 = vadd.f32 0.0, %v599
  %v601 = vpop.f32.mrb[0].mxu0
  %602 = vmatprep.mubr.bf16.mxu0 %v335
  %603 = vmatmul.mubr.bf16.gmra.mrb[0].mxu0 %v334
  %v604 = vpop.f32.mrb[0].mxu0
  %v605 = vadd.f32 0.0, %v604
  %v606 = vpop.f32.mrb[0].mxu0
  %v607 = vpop.f32.mrb[0].mxu0
  %v608 = vadd.f32 0.0, %v607
  %v609 = vpop.f32.mrb[0].mxu0
  %610 = vmatprep.mubr.bf16.mxu0 %v337
  %611 = vmatmul.mubr.bf16.gmra.mrb[0].mxu0 %v336
  %v612 = vpop.f32.mrb[0].mxu0
  %v613 = vadd.f32 0.0, %v612
  %v614 = vpop.f32.mrb[0].mxu0
  %v615 = vpop.f32.mrb[0].mxu0
  %v616 = vadd.f32 0.0, %v615
  %v617 = vpop.f32.mrb[0].mxu0
  %618 = vmatprep.mubr.bf16.mxu0 %v339
  %619 = vmatmul.mubr.bf16.gmra.mrb[0].mxu0 %v338
  %v620 = vpop.f32.mrb[0].mxu0
  %v621 = vadd.f32 0.0, %v620
  %v622 = vpop.f32.mrb[0].mxu0
  %v623 = vpop.f32.mrb[0].mxu0
  %v624 = vadd.f32 0.0, %v623
  %v625 = vpop.f32.mrb[0].mxu0
  %626 = vmatprep.mubr.bf16.mxu0 %v341
  %627 = vmatmul.mubr.bf16.gmra.mrb[0].mxu0 %v340
  %v628 = vpop.f32.mrb[0].mxu0
  %v629 = vadd.f32 0.0, %v628
  %v630 = vpop.f32.mrb[0].mxu0
  %v631 = vpop.f32.mrb[0].mxu0
  %v632 = vadd.f32 0.0, %v631
  %v633 = vpop.f32.mrb[0].mxu0
  %634 = vmatprep.mubr.bf16.mxu0 %v343
  %635 = vmatmul.mubr.bf16.gmra.mrb[0].mxu0 %v342
  %v636 = vpop.f32.mrb[0].mxu0
  %v637 = vadd.f32 0.0, %v636
  %v638 = vpop.f32.mrb[0].mxu0
  %v639 = vpop.f32.mrb[0].mxu0
  %v640 = vadd.f32 0.0, %v639
  %v641 = vpop.f32.mrb[0].mxu0
  %642 = vmatprep.mubr.bf16.mxu0 %v345
  %643 = vmatmul.mubr.bf16.gmra.mrb[0].mxu0 %v344
  %v644 = vpop.f32.mrb[0].mxu0
  %v645 = vadd.f32 0.0, %v644
  %v646 = vpop.f32.mrb[0].mxu0
  %v647 = vpop.f32.mrb[0].mxu0
  %v648 = vadd.f32 0.0, %v647
  %v649 = vpop.f32.mrb[0].mxu0
  %650 = vmatprep.mubr.bf16.mxu0 %v347
  %651 = vmatmul.mubr.bf16.gmra.mrb[0].mxu0 %v346
  %v652 = vpop.f32.mrb[0].mxu0
  %v653 = vadd.f32 0.0, %v652
  %v654 = vpop.f32.mrb[0].mxu0
  %v655 = vpop.f32.mrb[0].mxu0
  %v656 = vadd.f32 0.0, %v655
  %v657 = vpop.f32.mrb[0].mxu0
  %658 = vmatprep.mubr.bf16.mxu0 %v349
  %659 = vmatmul.mubr.bf16.gmra.mrb[0].mxu0 %v348
  %v660 = vpop.f32.mrb[0].mxu0
  %v661 = vadd.f32 0.0, %v660
  %v662 = vpop.f32.mrb[0].mxu0
  %v663 = vpop.f32.mrb[0].mxu0
  %v664 = vadd.f32 0.0, %v663
  %v665 = vpop.f32.mrb[0].mxu0
  %666 = vmatprep.mubr.bf16.mxu0 %v351
  %667 = vmatmul.mubr.bf16.gmra.mrb[0].mxu0 %v350
  %v668 = vpop.f32.mrb[0].mxu0
  %v669 = vadd.f32 0.0, %v668
  %v670 = vpop.f32.mrb[0].mxu0
  %v671 = vpop.f32.mrb[0].mxu0
  %v672 = vadd.f32 0.0, %v671
  %v673 = vpop.f32.mrb[0].mxu0
  %674 = vmatprep.mubr.bf16.mxu0 %v353
  %675 = vmatmul.mubr.bf16.gmra.mrb[0].mxu0 %v352
  %v676 = vpop.f32.mrb[0].mxu0
  %v677 = vadd.f32 0.0, %v676
  %v678 = vpop.f32.mrb[0].mxu0
  %v679 = vpop.f32.mrb[0].mxu0
  %v680 = vadd.f32 0.0, %v679
  %v681 = vpop.f32.mrb[0].mxu0
  %682 = vmatprep.mubr.bf16.mxu0 %v355
  %683 = vmatmul.mubr.bf16.gmra.mrb[0].mxu0 %v354
  %v684 = vpop.f32.mrb[0].mxu0
  %v685 = vadd.f32 0.0, %v684
  %v686 = vpop.f32.mrb[0].mxu0
  %v687 = vpop.f32.mrb[0].mxu0
  %v688 = vadd.f32 0.0, %v687
  %v689 = vpop.f32.mrb[0].mxu0
  %690 = vmatprep.mubr.bf16.mxu0 %v357
  %691 = vmatmul.mubr.bf16.gmra.mrb[0].mxu0 %v356
  %v692 = vpop.f32.mrb[0].mxu0
  %v693 = vadd.f32 0.0, %v692
  %v694 = vpop.f32.mrb[0].mxu0
  %v695 = vpop.f32.mrb[0].mxu0
  %v696 = vadd.f32 0.0, %v695
  %v697 = vpop.f32.mrb[0].mxu0
  %698 = vmatprep.mubr.bf16.mxu0 %v359
  %699 = vmatmul.mubr.bf16.gmra.mrb[0].mxu0 %v358
  %v700 = vpop.f32.mrb[0].mxu0
  %v701 = vadd.f32 0.0, %v700
  %v702 = vpop.f32.mrb[0].mxu0
  %v703 = vpop.f32.mrb[0].mxu0
  %v704 = vadd.f32 0.0, %v703
  %v705 = vpop.f32.mrb[0].mxu0
  %706 = vmatprep.mubr.bf16.mxu0 %v361
  %707 = vmatmul.mubr.bf16.gmra.mrb[0].mxu0 %v360
  %v708 = vpop.f32.mrb[0].mxu0
  %v709 = vadd.f32 0.0, %v708
  %v710 = vpop.f32.mrb[0].mxu0
  %v711 = vpop.f32.mrb[0].mxu0
  %v712 = vadd.f32 0.0, %v711
  %v713 = vpop.f32.mrb[0].mxu0
  %714 = vmatprep.mubr.bf16.mxu0 %v363
  %715 = vmatmul.mubr.bf16.gmra.mrb[0].mxu0 %v362
  %v716 = vpop.f32.mrb[0].mxu0
  %v717 = vadd.f32 0.0, %v716
  %v718 = vpop.f32.mrb[0].mxu0
  %v719 = vpop.f32.mrb[0].mxu0
  %v720 = vadd.f32 0.0, %v719
  %v721 = vpop.f32.mrb[0].mxu0
  %722 = vmatprep.mubr.bf16.mxu0 %v365
  %723 = vmatmul.mubr.bf16.gmra.mrb[0].mxu0 %v364
  %v724 = vpop.f32.mrb[0].mxu0
  %v725 = vadd.f32 0.0, %v724
  %v726 = vpop.f32.mrb[0].mxu0
  %v727 = vpop.f32.mrb[0].mxu0
  %v728 = vadd.f32 0.0, %v727
  %v729 = vpop.f32.mrb[0].mxu0
  %730 = vmatprep.mubr.bf16.mxu0 %v367
  %731 = vmatmul.mubr.bf16.gmra.mrb[0].mxu0 %v366
  %v732 = vpop.f32.mrb[0].mxu0
  %v733 = vadd.f32 0.0, %v732
  %v734 = vpop.f32.mrb[0].mxu0
  %v735 = vpop.f32.mrb[0].mxu0
  %v736 = vadd.f32 0.0, %v735
  %v737 = vpop.f32.mrb[0].mxu0
  %738 = vmatprep.mubr.bf16.mxu0 %v369
  %739 = vmatmul.mubr.bf16.gmra.mrb[0].mxu0 %v368
  %v740 = vpop.f32.mrb[0].mxu0
  %v741 = vadd.f32 0.0, %v740
  %v742 = vpop.f32.mrb[0].mxu0
  %v743 = vpop.f32.mrb[0].mxu0
  %v744 = vadd.f32 0.0, %v743
  %v745 = vpop.f32.mrb[0].mxu0
  %746 = vmatprep.mubr.bf16.mxu0 %v371
  %747 = vmatmul.mubr.bf16.gmra.mrb[0].mxu0 %v370
  %v748 = vpop.f32.mrb[0].mxu0
  %v749 = vadd.f32 0.0, %v748
  %v750 = vpop.f32.mrb[0].mxu0
  %v751 = vpop.f32.mrb[0].mxu0
  %v752 = vadd.f32 0.0, %v751
  %v753 = vpop.f32.mrb[0].mxu0
  %754 = vmatprep.mubr.bf16.mxu0 %v373
  %755 = vmatmul.mubr.bf16.gmra.mrb[0].mxu0 %v372
  %v756 = vpop.f32.mrb[0].mxu0
  %v757 = vadd.f32 0.0, %v756
  %v758 = vpop.f32.mrb[0].mxu0
  %v759 = vpop.f32.mrb[0].mxu0
  %v760 = vadd.f32 0.0, %v759
  %v761 = vpop.f32.mrb[0].mxu0
  %762 = vmatprep.mubr.bf16.mxu0 %v375
  %763 = vmatmul.mubr.bf16.gmra.mrb[0].mxu0 %v374
  %v764 = vpop.f32.mrb[0].mxu0
  %v765 = vadd.f32 0.0, %v764
  %v766 = vpop.f32.mrb[0].mxu0
  %v767 = vpop.f32.mrb[0].mxu0
  %v768 = vadd.f32 0.0, %v767
  %v769 = vpop.f32.mrb[0].mxu0
  %770 = vmatprep.mubr.bf16.mxu0 %v377
  %771 = vmatmul.mubr.bf16.gmra.mrb[0].mxu0 %v376
  %v772 = vpop.f32.mrb[0].mxu0
  %v773 = vadd.f32 0.0, %v772
  %v774 = vpop.f32.mrb[0].mxu0
  %v775 = vpop.f32.mrb[0].mxu0
  %v776 = vadd.f32 0.0, %v775
  %v777 = vpop.f32.mrb[0].mxu0
  %778 = vmatprep.mubr.bf16.mxu0 %v379
  %779 = vmatmul.mubr.bf16.gmra.mrb[0].mxu0 %v378
  %v780 = vpop.f32.mrb[0].mxu0
  %v781 = vadd.f32 0.0, %v780
  %v782 = vpop.f32.mrb[0].mxu0
  %v783 = vpop.f32.mrb[0].mxu0
  %v784 = vadd.f32 0.0, %v783
  %v785 = vpop.f32.mrb[0].mxu0
  %786 = vmatprep.mubr.bf16.mxu0 %v381
  %787 = vmatmul.mubr.bf16.gmra.mrb[0].mxu0 %v380
  %v788 = vpop.f32.mrb[0].mxu0
  %v789 = vadd.f32 0.0, %v788
  %v790 = vpop.f32.mrb[0].mxu0
  %v791 = vpop.f32.mrb[0].mxu0
  %v792 = vadd.f32 0.0, %v791
  %v793 = vpop.f32.mrb[0].mxu0
  %794 = vmatprep.mubr.bf16.mxu0 %v383
  %795 = vmatmul.mubr.bf16.gmra.mrb[0].mxu0 %v382
  %v796 = vpop.f32.mrb[0].mxu0
  %v797 = vadd.f32 0.0, %v796
  %v798 = vpop.f32.mrb[0].mxu0
  %v799 = vpop.f32.mrb[0].mxu0
  %v800 = vadd.f32 0.0, %v799
  %v801 = vpop.f32.mrb[0].mxu0
  %802 = vmatprep.mubr.bf16.mxu0 %v385
  %803 = vmatmul.mubr.bf16.gmra.mrb[0].mxu0 %v384
  %v804 = vpop.f32.mrb[0].mxu0
  %v805 = vadd.f32 0.0, %v804
  %v806 = vpop.f32.mrb[0].mxu0
  %v807 = vpop.f32.mrb[0].mxu0
  %v808 = vadd.f32 0.0, %v807
  %v809 = vpop.f32.mrb[0].mxu0
  %810 = vmatprep.mubr.bf16.mxu0 %v387
  %811 = vmatmul.mubr.bf16.gmra.mrb[0].mxu0 %v386
  %v812 = vpop.f32.mrb[0].mxu0
  %v813 = vadd.f32 0.0, %v812
  %v814 = vpop.f32.mrb[0].mxu0
  %v815 = vpop.f32.mrb[0].mxu0
  %v816 = vadd.f32 0.0, %v815
  %v817 = vpop.f32.mrb[0].mxu0
  %818 = vmatprep.mubr.bf16.mxu0 %v389
  %819 = vmatmul.mubr.bf16.gmra.mrb[0].mxu0 %v388
  %v820 = vpop.f32.mrb[0].mxu0
  %v821 = vadd.f32 0.0, %v820
  %v822 = vpop.f32.mrb[0].mxu0
  %v823 = vpop.f32.mrb[0].mxu0
  %v824 = vadd.f32 0.0, %v823
  %v825 = vpop.f32.mrb[0].mxu0
  %826 = vmatprep.mubr.bf16.mxu0 %v391
  %827 = vmatmul.mubr.bf16.gmra.mrb[0].mxu0 %v390
  %v828 = vpop.f32.mrb[0].mxu0
  %v829 = vadd.f32 0.0, %v828
  %v830 = vpop.f32.mrb[0].mxu0
  %v831 = vpop.f32.mrb[0].mxu0
  %v832 = vadd.f32 0.0, %v831
  %v833 = vpop.f32.mrb[0].mxu0
  %834 = vmatprep.mubr.bf16.mxu0 %v393
  %835 = vmatmul.mubr.bf16.gmra.mrb[0].mxu0 %v392
  %v836 = vpop.f32.mrb[0].mxu0
  %v837 = vadd.f32 0.0, %v836
  %v838 = vpop.f32.mrb[0].mxu0
  %v839 = vpop.f32.mrb[0].mxu0
  %v840 = vadd.f32 0.0, %v839
  %v841 = vpop.f32.mrb[0].mxu0
  %842 = vdwg.mxu0
  %v843 = vadd.f32 %v589, %v592
  %v844 = vadd.f32 %v843, %v597
  %v845 = vadd.f32 %v844, %v600
  %v846 = vadd.f32 %v845, %v605
  %v847 = vadd.f32 %v846, %v608
  %v848 = vadd.f32 %v847, %v613
  %v849 = vadd.f32 %v848, %v616
  %v850 = vadd.f32 %v849, %v621
  %v851 = vadd.f32 %v850, %v624
  %v852 = vadd.f32 %v851, %v629
  %v853 = vadd.f32 %v852, %v632
  %v854 = vadd.f32 %v853, %v637
  %v855 = vadd.f32 %v854, %v640
  %v856 = vadd.f32 %v855, %v645
  %v857 = vadd.f32 %v856, %v648
  %v858 = vadd.f32 %v857, %v653
  %v859 = vadd.f32 %v858, %v656
  %v860 = vadd.f32 %v859, %v661
  %v861 = vadd.f32 %v860, %v664
  %v862 = vadd.f32 %v861, %v669
  %v863 = vadd.f32 %v862, %v672
  %v864 = vadd.f32 %v863, %v677
  %v865 = vadd.f32 %v864, %v680
  %v866 = vadd.f32 %v865, %v685
  %v867 = vadd.f32 %v866, %v688
  %v868 = vadd.f32 %v867, %v693
  %v869 = vadd.f32 %v868, %v696
  %v870 = vadd.f32 %v869, %v701
  %v871 = vadd.f32 %v870, %v704
  %v872 = vadd.f32 %v871, %v709
  %v873 = vadd.f32 %v872, %v712
  %v874 = vadd.f32 %v873, %v717
  %v875 = vadd.f32 %v874, %v720
  %v876 = vadd.f32 %v875, %v725
  %v877 = vadd.f32 %v876, %v728
  %v878 = vadd.f32 %v877, %v733
  %v879 = vadd.f32 %v878, %v736
  %v880 = vadd.f32 %v879, %v741
  %v881 = vadd.f32 %v880, %v744
  %v882 = vadd.f32 %v881, %v749
  %v883 = vadd.f32 %v882, %v752
  %v884 = vadd.f32 %v883, %v757
  %v885 = vadd.f32 %v884, %v760
  %v886 = vadd.f32 %v885, %v765
  %v887 = vadd.f32 %v886, %v768
  %v888 = vadd.f32 %v887, %v773
  %v889 = vadd.f32 %v888, %v776
  %v890 = vadd.f32 %v889, %v781
  %v891 = vadd.f32 %v890, %v784
  %v892 = vadd.f32 %v891, %v789
  %v893 = vadd.f32 %v892, %v792
  %v894 = vadd.f32 %v893, %v797
  %v895 = vadd.f32 %v894, %v800
  %v896 = vadd.f32 %v895, %v805
  %v897 = vadd.f32 %v896, %v808
  %v898 = vadd.f32 %v897, %v813
  %v899 = vadd.f32 %v898, %v816
  %v900 = vadd.f32 %v899, %v821
  %v901 = vadd.f32 %v900, %v824
  %v902 = vadd.f32 %v901, %v829
  %v903 = vadd.f32 %v902, %v832
  %v904 = vadd.f32 %v903, %v837
  %v905 = vadd.f32 %v904, %v840
  %v906 = vrot.slane %v905, 4
  %v907 = vadd.f32 %v905, %v906
  %v908 = vrot.slane %v907, 2
  %v909 = vadd.f32 %v907, %v908
  %v910 = vrot.slane %v909, 1
  %v911 = vadd.f32 %v909, %v910
  %v912 = vrcp.pop 512.0
  %v913 = vmul.f32 %v911, %v912
  %v914 = vsub.f32 %v589, %v913
  %v915 = vsub.f32 %v592, %v913
  %v916 = vsub.f32 %v597, %v913
  %v917 = vsub.f32 %v600, %v913
  %v918 = vsub.f32 %v605, %v913
  %v919 = vsub.f32 %v608, %v913
  %v920 = vsub.f32 %v613, %v913
  %v921 = vsub.f32 %v616, %v913
  %v922 = vsub.f32 %v621, %v913
  %v923 = vsub.f32 %v624, %v913
  %v924 = vsub.f32 %v629, %v913
  %v925 = vsub.f32 %v632, %v913
  %v926 = vsub.f32 %v637, %v913
  %v927 = vsub.f32 %v640, %v913
  %v928 = vsub.f32 %v645, %v913
  %v929 = vsub.f32 %v648, %v913
  %v930 = vsub.f32 %v653, %v913
  %v931 = vsub.f32 %v656, %v913
  %v932 = vsub.f32 %v661, %v913
  %v933 = vsub.f32 %v664, %v913
  %v934 = vsub.f32 %v669, %v913
  %v935 = vsub.f32 %v672, %v913
  %v936 = vsub.f32 %v677, %v913
  %v937 = vsub.f32 %v680, %v913
  %v938 = vsub.f32 %v685, %v913
  %v939 = vsub.f32 %v688, %v913
  %v940 = vsub.f32 %v693, %v913
  %v941 = vsub.f32 %v696, %v913
  %v942 = vsub.f32 %v701, %v913
  %v943 = vsub.f32 %v704, %v913
  %v944 = vsub.f32 %v709, %v913
  %v945 = vsub.f32 %v712, %v913
  %v946 = vsub.f32 %v717, %v913
  %v947 = vsub.f32 %v720, %v913
  %v948 = vsub.f32 %v725, %v913
  %v949 = vsub.f32 %v728, %v913
  %v950 = vsub.f32 %v733, %v913
  %v951 = vsub.f32 %v736, %v913
  %v952 = vsub.f32 %v741, %v913
  %v953 = vsub.f32 %v744, %v913
  %v954 = vsub.f32 %v749, %v913
  %v955 = vsub.f32 %v752, %v913
  %v956 = vsub.f32 %v757, %v913
  %v957 = vsub.f32 %v760, %v913
  %v958 = vsub.f32 %v765, %v913
  %v959 = vsub.f32 %v768, %v913
  %v960 = vsub.f32 %v773, %v913
  %v961 = vsub.f32 %v776, %v913
  %v962 = vsub.f32 %v781, %v913
  %v963 = vsub.f32 %v784, %v913
  %v964 = vsub.f32 %v789, %v913
  %v965 = vsub.f32 %v792, %v913
  %v966 = vsub.f32 %v797, %v913
  %v967 = vsub.f32 %v800, %v913
  %v968 = vsub.f32 %v805, %v913
  %v969 = vsub.f32 %v808, %v913
  %v970 = vsub.f32 %v813, %v913
  %v971 = vsub.f32 %v816, %v913
  %v972 = vsub.f32 %v821, %v913
  %v973 = vsub.f32 %v824, %v913
  %v974 = vsub.f32 %v829, %v913
  %v975 = vsub.f32 %v832, %v913
  %v976 = vsub.f32 %v837, %v913
  %v977 = vsub.f32 %v840, %v913
  %v978 = vmul.f32 %v914, %v914
  %v979 = vmul.f32 %v915, %v915
  %v980 = vmul.f32 %v916, %v916
  %v981 = vmul.f32 %v917, %v917
  %v982 = vmul.f32 %v918, %v918
  %v983 = vmul.f32 %v919, %v919
  %v984 = vmul.f32 %v920, %v920
  %v985 = vmul.f32 %v921, %v921
  %v986 = vmul.f32 %v922, %v922
  %v987 = vmul.f32 %v923, %v923
  %v988 = vmul.f32 %v924, %v924
  %v989 = vmul.f32 %v925, %v925
  %v990 = vmul.f32 %v926, %v926
  %v991 = vmul.f32 %v927, %v927
  %v992 = vmul.f32 %v928, %v928
  %v993 = vmul.f32 %v929, %v929
  %v994 = vmul.f32 %v930, %v930
  %v995 = vmul.f32 %v931, %v931
  %v996 = vmul.f32 %v932, %v932
  %v997 = vmul.f32 %v933, %v933
  %v998 = vmul.f32 %v934, %v934
  %v999 = vmul.f32 %v935, %v935
  %v1000 = vmul.f32 %v936, %v936
  %v1001 = vmul.f32 %v937, %v937
  %v1002 = vmul.f32 %v938, %v938
  %v1003 = vmul.f32 %v939, %v939
  %v1004 = vmul.f32 %v940, %v940
  %v1005 = vmul.f32 %v941, %v941
  %v1006 = vmul.f32 %v942, %v942
  %v1007 = vmul.f32 %v943, %v943
  %v1008 = vmul.f32 %v944, %v944
  %v1009 = vmul.f32 %v945, %v945
  %v1010 = vmul.f32 %v946, %v946
  %v1011 = vmul.f32 %v947, %v947
  %v1012 = vmul.f32 %v948, %v948
  %v1013 = vmul.f32 %v949, %v949
  %v1014 = vmul.f32 %v950, %v950
  %v1015 = vmul.f32 %v951, %v951
  %v1016 = vmul.f32 %v952, %v952
  %v1017 = vmul.f32 %v953, %v953
  %v1018 = vmul.f32 %v954, %v954
  %v1019 = vmul.f32 %v955, %v955
  %v1020 = vmul.f32 %v956, %v956
  %v1021 = vmul.f32 %v957, %v957
  %v1022 = vmul.f32 %v958, %v958
  %v1023 = vmul.f32 %v959, %v959
  %v1024 = vmul.f32 %v960, %v960
  %v1025 = vmul.f32 %v961, %v961
  %v1026 = vmul.f32 %v962, %v962
  %v1027 = vmul.f32 %v963, %v963
  %v1028 = vmul.f32 %v964, %v964
  %v1029 = vmul.f32 %v965, %v965
  %v1030 = vmul.f32 %v966, %v966
  %v1031 = vmul.f32 %v967, %v967
  %v1032 = vmul.f32 %v968, %v968
  %v1033 = vmul.f32 %v969, %v969
  %v1034 = vmul.f32 %v970, %v970
  %v1035 = vmul.f32 %v971, %v971
  %v1036 = vmul.f32 %v972, %v972
  %v1037 = vmul.f32 %v973, %v973
  %v1038 = vmul.f32 %v974, %v974
  %v1039 = vmul.f32 %v975, %v975
  %v1040 = vmul.f32 %v976, %v976
  %v1041 = vmul.f32 %v977, %v977
  %v1042 = vadd.f32 %v978, %v979
  %v1043 = vadd.f32 %v1042, %v980
  %v1044 = vadd.f32 %v1043, %v981
  %v1045 = vadd.f32 %v1044, %v982
  %v1046 = vadd.f32 %v1045, %v983
  %v1047 = vadd.f32 %v1046, %v984
  %v1048 = vadd.f32 %v1047, %v985
  %v1049 = vadd.f32 %v1048, %v986
  %v1050 = vadd.f32 %v1049, %v987
  %v1051 = vadd.f32 %v1050, %v988
  %v1052 = vadd.f32 %v1051, %v989
  %v1053 = vadd.f32 %v1052, %v990
  %v1054 = vadd.f32 %v1053, %v991
  %v1055 = vadd.f32 %v1054, %v992
  %v1056 = vadd.f32 %v1055, %v993
  %v1057 = vadd.f32 %v1056, %v994
  %v1058 = vadd.f32 %v1057, %v995
  %v1059 = vadd.f32 %v1058, %v996
  %v1060 = vadd.f32 %v1059, %v997
  %v1061 = vadd.f32 %v1060, %v998
  %v1062 = vadd.f32 %v1061, %v999
  %v1063 = vadd.f32 %v1062, %v1000
  %v1064 = vadd.f32 %v1063, %v1001
  %v1065 = vadd.f32 %v1064, %v1002
  %v1066 = vadd.f32 %v1065, %v1003
  %v1067 = vadd.f32 %v1066, %v1004
  %v1068 = vadd.f32 %v1067, %v1005
  %v1069 = vadd.f32 %v1068, %v1006
  %v1070 = vadd.f32 %v1069, %v1007
  %v1071 = vadd.f32 %v1070, %v1008
  %v1072 = vadd.f32 %v1071, %v1009
  %v1073 = vadd.f32 %v1072, %v1010
  %v1074 = vadd.f32 %v1073, %v1011
  %v1075 = vadd.f32 %v1074, %v1012
  %v1076 = vadd.f32 %v1075, %v1013
  %v1077 = vadd.f32 %v1076, %v1014
  %v1078 = vadd.f32 %v1077, %v1015
  %v1079 = vadd.f32 %v1078, %v1016
  %v1080 = vadd.f32 %v1079, %v1017
  %v1081 = vadd.f32 %v1080, %v1018
  %v1082 = vadd.f32 %v1081, %v1019
  %v1083 = vadd.f32 %v1082, %v1020
  %v1084 = vadd.f32 %v1083, %v1021
  %v1085 = vadd.f32 %v1084, %v1022
  %v1086 = vadd.f32 %v1085, %v1023
  %v1087 = vadd.f32 %v1086, %v1024
  %v1088 = vadd.f32 %v1087, %v1025
  %v1089 = vadd.f32 %v1088, %v1026
  %v1090 = vadd.f32 %v1089, %v1027
  %v1091 = vadd.f32 %v1090, %v1028
  %v1092 = vadd.f32 %v1091, %v1029
  %v1093 = vadd.f32 %v1092, %v1030
  %v1094 = vadd.f32 %v1093, %v1031
  %v1095 = vadd.f32 %v1094, %v1032
  %v1096 = vadd.f32 %v1095, %v1033
  %v1097 = vadd.f32 %v1096, %v1034
  %v1098 = vadd.f32 %v1097, %v1035
  %v1099 = vadd.f32 %v1098, %v1036
  %v1100 = vadd.f32 %v1099, %v1037
  %v1101 = vadd.f32 %v1100, %v1038
  %v1102 = vadd.f32 %v1101, %v1039
  %v1103 = vadd.f32 %v1102, %v1040
  %v1104 = vadd.f32 %v1103, %v1041
  %v1105 = vrot.slane %v1104, 4
  %v1106 = vadd.f32 %v1104, %v1105
  %v1107 = vrot.slane %v1106, 2
  %v1108 = vadd.f32 %v1106, %v1107
  %v1109 = vrot.slane %v1108, 1
  %v1110 = vadd.f32 %v1108, %v1109
  %v1111 = vmul.f32 %v1110, %v912
  %v1112 = vadd.f32 %v1111, 1e-05
  %v1113 = vrsqrt.pop %v1112
  %v1114 = vld [vmem:[%s2] sm:$0x1]
  %v1115 = vmul.f32 %v1113, %v1114
  %v1116 = vlaneseq
  %v1117 = vshrl.u32 %v1116, 7
  %v1118 = vsub.s32 0, %v1117
  %v1119 = vrot.slane %v1115, %v1118
  %v1120 = vmul.f32 %v914, %v1119
  %v1121 = vmul.f32 %v915, %v1119
  %v1122 = vmul.f32 %v916, %v1119
  %v1123 = vmul.f32 %v917, %v1119
  %v1124 = vmul.f32 %v918, %v1119
  %v1125 = vmul.f32 %v919, %v1119
  %v1126 = vmul.f32 %v920, %v1119
  %v1127 = vmul.f32 %v921, %v1119
  %v1128 = vmul.f32 %v922, %v1119
  %v1129 = vmul.f32 %v923, %v1119
  %v1130 = vmul.f32 %v924, %v1119
  %v1131 = vmul.f32 %v925, %v1119
  %v1132 = vmul.f32 %v926, %v1119
  %v1133 = vmul.f32 %v927, %v1119
  %v1134 = vmul.f32 %v928, %v1119
  %v1135 = vmul.f32 %v929, %v1119
  %v1136 = vmul.f32 %v930, %v1119
  %v1137 = vmul.f32 %v931, %v1119
  %v1138 = vmul.f32 %v932, %v1119
  %v1139 = vmul.f32 %v933, %v1119
  %v1140 = vmul.f32 %v934, %v1119
  %v1141 = vmul.f32 %v935, %v1119
  %v1142 = vmul.f32 %v936, %v1119
  %v1143 = vmul.f32 %v937, %v1119
  %v1144 = vmul.f32 %v938, %v1119
  %v1145 = vmul.f32 %v939, %v1119
  %v1146 = vmul.f32 %v940, %v1119
  %v1147 = vmul.f32 %v941, %v1119
  %v1148 = vmul.f32 %v942, %v1119
  %v1149 = vmul.f32 %v943, %v1119
  %v1150 = vmul.f32 %v944, %v1119
  %v1151 = vmul.f32 %v945, %v1119
  %v1152 = vmul.f32 %v946, %v1119
  %v1153 = vmul.f32 %v947, %v1119
  %v1154 = vmul.f32 %v948, %v1119
  %v1155 = vmul.f32 %v949, %v1119
  %v1156 = vmul.f32 %v950, %v1119
  %v1157 = vmul.f32 %v951, %v1119
  %v1158 = vmul.f32 %v952, %v1119
  %v1159 = vmul.f32 %v953, %v1119
  %v1160 = vmul.f32 %v954, %v1119
  %v1161 = vmul.f32 %v955, %v1119
  %v1162 = vmul.f32 %v956, %v1119
  %v1163 = vmul.f32 %v957, %v1119
  %v1164 = vmul.f32 %v958, %v1119
  %v1165 = vmul.f32 %v959, %v1119
  %v1166 = vmul.f32 %v960, %v1119
  %v1167 = vmul.f32 %v961, %v1119
  %v1168 = vmul.f32 %v962, %v1119
  %v1169 = vmul.f32 %v963, %v1119
  %v1170 = vmul.f32 %v964, %v1119
  %v1171 = vmul.f32 %v965, %v1119
  %v1172 = vmul.f32 %v966, %v1119
  %v1173 = vmul.f32 %v967, %v1119
  %v1174 = vmul.f32 %v968, %v1119
  %v1175 = vmul.f32 %v969, %v1119
  %v1176 = vmul.f32 %v970, %v1119
  %v1177 = vmul.f32 %v971, %v1119
  %v1178 = vmul.f32 %v972, %v1119
  %v1179 = vmul.f32 %v973, %v1119
  %v1180 = vmul.f32 %v974, %v1119
  %v1181 = vmul.f32 %v975, %v1119
  %v1182 = vmul.f32 %v976, %v1119
  %v1183 = vmul.f32 %v977, %v1119
  %v1184 = vld [vmem:[%s3] sm:$0x1]
  %v1186 = vlaneseq
  %v1187 = vshrl.u32 %v1186, 7
  %v1188 = vsub.s32 0, %v1187
  %v1189 = vrot.slane %v1184, %v1188
  %v1191 = vadd.f32 %v1120, %v1189
  %v1192 = vadd.f32 %v1121, %v1189
  %v1193 = vadd.f32 %v1122, %v1189
  %v1194 = vadd.f32 %v1123, %v1189
  %v1195 = vadd.f32 %v1124, %v1189
  %v1196 = vadd.f32 %v1125, %v1189
  %v1197 = vadd.f32 %v1126, %v1189
  %v1198 = vadd.f32 %v1127, %v1189
  %v1199 = vadd.f32 %v1128, %v1189
  %v1200 = vadd.f32 %v1129, %v1189
  %v1201 = vadd.f32 %v1130, %v1189
  %v1202 = vadd.f32 %v1131, %v1189
  %v1203 = vadd.f32 %v1132, %v1189
  %v1204 = vadd.f32 %v1133, %v1189
  %v1205 = vadd.f32 %v1134, %v1189
  %v1206 = vadd.f32 %v1135, %v1189
  %v1207 = vadd.f32 %v1136, %v1189
  %v1208 = vadd.f32 %v1137, %v1189
  %v1209 = vadd.f32 %v1138, %v1189
  %v1210 = vadd.f32 %v1139, %v1189
  %v1211 = vadd.f32 %v1140, %v1189
  %v1212 = vadd.f32 %v1141, %v1189
  %v1213 = vadd.f32 %v1142, %v1189
  %v1214 = vadd.f32 %v1143, %v1189
  %v1215 = vadd.f32 %v1144, %v1189
  %v1216 = vadd.f32 %v1145, %v1189
  %v1217 = vadd.f32 %v1146, %v1189
  %v1218 = vadd.f32 %v1147, %v1189
  %v1219 = vadd.f32 %v1148, %v1189
  %v1220 = vadd.f32 %v1149, %v1189
  %v1221 = vadd.f32 %v1150, %v1189
  %v1222 = vadd.f32 %v1151, %v1189
  %v1223 = vadd.f32 %v1152, %v1189
  %v1224 = vadd.f32 %v1153, %v1189
  %v1225 = vadd.f32 %v1154, %v1189
  %v1226 = vadd.f32 %v1155, %v1189
  %v1227 = vadd.f32 %v1156, %v1189
  %v1228 = vadd.f32 %v1157, %v1189
  %v1229 = vadd.f32 %v1158, %v1189
  %v1230 = vadd.f32 %v1159, %v1189
  %v1231 = vadd.f32 %v1160, %v1189
  %v1232 = vadd.f32 %v1161, %v1189
  %v1233 = vadd.f32 %v1162, %v1189
  %v1234 = vadd.f32 %v1163, %v1189
  %v1235 = vadd.f32 %v1164, %v1189
  %v1236 = vadd.f32 %v1165, %v1189
  %v1237 = vadd.f32 %v1166, %v1189
  %v1238 = vadd.f32 %v1167, %v1189
  %v1239 = vadd.f32 %v1168, %v1189
  %v1240 = vadd.f32 %v1169, %v1189
  %v1241 = vadd.f32 %v1170, %v1189
  %v1242 = vadd.f32 %v1171, %v1189
  %v1243 = vadd.f32 %v1172, %v1189
  %v1244 = vadd.f32 %v1173, %v1189
  %v1245 = vadd.f32 %v1174, %v1189
  %v1246 = vadd.f32 %v1175, %v1189
  %v1247 = vadd.f32 %v1176, %v1189
  %v1248 = vadd.f32 %v1177, %v1189
  %v1249 = vadd.f32 %v1178, %v1189
  %v1250 = vadd.f32 %v1179, %v1189
  %v1251 = vadd.f32 %v1180, %v1189
  %v1252 = vadd.f32 %v1181, %v1189
  %v1253 = vadd.f32 %v1182, %v1189
  %v1254 = vadd.f32 %v1183, %v1189
  %v1255 = vmax.f32 %v1191, 0.0
  %v1256 = vmax.f32 %v1192, 0.0
  %v1257 = vmax.f32 %v1193, 0.0
  %v1258 = vmax.f32 %v1194, 0.0
  %v1259 = vmax.f32 %v1195, 0.0
  %v1260 = vmax.f32 %v1196, 0.0
  %v1261 = vmax.f32 %v1197, 0.0
  %v1262 = vmax.f32 %v1198, 0.0
  %v1263 = vmax.f32 %v1199, 0.0
  %v1264 = vmax.f32 %v1200, 0.0
  %v1265 = vmax.f32 %v1201, 0.0
  %v1266 = vmax.f32 %v1202, 0.0
  %v1267 = vmax.f32 %v1203, 0.0
  %v1268 = vmax.f32 %v1204, 0.0
  %v1269 = vmax.f32 %v1205, 0.0
  %v1270 = vmax.f32 %v1206, 0.0
  %v1271 = vmax.f32 %v1207, 0.0
  %v1272 = vmax.f32 %v1208, 0.0
  %v1273 = vmax.f32 %v1209, 0.0
  %v1274 = vmax.f32 %v1210, 0.0
  %v1275 = vmax.f32 %v1211, 0.0
  %v1276 = vmax.f32 %v1212, 0.0
  %v1277 = vmax.f32 %v1213, 0.0
  %v1278 = vmax.f32 %v1214, 0.0
  %v1279 = vmax.f32 %v1215, 0.0
  %v1280 = vmax.f32 %v1216, 0.0
  %v1281 = vmax.f32 %v1217, 0.0
  %v1282 = vmax.f32 %v1218, 0.0
  %v1283 = vmax.f32 %v1219, 0.0
  %v1284 = vmax.f32 %v1220, 0.0
  %v1285 = vmax.f32 %v1221, 0.0
  %v1286 = vmax.f32 %v1222, 0.0
  %v1287 = vmax.f32 %v1223, 0.0
  %v1288 = vmax.f32 %v1224, 0.0
  %v1289 = vmax.f32 %v1225, 0.0
  %v1290 = vmax.f32 %v1226, 0.0
  %v1291 = vmax.f32 %v1227, 0.0
  %v1292 = vmax.f32 %v1228, 0.0
  %v1293 = vmax.f32 %v1229, 0.0
  %v1294 = vmax.f32 %v1230, 0.0
  %v1295 = vmax.f32 %v1231, 0.0
  %v1296 = vmax.f32 %v1232, 0.0
  %v1297 = vmax.f32 %v1233, 0.0
  %v1298 = vmax.f32 %v1234, 0.0
  %v1299 = vmax.f32 %v1235, 0.0
  %v1300 = vmax.f32 %v1236, 0.0
  %v1301 = vmax.f32 %v1237, 0.0
  %v1302 = vmax.f32 %v1238, 0.0
  %v1303 = vmax.f32 %v1239, 0.0
  %v1304 = vmax.f32 %v1240, 0.0
  %v1305 = vmax.f32 %v1241, 0.0
  %v1306 = vmax.f32 %v1242, 0.0
  %v1307 = vmax.f32 %v1243, 0.0
  %v1308 = vmax.f32 %v1244, 0.0
  %v1309 = vmax.f32 %v1245, 0.0
  %v1310 = vmax.f32 %v1246, 0.0
  %v1311 = vmax.f32 %v1247, 0.0
  %v1312 = vmax.f32 %v1248, 0.0
  %v1313 = vmax.f32 %v1249, 0.0
  %v1314 = vmax.f32 %v1250, 0.0
  %v1315 = vmax.f32 %v1251, 0.0
  %v1316 = vmax.f32 %v1252, 0.0
  %v1317 = vmax.f32 %v1253, 0.0
  %v1318 = vmax.f32 %v1254, 0.0
  %v1319 = vmax.f32 %v1255, %v1287
  %v1320 = vmax.f32 %v1256, %v1288
  %v1321 = vmax.f32 %v1257, %v1289
  %v1322 = vmax.f32 %v1258, %v1290
  %v1323 = vmax.f32 %v1259, %v1291
  %v1324 = vmax.f32 %v1260, %v1292
  %v1325 = vmax.f32 %v1261, %v1293
  %v1326 = vmax.f32 %v1262, %v1294
  %v1327 = vmax.f32 %v1263, %v1295
  %v1328 = vmax.f32 %v1264, %v1296
  %v1329 = vmax.f32 %v1265, %v1297
  %v1330 = vmax.f32 %v1266, %v1298
  %v1331 = vmax.f32 %v1267, %v1299
  %v1332 = vmax.f32 %v1268, %v1300
  %v1333 = vmax.f32 %v1269, %v1301
  %v1334 = vmax.f32 %v1270, %v1302
  %v1335 = vmax.f32 %v1319, 0.0
  %v1336 = vmax.f32 %v1320, %v1287
  %v1337 = vmax.f32 %v1321, %v1288
  %v1338 = vmax.f32 %v1322, %v1289
  %v1339 = vmax.f32 %v1323, %v1290
  %v1340 = vmax.f32 %v1324, %v1291
  %v1341 = vmax.f32 %v1325, %v1292
  %v1342 = vmax.f32 %v1326, %v1293
  %v1343 = vmax.f32 %v1327, 0.0
  %v1344 = vmax.f32 %v1328, %v1295
  %v1345 = vmax.f32 %v1329, %v1296
  %v1346 = vmax.f32 %v1330, %v1297
  %v1347 = vmax.f32 %v1331, %v1298
  %v1348 = vmax.f32 %v1332, %v1299
  %v1349 = vmax.f32 %v1333, %v1300
  %v1350 = vmax.f32 %v1334, %v1301
  %v1351 = vmax.f32 %v1271, %v1303
  %v1352 = vmax.f32 %v1272, %v1304
  %v1353 = vmax.f32 %v1273, %v1305
  %v1354 = vmax.f32 %v1274, %v1306
  %v1355 = vmax.f32 %v1275, %v1307
  %v1356 = vmax.f32 %v1276, %v1308
  %v1357 = vmax.f32 %v1277, %v1309
  %v1358 = vmax.f32 %v1278, %v1310
  %v1359 = vmax.f32 %v1279, %v1311
  %v1360 = vmax.f32 %v1280, %v1312
  %v1361 = vmax.f32 %v1281, %v1313
  %v1362 = vmax.f32 %v1282, %v1314
  %v1363 = vmax.f32 %v1283, %v1315
  %v1364 = vmax.f32 %v1284, %v1316
  %v1365 = vmax.f32 %v1285, %v1317
  %v1366 = vmax.f32 %v1286, %v1318
  %v1367 = vmax.f32 %v1351, 0.0
  %v1368 = vmax.f32 %v1352, %v1303
  %v1369 = vmax.f32 %v1353, %v1304
  %v1370 = vmax.f32 %v1354, %v1305
  %v1371 = vmax.f32 %v1355, %v1306
  %v1372 = vmax.f32 %v1356, %v1307
  %v1373 = vmax.f32 %v1357, %v1308
  %v1374 = vmax.f32 %v1358, %v1309
  %v1375 = vmax.f32 %v1359, 0.0
  %v1376 = vmax.f32 %v1360, %v1311
  %v1377 = vmax.f32 %v1361, %v1312
  %v1378 = vmax.f32 %v1362, %v1313
  %v1379 = vmax.f32 %v1363, %v1314
  %v1380 = vmax.f32 %v1364, %v1315
  %v1381 = vmax.f32 %v1365, %v1316
  %v1382 = vmax.f32 %v1366, %v1317
  %v1383 = vmax.f32 %v1335, %v1367
  %v1384 = vmax.f32 %v1336, %v1368
  %v1385 = vmax.f32 %v1337, %v1369
  %v1386 = vmax.f32 %v1338, %v1370
  %v1387 = vmax.f32 %v1339, %v1371
  %v1388 = vmax.f32 %v1340, %v1372
  %v1389 = vmax.f32 %v1341, %v1373
  %v1390 = vmax.f32 %v1342, %v1374
  %v1391 = vmax.f32 %v1343, %v1375
  %v1392 = vmax.f32 %v1344, %v1376
  %v1393 = vmax.f32 %v1345, %v1377
  %v1394 = vmax.f32 %v1346, %v1378
  %v1395 = vmax.f32 %v1347, %v1379
  %v1396 = vmax.f32 %v1348, %v1380
  %v1397 = vmax.f32 %v1349, %v1381
  %v1398 = vmax.f32 %v1350, %v1382
  %v1415 = vrot.slane %v1367, 7
  %v1416 = vrot.slane %v1368, 7
  %v1417 = vrot.slane %v1369, 7
  %v1418 = vrot.slane %v1370, 7
  %v1419 = vrot.slane %v1371, 7
  %v1420 = vrot.slane %v1372, 7
  %v1421 = vrot.slane %v1373, 7
  %v1422 = vrot.slane %v1374, 7
  %v1423 = vrot.slane %v1375, 7
  %v1424 = vrot.slane %v1376, 7
  %v1425 = vrot.slane %v1377, 7
  %v1426 = vrot.slane %v1378, 7
  %v1427 = vrot.slane %v1379, 7
  %v1428 = vrot.slane %v1380, 7
  %v1429 = vrot.slane %v1381, 7
  %v1430 = vrot.slane %v1382, 7
  %vm1447 = vcmask 1040384
  %v1448 = vsel %vm1447, 0.0, %v1415
  %v1449 = vsel %vm1447, 0.0, %v1416
  %v1450 = vsel %vm1447, 0.0, %v1417
  %v1451 = vsel %vm1447, 0.0, %v1418
  %v1452 = vsel %vm1447, 0.0, %v1419
  %v1453 = vsel %vm1447, 0.0, %v1420
  %v1454 = vsel %vm1447, 0.0, %v1421
  %v1455 = vsel %vm1447, 0.0, %v1422
  %v1456 = vsel %vm1447, 0.0, %v1423
  %v1457 = vsel %vm1447, 0.0, %v1424
  %v1458 = vsel %vm1447, 0.0, %v1425
  %v1459 = vsel %vm1447, 0.0, %v1426
  %v1460 = vsel %vm1447, 0.0, %v1427
  %v1461 = vsel %vm1447, 0.0, %v1428
  %v1462 = vsel %vm1447, 0.0, %v1429
  %v1463 = vsel %vm1447, 0.0, %v1430
  %v1464 = vmax.f32 %v1383, %v1448
  %v1465 = vmax.f32 %v1384, %v1449
  %v1466 = vmax.f32 %v1385, %v1450
  %v1467 = vmax.f32 %v1386, %v1451
  %v1468 = vmax.f32 %v1387, %v1452
  %v1469 = vmax.f32 %v1388, %v1453
  %v1470 = vmax.f32 %v1389, %v1454
  %v1471 = vmax.f32 %v1390, %v1455
  %v1472 = vmax.f32 %v1391, %v1456
  %v1473 = vmax.f32 %v1392, %v1457
  %v1474 = vmax.f32 %v1393, %v1458
  %v1475 = vmax.f32 %v1394, %v1459
  %v1476 = vmax.f32 %v1395, %v1460
  %v1477 = vmax.f32 %v1396, %v1461
  %v1478 = vmax.f32 %v1397, %v1462
  %v1479 = vmax.f32 %v1398, %v1463
  %v1480 = vpack.c.bf16 %v1465, %v1464
  %v1481 = vpack.c.bf16 %v1467, %v1466
  %v1482 = vpack.c.bf16 %v1469, %v1468
  %v1483 = vpack.c.bf16 %v1471, %v1470
  %v1484 = vpack.c.bf16 %v1473, %v1472
  %v1485 = vpack.c.bf16 %v1475, %v1474
  %v1486 = vpack.c.bf16 %v1477, %v1476
  %v1487 = vpack.c.bf16 %v1479, %v1478
  %v1488 = vld [vmem:[%s4] sm:$0xf]
  %v1489 = vld [vmem:[%s4 + $0x4] sm:$0xf]
  %v1490 = vld [vmem:[%s4 + $0x8] sm:$0xf]
  %v1491 = vld [vmem:[%s4 + $0xc] sm:$0xf]
  %v1496 = vunpack.c.l.b16 %v1488
  %v1497 = vunpack.c.l.b16 %v1489
  %v1498 = vunpack.c.l.b16 %v1490
  %v1499 = vunpack.c.l.b16 %v1491
  %v1500 = vpack.c.b16 %v1497, %v1496
  %v1501 = vpack.c.b16 %v1499, %v1498
  %1504 = vmatprep.subr.bf16.mxu0 0
  %1505 = vmatpush1.bf16.msra.mxu0 %v1480
  %1506 = vmatprep.subr.bf16.mxu0 0
  %1507 = vmatpush1.bf16.msra.mxu0 %v1481
  %1508 = vmatprep.subr.bf16.mxu0 0
  %1509 = vmatpush1.bf16.msra.mxu0 %v1482
  %1510 = vmatprep.subr.bf16.mxu0 0
  %1511 = vmatpush1.bf16.msra.mxu0 %v1483
  %1512 = vmatprep.subr.bf16.mxu0 0
  %1513 = vmatpush1.bf16.msra.mxu0 %v1484
  %1514 = vmatprep.subr.bf16.mxu0 0
  %1515 = vmatpush1.bf16.msra.mxu0 %v1485
  %1516 = vmatprep.subr.bf16.mxu0 0
  %1517 = vmatpush1.bf16.msra.mxu0 %v1486
  %1518 = vmatprep.subr.bf16.mxu0 0
  %1519 = vmatpush1.bf16.msra.mxu0 %v1487
  %1520 = vmatprep.subr.bf16.mxu0 0
  %1521 = vmatpush1.bf16.msra.mxu0 0
  %1522 = vmatprep.subr.bf16.mxu0 0
  %1523 = vmatpush1.bf16.msra.mxu0 0
  %1524 = vmatprep.subr.bf16.mxu0 0
  %1525 = vmatpush1.bf16.msra.mxu0 0
  %1526 = vmatprep.subr.bf16.mxu0 0
  %1527 = vmatpush1.bf16.msra.mxu0 0
  %1528 = vmatprep.subr.bf16.mxu0 0
  %1529 = vmatpush1.bf16.msra.mxu0 0
  %1530 = vmatprep.subr.bf16.mxu0 0
  %1531 = vmatpush1.bf16.msra.mxu0 0
  %1532 = vmatprep.subr.bf16.mxu0 0
  %1533 = vmatpush1.bf16.msra.mxu0 0
  %1534 = vmatprep.subr.bf16.mxu0 0
  %1535 = vmatpush1.bf16.msra.mxu0 0
  %1536 = vmatprep.mubr.bf16.mxu0 0
  %1537 = vmatmul.mubr.bf16.gmra.mrb[0].mxu0 %v1500
  %v1538 = vpop.f32.mrb[0].mxu0
  %v1539 = vadd.f32 0.0, %v1538
  %v1540 = vpop.f32.mrb[0].mxu0
  %v1541 = vpop.f32.mrb[0].mxu0
  %v1542 = vadd.f32 0.0, %v1541
  %v1543 = vpop.f32.mrb[0].mxu0
  %1544 = vmatprep.mubr.bf16.mxu0 0
  %1545 = vmatmul.mubr.bf16.gmra.mrb[0].mxu0 %v1501
  %v1546 = vpop.f32.mrb[0].mxu0
  %v1547 = vadd.f32 0.0, %v1546
  %v1548 = vpop.f32.mrb[0].mxu0
  %v1549 = vpop.f32.mrb[0].mxu0
  %v1550 = vadd.f32 0.0, %v1549
  %v1551 = vpop.f32.mrb[0].mxu0
  %1552 = vdwg.mxu0
  %v1553 = vpack.c.bf16 %v1542, %v1539
  %v1554 = vpack.c.bf16 %v1550, %v1547
  %s1555 = scalar_lea.vmem %s4, 16
  %v1556 = vld [vmem:[%s1555] sm:$0xf]
  %v1557 = vld [vmem:[%s1555 + $0x4] sm:$0xf]
  %v1558 = vld [vmem:[%s1555 + $0x8] sm:$0xf]
  %v1559 = vld [vmem:[%s1555 + $0xc] sm:$0xf]
  %v1564 = vunpack.c.l.b16 %v1556
  %v1565 = vunpack.c.l.b16 %v1557
  %v1566 = vunpack.c.l.b16 %v1558
  %v1567 = vunpack.c.l.b16 %v1559
  %v1568 = vpack.c.b16 %v1565, %v1564
  %v1569 = vpack.c.b16 %v1567, %v1566
  %1572 = vmatprep.subr.bf16.mxu0 0
  %1573 = vmatpush1.bf16.msra.mxu0 %v1480
  %1574 = vmatprep.subr.bf16.mxu0 0
  %1575 = vmatpush1.bf16.msra.mxu0 %v1481
  %1576 = vmatprep.subr.bf16.mxu0 0
  %1577 = vmatpush1.bf16.msra.mxu0 %v1482
  %1578 = vmatprep.subr.bf16.mxu0 0
  %1579 = vmatpush1.bf16.msra.mxu0 %v1483
  %1580 = vmatprep.subr.bf16.mxu0 0
  %1581 = vmatpush1.bf16.msra.mxu0 %v1484
  %1582 = vmatprep.subr.bf16.mxu0 0
  %1583 = vmatpush1.bf16.msra.mxu0 %v1485
  %1584 = vmatprep.subr.bf16.mxu0 0
  %1585 = vmatpush1.bf16.msra.mxu0 %v1486
  %1586 = vmatprep.subr.bf16.mxu0 0
  %1587 = vmatpush1.bf16.msra.mxu0 %v1487
  %1588 = vmatprep.subr.bf16.mxu0 0
  %1589 = vmatpush1.bf16.msra.mxu0 0
  %1590 = vmatprep.subr.bf16.mxu0 0
  %1591 = vmatpush1.bf16.msra.mxu0 0
  %1592 = vmatprep.subr.bf16.mxu0 0
  %1593 = vmatpush1.bf16.msra.mxu0 0
  %1594 = vmatprep.subr.bf16.mxu0 0
  %1595 = vmatpush1.bf16.msra.mxu0 0
  %1596 = vmatprep.subr.bf16.mxu0 0
  %1597 = vmatpush1.bf16.msra.mxu0 0
  %1598 = vmatprep.subr.bf16.mxu0 0
  %1599 = vmatpush1.bf16.msra.mxu0 0
  %1600 = vmatprep.subr.bf16.mxu0 0
  %1601 = vmatpush1.bf16.msra.mxu0 0
  %1602 = vmatprep.subr.bf16.mxu0 0
  %1603 = vmatpush1.bf16.msra.mxu0 0
  %1604 = vmatprep.mubr.bf16.mxu0 0
  %1605 = vmatmul.mubr.bf16.gmra.mrb[0].mxu0 %v1568
  %v1606 = vpop.f32.mrb[0].mxu0
  %v1607 = vadd.f32 0.0, %v1606
  %v1608 = vpop.f32.mrb[0].mxu0
  %v1609 = vpop.f32.mrb[0].mxu0
  %v1610 = vadd.f32 0.0, %v1609
  %v1611 = vpop.f32.mrb[0].mxu0
  %1612 = vmatprep.mubr.bf16.mxu0 0
  %1613 = vmatmul.mubr.bf16.gmra.mrb[0].mxu0 %v1569
  %v1614 = vpop.f32.mrb[0].mxu0
  %v1615 = vadd.f32 0.0, %v1614
  %v1616 = vpop.f32.mrb[0].mxu0
  %v1617 = vpop.f32.mrb[0].mxu0
  %v1618 = vadd.f32 0.0, %v1617
  %v1619 = vpop.f32.mrb[0].mxu0
  %1620 = vdwg.mxu0
  %v1621 = vpack.c.bf16 %v1610, %v1607
  %v1622 = vpack.c.bf16 %v1618, %v1615
  %s1623 = scalar_lea.vmem %s4, 32
  %v1624 = vld [vmem:[%s1623] sm:$0xf]
  %v1625 = vld [vmem:[%s1623 + $0x4] sm:$0xf]
  %v1626 = vld [vmem:[%s1623 + $0x8] sm:$0xf]
  %v1627 = vld [vmem:[%s1623 + $0xc] sm:$0xf]
  %v1632 = vunpack.c.l.b16 %v1624
  %v1633 = vunpack.c.l.b16 %v1625
  %v1634 = vunpack.c.l.b16 %v1626
  %v1635 = vunpack.c.l.b16 %v1627
  %v1636 = vpack.c.b16 %v1633, %v1632
  %v1637 = vpack.c.b16 %v1635, %v1634
  %1640 = vmatprep.subr.bf16.mxu0 0
  %1641 = vmatpush1.bf16.msra.mxu0 %v1480
  %1642 = vmatprep.subr.bf16.mxu0 0
  %1643 = vmatpush1.bf16.msra.mxu0 %v1481
  %1644 = vmatprep.subr.bf16.mxu0 0
  %1645 = vmatpush1.bf16.msra.mxu0 %v1482
  %1646 = vmatprep.subr.bf16.mxu0 0
  %1647 = vmatpush1.bf16.msra.mxu0 %v1483
  %1648 = vmatprep.subr.bf16.mxu0 0
  %1649 = vmatpush1.bf16.msra.mxu0 %v1484
  %1650 = vmatprep.subr.bf16.mxu0 0
  %1651 = vmatpush1.bf16.msra.mxu0 %v1485
  %1652 = vmatprep.subr.bf16.mxu0 0
  %1653 = vmatpush1.bf16.msra.mxu0 %v1486
  %1654 = vmatprep.subr.bf16.mxu0 0
  %1655 = vmatpush1.bf16.msra.mxu0 %v1487
  %1656 = vmatprep.subr.bf16.mxu0 0
  %1657 = vmatpush1.bf16.msra.mxu0 0
  %1658 = vmatprep.subr.bf16.mxu0 0
  %1659 = vmatpush1.bf16.msra.mxu0 0
  %1660 = vmatprep.subr.bf16.mxu0 0
  %1661 = vmatpush1.bf16.msra.mxu0 0
  %1662 = vmatprep.subr.bf16.mxu0 0
  %1663 = vmatpush1.bf16.msra.mxu0 0
  %1664 = vmatprep.subr.bf16.mxu0 0
  %1665 = vmatpush1.bf16.msra.mxu0 0
  %1666 = vmatprep.subr.bf16.mxu0 0
  %1667 = vmatpush1.bf16.msra.mxu0 0
  %1668 = vmatprep.subr.bf16.mxu0 0
  %1669 = vmatpush1.bf16.msra.mxu0 0
  %1670 = vmatprep.subr.bf16.mxu0 0
  %1671 = vmatpush1.bf16.msra.mxu0 0
  %1672 = vmatprep.mubr.bf16.mxu0 0
  %1673 = vmatmul.mubr.bf16.gmra.mrb[0].mxu0 %v1636
  %v1674 = vpop.f32.mrb[0].mxu0
  %v1675 = vadd.f32 0.0, %v1674
  %v1676 = vpop.f32.mrb[0].mxu0
  %v1677 = vpop.f32.mrb[0].mxu0
  %v1678 = vadd.f32 0.0, %v1677
  %v1679 = vpop.f32.mrb[0].mxu0
  %1680 = vmatprep.mubr.bf16.mxu0 0
  %1681 = vmatmul.mubr.bf16.gmra.mrb[0].mxu0 %v1637
  %v1682 = vpop.f32.mrb[0].mxu0
  %v1683 = vadd.f32 0.0, %v1682
  %v1684 = vpop.f32.mrb[0].mxu0
  %v1685 = vpop.f32.mrb[0].mxu0
  %v1686 = vadd.f32 0.0, %v1685
  %v1687 = vpop.f32.mrb[0].mxu0
  %1688 = vdwg.mxu0
  %v1689 = vpack.c.bf16 %v1678, %v1675
  %v1690 = vpack.c.bf16 %v1686, %v1683
  %s1691 = scalar_lea.vmem %s4, 48
  %v1692 = vld [vmem:[%s1691] sm:$0xf]
  %v1693 = vld [vmem:[%s1691 + $0x4] sm:$0xf]
  %v1694 = vld [vmem:[%s1691 + $0x8] sm:$0xf]
  %v1695 = vld [vmem:[%s1691 + $0xc] sm:$0xf]
  %v1700 = vunpack.c.l.b16 %v1692
  %v1701 = vunpack.c.l.b16 %v1693
  %v1702 = vunpack.c.l.b16 %v1694
  %v1703 = vunpack.c.l.b16 %v1695
  %v1704 = vpack.c.b16 %v1701, %v1700
  %v1705 = vpack.c.b16 %v1703, %v1702
  %1708 = vmatprep.subr.bf16.mxu0 0
  %1709 = vmatpush1.bf16.msra.mxu0 %v1480
  %1710 = vmatprep.subr.bf16.mxu0 0
  %1711 = vmatpush1.bf16.msra.mxu0 %v1481
  %1712 = vmatprep.subr.bf16.mxu0 0
  %1713 = vmatpush1.bf16.msra.mxu0 %v1482
  %1714 = vmatprep.subr.bf16.mxu0 0
  %1715 = vmatpush1.bf16.msra.mxu0 %v1483
  %1716 = vmatprep.subr.bf16.mxu0 0
  %1717 = vmatpush1.bf16.msra.mxu0 %v1484
  %1718 = vmatprep.subr.bf16.mxu0 0
  %1719 = vmatpush1.bf16.msra.mxu0 %v1485
  %1720 = vmatprep.subr.bf16.mxu0 0
  %1721 = vmatpush1.bf16.msra.mxu0 %v1486
  %1722 = vmatprep.subr.bf16.mxu0 0
  %1723 = vmatpush1.bf16.msra.mxu0 %v1487
  %1724 = vmatprep.subr.bf16.mxu0 0
  %1725 = vmatpush1.bf16.msra.mxu0 0
  %1726 = vmatprep.subr.bf16.mxu0 0
  %1727 = vmatpush1.bf16.msra.mxu0 0
  %1728 = vmatprep.subr.bf16.mxu0 0
  %1729 = vmatpush1.bf16.msra.mxu0 0
  %1730 = vmatprep.subr.bf16.mxu0 0
  %1731 = vmatpush1.bf16.msra.mxu0 0
  %1732 = vmatprep.subr.bf16.mxu0 0
  %1733 = vmatpush1.bf16.msra.mxu0 0
  %1734 = vmatprep.subr.bf16.mxu0 0
  %1735 = vmatpush1.bf16.msra.mxu0 0
  %1736 = vmatprep.subr.bf16.mxu0 0
  %1737 = vmatpush1.bf16.msra.mxu0 0
  %1738 = vmatprep.subr.bf16.mxu0 0
  %1739 = vmatpush1.bf16.msra.mxu0 0
  %1740 = vmatprep.mubr.bf16.mxu0 0
  %1741 = vmatmul.mubr.bf16.gmra.mrb[0].mxu0 %v1704
  %v1742 = vpop.f32.mrb[0].mxu0
  %v1743 = vadd.f32 0.0, %v1742
  %v1744 = vpop.f32.mrb[0].mxu0
  %v1745 = vpop.f32.mrb[0].mxu0
  %v1746 = vadd.f32 0.0, %v1745
  %v1747 = vpop.f32.mrb[0].mxu0
  %1748 = vmatprep.mubr.bf16.mxu0 0
  %1749 = vmatmul.mubr.bf16.gmra.mrb[0].mxu0 %v1705
  %v1750 = vpop.f32.mrb[0].mxu0
  %v1751 = vadd.f32 0.0, %v1750
  %v1752 = vpop.f32.mrb[0].mxu0
  %v1753 = vpop.f32.mrb[0].mxu0
  %v1754 = vadd.f32 0.0, %v1753
  %v1755 = vpop.f32.mrb[0].mxu0
  %1756 = vdwg.mxu0
  %v1757 = vpack.c.bf16 %v1746, %v1743
  %v1758 = vpack.c.bf16 %v1754, %v1751
  %s1759 = scalar_lea.vmem %s4, 64
  %v1760 = vld [vmem:[%s1759] sm:$0xf]
  %v1761 = vld [vmem:[%s1759 + $0x4] sm:$0xf]
  %v1762 = vld [vmem:[%s1759 + $0x8] sm:$0xf]
  %v1763 = vld [vmem:[%s1759 + $0xc] sm:$0xf]
  %v1768 = vunpack.c.l.b16 %v1760
  %v1769 = vunpack.c.l.b16 %v1761
  %v1770 = vunpack.c.l.b16 %v1762
  %v1771 = vunpack.c.l.b16 %v1763
  %v1772 = vpack.c.b16 %v1769, %v1768
  %v1773 = vpack.c.b16 %v1771, %v1770
  %1776 = vmatprep.subr.bf16.mxu0 0
  %1777 = vmatpush1.bf16.msra.mxu0 %v1480
  %1778 = vmatprep.subr.bf16.mxu0 0
  %1779 = vmatpush1.bf16.msra.mxu0 %v1481
  %1780 = vmatprep.subr.bf16.mxu0 0
  %1781 = vmatpush1.bf16.msra.mxu0 %v1482
  %1782 = vmatprep.subr.bf16.mxu0 0
  %1783 = vmatpush1.bf16.msra.mxu0 %v1483
  %1784 = vmatprep.subr.bf16.mxu0 0
  %1785 = vmatpush1.bf16.msra.mxu0 %v1484
  %1786 = vmatprep.subr.bf16.mxu0 0
  %1787 = vmatpush1.bf16.msra.mxu0 %v1485
  %1788 = vmatprep.subr.bf16.mxu0 0
  %1789 = vmatpush1.bf16.msra.mxu0 %v1486
  %1790 = vmatprep.subr.bf16.mxu0 0
  %1791 = vmatpush1.bf16.msra.mxu0 %v1487
  %1792 = vmatprep.subr.bf16.mxu0 0
  %1793 = vmatpush1.bf16.msra.mxu0 0
  %1794 = vmatprep.subr.bf16.mxu0 0
  %1795 = vmatpush1.bf16.msra.mxu0 0
  %1796 = vmatprep.subr.bf16.mxu0 0
  %1797 = vmatpush1.bf16.msra.mxu0 0
  %1798 = vmatprep.subr.bf16.mxu0 0
  %1799 = vmatpush1.bf16.msra.mxu0 0
  %1800 = vmatprep.subr.bf16.mxu0 0
  %1801 = vmatpush1.bf16.msra.mxu0 0
  %1802 = vmatprep.subr.bf16.mxu0 0
  %1803 = vmatpush1.bf16.msra.mxu0 0
  %1804 = vmatprep.subr.bf16.mxu0 0
  %1805 = vmatpush1.bf16.msra.mxu0 0
  %1806 = vmatprep.subr.bf16.mxu0 0
  %1807 = vmatpush1.bf16.msra.mxu0 0
  %1808 = vmatprep.mubr.bf16.mxu0 0
  %1809 = vmatmul.mubr.bf16.gmra.mrb[0].mxu0 %v1772
  %v1810 = vpop.f32.mrb[0].mxu0
  %v1811 = vadd.f32 0.0, %v1810
  %v1812 = vpop.f32.mrb[0].mxu0
  %v1813 = vpop.f32.mrb[0].mxu0
  %v1814 = vadd.f32 0.0, %v1813
  %v1815 = vpop.f32.mrb[0].mxu0
  %1816 = vmatprep.mubr.bf16.mxu0 0
  %1817 = vmatmul.mubr.bf16.gmra.mrb[0].mxu0 %v1773
  %v1818 = vpop.f32.mrb[0].mxu0
  %v1819 = vadd.f32 0.0, %v1818
  %v1820 = vpop.f32.mrb[0].mxu0
  %v1821 = vpop.f32.mrb[0].mxu0
  %v1822 = vadd.f32 0.0, %v1821
  %v1823 = vpop.f32.mrb[0].mxu0
  %1824 = vdwg.mxu0
  %v1825 = vpack.c.bf16 %v1814, %v1811
  %v1826 = vpack.c.bf16 %v1822, %v1819
  %s1827 = scalar_lea.vmem %s4, 80
  %v1828 = vld [vmem:[%s1827] sm:$0xf]
  %v1829 = vld [vmem:[%s1827 + $0x4] sm:$0xf]
  %v1830 = vld [vmem:[%s1827 + $0x8] sm:$0xf]
  %v1831 = vld [vmem:[%s1827 + $0xc] sm:$0xf]
  %v1836 = vunpack.c.l.b16 %v1828
  %v1837 = vunpack.c.l.b16 %v1829
  %v1838 = vunpack.c.l.b16 %v1830
  %v1839 = vunpack.c.l.b16 %v1831
  %v1840 = vpack.c.b16 %v1837, %v1836
  %v1841 = vpack.c.b16 %v1839, %v1838
  %1844 = vmatprep.subr.bf16.mxu0 0
  %1845 = vmatpush1.bf16.msra.mxu0 %v1480
  %1846 = vmatprep.subr.bf16.mxu0 0
  %1847 = vmatpush1.bf16.msra.mxu0 %v1481
  %1848 = vmatprep.subr.bf16.mxu0 0
  %1849 = vmatpush1.bf16.msra.mxu0 %v1482
  %1850 = vmatprep.subr.bf16.mxu0 0
  %1851 = vmatpush1.bf16.msra.mxu0 %v1483
  %1852 = vmatprep.subr.bf16.mxu0 0
  %1853 = vmatpush1.bf16.msra.mxu0 %v1484
  %1854 = vmatprep.subr.bf16.mxu0 0
  %1855 = vmatpush1.bf16.msra.mxu0 %v1485
  %1856 = vmatprep.subr.bf16.mxu0 0
  %1857 = vmatpush1.bf16.msra.mxu0 %v1486
  %1858 = vmatprep.subr.bf16.mxu0 0
  %1859 = vmatpush1.bf16.msra.mxu0 %v1487
  %1860 = vmatprep.subr.bf16.mxu0 0
  %1861 = vmatpush1.bf16.msra.mxu0 0
  %1862 = vmatprep.subr.bf16.mxu0 0
  %1863 = vmatpush1.bf16.msra.mxu0 0
  %1864 = vmatprep.subr.bf16.mxu0 0
  %1865 = vmatpush1.bf16.msra.mxu0 0
  %1866 = vmatprep.subr.bf16.mxu0 0
  %1867 = vmatpush1.bf16.msra.mxu0 0
  %1868 = vmatprep.subr.bf16.mxu0 0
  %1869 = vmatpush1.bf16.msra.mxu0 0
  %1870 = vmatprep.subr.bf16.mxu0 0
  %1871 = vmatpush1.bf16.msra.mxu0 0
  %1872 = vmatprep.subr.bf16.mxu0 0
  %1873 = vmatpush1.bf16.msra.mxu0 0
  %1874 = vmatprep.subr.bf16.mxu0 0
  %1875 = vmatpush1.bf16.msra.mxu0 0
  %1876 = vmatprep.mubr.bf16.mxu0 0
  %1877 = vmatmul.mubr.bf16.gmra.mrb[0].mxu0 %v1840
  %v1878 = vpop.f32.mrb[0].mxu0
  %v1879 = vadd.f32 0.0, %v1878
  %v1880 = vpop.f32.mrb[0].mxu0
  %v1881 = vpop.f32.mrb[0].mxu0
  %v1882 = vadd.f32 0.0, %v1881
  %v1883 = vpop.f32.mrb[0].mxu0
  %1884 = vmatprep.mubr.bf16.mxu0 0
  %1885 = vmatmul.mubr.bf16.gmra.mrb[0].mxu0 %v1841
  %v1886 = vpop.f32.mrb[0].mxu0
  %v1887 = vadd.f32 0.0, %v1886
  %v1888 = vpop.f32.mrb[0].mxu0
  %v1889 = vpop.f32.mrb[0].mxu0
  %v1890 = vadd.f32 0.0, %v1889
  %v1891 = vpop.f32.mrb[0].mxu0
  %1892 = vdwg.mxu0
  %v1893 = vpack.c.bf16 %v1882, %v1879
  %v1894 = vpack.c.bf16 %v1890, %v1887
  %s1895 = scalar_lea.vmem %s4, 96
  %v1896 = vld [vmem:[%s1895] sm:$0xf]
  %v1897 = vld [vmem:[%s1895 + $0x4] sm:$0xf]
  %v1898 = vld [vmem:[%s1895 + $0x8] sm:$0xf]
  %v1899 = vld [vmem:[%s1895 + $0xc] sm:$0xf]
  %v1904 = vunpack.c.l.b16 %v1896
  %v1905 = vunpack.c.l.b16 %v1897
  %v1906 = vunpack.c.l.b16 %v1898
  %v1907 = vunpack.c.l.b16 %v1899
  %v1908 = vpack.c.b16 %v1905, %v1904
  %v1909 = vpack.c.b16 %v1907, %v1906
  %1912 = vmatprep.subr.bf16.mxu0 0
  %1913 = vmatpush1.bf16.msra.mxu0 %v1480
  %1914 = vmatprep.subr.bf16.mxu0 0
  %1915 = vmatpush1.bf16.msra.mxu0 %v1481
  %1916 = vmatprep.subr.bf16.mxu0 0
  %1917 = vmatpush1.bf16.msra.mxu0 %v1482
  %1918 = vmatprep.subr.bf16.mxu0 0
  %1919 = vmatpush1.bf16.msra.mxu0 %v1483
  %1920 = vmatprep.subr.bf16.mxu0 0
  %1921 = vmatpush1.bf16.msra.mxu0 %v1484
  %1922 = vmatprep.subr.bf16.mxu0 0
  %1923 = vmatpush1.bf16.msra.mxu0 %v1485
  %1924 = vmatprep.subr.bf16.mxu0 0
  %1925 = vmatpush1.bf16.msra.mxu0 %v1486
  %1926 = vmatprep.subr.bf16.mxu0 0
  %1927 = vmatpush1.bf16.msra.mxu0 %v1487
  %1928 = vmatprep.subr.bf16.mxu0 0
  %1929 = vmatpush1.bf16.msra.mxu0 0
  %1930 = vmatprep.subr.bf16.mxu0 0
  %1931 = vmatpush1.bf16.msra.mxu0 0
  %1932 = vmatprep.subr.bf16.mxu0 0
  %1933 = vmatpush1.bf16.msra.mxu0 0
  %1934 = vmatprep.subr.bf16.mxu0 0
  %1935 = vmatpush1.bf16.msra.mxu0 0
  %1936 = vmatprep.subr.bf16.mxu0 0
  %1937 = vmatpush1.bf16.msra.mxu0 0
  %1938 = vmatprep.subr.bf16.mxu0 0
  %1939 = vmatpush1.bf16.msra.mxu0 0
  %1940 = vmatprep.subr.bf16.mxu0 0
  %1941 = vmatpush1.bf16.msra.mxu0 0
  %1942 = vmatprep.subr.bf16.mxu0 0
  %1943 = vmatpush1.bf16.msra.mxu0 0
  %1944 = vmatprep.mubr.bf16.mxu0 0
  %1945 = vmatmul.mubr.bf16.gmra.mrb[0].mxu0 %v1908
  %v1946 = vpop.f32.mrb[0].mxu0
  %v1947 = vadd.f32 0.0, %v1946
  %v1948 = vpop.f32.mrb[0].mxu0
  %v1949 = vpop.f32.mrb[0].mxu0
  %v1950 = vadd.f32 0.0, %v1949
  %v1951 = vpop.f32.mrb[0].mxu0
  %1952 = vmatprep.mubr.bf16.mxu0 0
  %1953 = vmatmul.mubr.bf16.gmra.mrb[0].mxu0 %v1909
  %v1954 = vpop.f32.mrb[0].mxu0
  %v1955 = vadd.f32 0.0, %v1954
  %v1956 = vpop.f32.mrb[0].mxu0
  %v1957 = vpop.f32.mrb[0].mxu0
  %v1958 = vadd.f32 0.0, %v1957
  %v1959 = vpop.f32.mrb[0].mxu0
  %1960 = vdwg.mxu0
  %v1961 = vpack.c.bf16 %v1950, %v1947
  %v1962 = vpack.c.bf16 %v1958, %v1955
  %s1963 = scalar_lea.vmem %s4, 112
  %v1964 = vld [vmem:[%s1963] sm:$0xf]
  %v1965 = vld [vmem:[%s1963 + $0x4] sm:$0xf]
  %v1966 = vld [vmem:[%s1963 + $0x8] sm:$0xf]
  %v1967 = vld [vmem:[%s1963 + $0xc] sm:$0xf]
  %v1972 = vunpack.c.l.b16 %v1964
  %v1973 = vunpack.c.l.b16 %v1965
  %v1974 = vunpack.c.l.b16 %v1966
  %v1975 = vunpack.c.l.b16 %v1967
  %v1976 = vpack.c.b16 %v1973, %v1972
  %v1977 = vpack.c.b16 %v1975, %v1974
  %1980 = vmatprep.subr.bf16.mxu0 0
  %1981 = vmatpush1.bf16.msra.mxu0 %v1480
  %1982 = vmatprep.subr.bf16.mxu0 0
  %1983 = vmatpush1.bf16.msra.mxu0 %v1481
  %1984 = vmatprep.subr.bf16.mxu0 0
  %1985 = vmatpush1.bf16.msra.mxu0 %v1482
  %1986 = vmatprep.subr.bf16.mxu0 0
  %1987 = vmatpush1.bf16.msra.mxu0 %v1483
  %1988 = vmatprep.subr.bf16.mxu0 0
  %1989 = vmatpush1.bf16.msra.mxu0 %v1484
  %1990 = vmatprep.subr.bf16.mxu0 0
  %1991 = vmatpush1.bf16.msra.mxu0 %v1485
  %1992 = vmatprep.subr.bf16.mxu0 0
  %1993 = vmatpush1.bf16.msra.mxu0 %v1486
  %1994 = vmatprep.subr.bf16.mxu0 0
  %1995 = vmatpush1.bf16.msra.mxu0 %v1487
  %1996 = vmatprep.subr.bf16.mxu0 0
  %1997 = vmatpush1.bf16.msra.mxu0 0
  %1998 = vmatprep.subr.bf16.mxu0 0
  %1999 = vmatpush1.bf16.msra.mxu0 0
  %2000 = vmatprep.subr.bf16.mxu0 0
  %2001 = vmatpush1.bf16.msra.mxu0 0
  %2002 = vmatprep.subr.bf16.mxu0 0
  %2003 = vmatpush1.bf16.msra.mxu0 0
  %2004 = vmatprep.subr.bf16.mxu0 0
  %2005 = vmatpush1.bf16.msra.mxu0 0
  %2006 = vmatprep.subr.bf16.mxu0 0
  %2007 = vmatpush1.bf16.msra.mxu0 0
  %2008 = vmatprep.subr.bf16.mxu0 0
  %2009 = vmatpush1.bf16.msra.mxu0 0
  %2010 = vmatprep.subr.bf16.mxu0 0
  %2011 = vmatpush1.bf16.msra.mxu0 0
  %2012 = vmatprep.mubr.bf16.mxu0 0
  %2013 = vmatmul.mubr.bf16.gmra.mrb[0].mxu0 %v1976
  %v2014 = vpop.f32.mrb[0].mxu0
  %v2015 = vadd.f32 0.0, %v2014
  %v2016 = vpop.f32.mrb[0].mxu0
  %v2017 = vpop.f32.mrb[0].mxu0
  %v2018 = vadd.f32 0.0, %v2017
  %v2019 = vpop.f32.mrb[0].mxu0
  %2020 = vmatprep.mubr.bf16.mxu0 0
  %2021 = vmatmul.mubr.bf16.gmra.mrb[0].mxu0 %v1977
  %v2022 = vpop.f32.mrb[0].mxu0
  %v2023 = vadd.f32 0.0, %v2022
  %v2024 = vpop.f32.mrb[0].mxu0
  %v2025 = vpop.f32.mrb[0].mxu0
  %v2026 = vadd.f32 0.0, %v2025
  %v2027 = vpop.f32.mrb[0].mxu0
  %2028 = vdwg.mxu0
  %v2029 = vpack.c.bf16 %v2018, %v2015
  %v2030 = vpack.c.bf16 %v2026, %v2023
  %s2031 = scalar_lea.vmem %s4, 128
  %v2032 = vld [vmem:[%s2031] sm:$0xf]
  %v2033 = vld [vmem:[%s2031 + $0x4] sm:$0xf]
  %v2034 = vld [vmem:[%s2031 + $0x8] sm:$0xf]
  %v2035 = vld [vmem:[%s2031 + $0xc] sm:$0xf]
  %v2040 = vunpack.c.l.b16 %v2032
  %v2041 = vunpack.c.l.b16 %v2033
  %v2042 = vunpack.c.l.b16 %v2034
  %v2043 = vunpack.c.l.b16 %v2035
  %v2044 = vpack.c.b16 %v2041, %v2040
  %v2045 = vpack.c.b16 %v2043, %v2042
  %2048 = vmatprep.subr.bf16.mxu0 0
  %2049 = vmatpush1.bf16.msra.mxu0 %v1480
  %2050 = vmatprep.subr.bf16.mxu0 0
  %2051 = vmatpush1.bf16.msra.mxu0 %v1481
  %2052 = vmatprep.subr.bf16.mxu0 0
  %2053 = vmatpush1.bf16.msra.mxu0 %v1482
  %2054 = vmatprep.subr.bf16.mxu0 0
  %2055 = vmatpush1.bf16.msra.mxu0 %v1483
  %2056 = vmatprep.subr.bf16.mxu0 0
  %2057 = vmatpush1.bf16.msra.mxu0 %v1484
  %2058 = vmatprep.subr.bf16.mxu0 0
  %2059 = vmatpush1.bf16.msra.mxu0 %v1485
  %2060 = vmatprep.subr.bf16.mxu0 0
  %2061 = vmatpush1.bf16.msra.mxu0 %v1486
  %2062 = vmatprep.subr.bf16.mxu0 0
  %2063 = vmatpush1.bf16.msra.mxu0 %v1487
  %2064 = vmatprep.subr.bf16.mxu0 0
  %2065 = vmatpush1.bf16.msra.mxu0 0
  %2066 = vmatprep.subr.bf16.mxu0 0
  %2067 = vmatpush1.bf16.msra.mxu0 0
  %2068 = vmatprep.subr.bf16.mxu0 0
  %2069 = vmatpush1.bf16.msra.mxu0 0
  %2070 = vmatprep.subr.bf16.mxu0 0
  %2071 = vmatpush1.bf16.msra.mxu0 0
  %2072 = vmatprep.subr.bf16.mxu0 0
  %2073 = vmatpush1.bf16.msra.mxu0 0
  %2074 = vmatprep.subr.bf16.mxu0 0
  %2075 = vmatpush1.bf16.msra.mxu0 0
  %2076 = vmatprep.subr.bf16.mxu0 0
  %2077 = vmatpush1.bf16.msra.mxu0 0
  %2078 = vmatprep.subr.bf16.mxu0 0
  %2079 = vmatpush1.bf16.msra.mxu0 0
  %2080 = vmatprep.mubr.bf16.mxu0 0
  %2081 = vmatmul.mubr.bf16.gmra.mrb[0].mxu0 %v2044
  %v2082 = vpop.f32.mrb[0].mxu0
  %v2083 = vadd.f32 0.0, %v2082
  %v2084 = vpop.f32.mrb[0].mxu0
  %v2085 = vpop.f32.mrb[0].mxu0
  %v2086 = vadd.f32 0.0, %v2085
  %v2087 = vpop.f32.mrb[0].mxu0
  %2088 = vmatprep.mubr.bf16.mxu0 0
  %2089 = vmatmul.mubr.bf16.gmra.mrb[0].mxu0 %v2045
  %v2090 = vpop.f32.mrb[0].mxu0
  %v2091 = vadd.f32 0.0, %v2090
  %v2092 = vpop.f32.mrb[0].mxu0
  %v2093 = vpop.f32.mrb[0].mxu0
  %v2094 = vadd.f32 0.0, %v2093
  %v2095 = vpop.f32.mrb[0].mxu0
  %2096 = vdwg.mxu0
  %v2097 = vpack.c.bf16 %v2086, %v2083
  %v2098 = vpack.c.bf16 %v2094, %v2091
  %v2099 = vld [vmem:[%s5] sm:$0xf]
  %v2100 = vld [vmem:[%s5 + $0x4] sm:$0xf]
  %v2101 = vld [vmem:[%s5 + $0x8] sm:$0xf]
  %v2102 = vld [vmem:[%s5 + $0xc] sm:$0xf]
  %v2103 = vld [vmem:[%s5 + $0x10] sm:$0xf]
  %v2104 = vld [vmem:[%s5 + $0x14] sm:$0xf]
  %v2105 = vld [vmem:[%s5 + $0x18] sm:$0xf]
  %v2106 = vld [vmem:[%s5 + $0x1c] sm:$0xf]
  %v2107 = vld [vmem:[%s5 + $0x20] sm:$0xf]
  %v2108 = vld [vmem:[%s5 + $0x24] sm:$0xf]
  %v2109 = vld [vmem:[%s5 + $0x28] sm:$0xf]
  %v2110 = vld [vmem:[%s5 + $0x2c] sm:$0xf]
  %v2111 = vld [vmem:[%s5 + $0x30] sm:$0xf]
  %v2112 = vld [vmem:[%s5 + $0x34] sm:$0xf]
  %v2113 = vld [vmem:[%s5 + $0x38] sm:$0xf]
  %v2114 = vld [vmem:[%s5 + $0x3c] sm:$0xf]
  %v2115 = vld [vmem:[%s5 + $0x40] sm:$0xf]
  %v2116 = vld [vmem:[%s5 + $0x44] sm:$0xf]
  %v2117 = vld [vmem:[%s5 + $0x48] sm:$0xf]
  %v2118 = vld [vmem:[%s5 + $0x4c] sm:$0xf]
  %v2119 = vld [vmem:[%s5 + $0x50] sm:$0xf]
  %v2120 = vld [vmem:[%s5 + $0x54] sm:$0xf]
  %v2121 = vld [vmem:[%s5 + $0x58] sm:$0xf]
  %v2122 = vld [vmem:[%s5 + $0x5c] sm:$0xf]
  %v2123 = vld [vmem:[%s5 + $0x60] sm:$0xf]
  %v2124 = vld [vmem:[%s5 + $0x64] sm:$0xf]
  %v2125 = vld [vmem:[%s5 + $0x68] sm:$0xf]
  %v2126 = vld [vmem:[%s5 + $0x6c] sm:$0xf]
  %v2127 = vld [vmem:[%s5 + $0x70] sm:$0xf]
  %v2128 = vld [vmem:[%s5 + $0x74] sm:$0xf]
  %v2129 = vld [vmem:[%s5 + $0x78] sm:$0xf]
  %v2130 = vld [vmem:[%s5 + $0x7c] sm:$0xf]
  %v2131 = vld [vmem:[%s5 + $0x80] sm:$0xf]
  %v2132 = vld [vmem:[%s5 + $0x84] sm:$0xf]
  %v2133 = vld [vmem:[%s5 + $0x88] sm:$0xf]
  %v2134 = vld [vmem:[%s5 + $0x8c] sm:$0xf]
  %v2135 = vld [vmem:[%s5 + $0x90] sm:$0xf]
  %v2136 = vld [vmem:[%s5 + $0x94] sm:$0xf]
  %v2137 = vld [vmem:[%s5 + $0x98] sm:$0xf]
  %v2138 = vld [vmem:[%s5 + $0x9c] sm:$0xf]
  %v2139 = vld [vmem:[%s5 + $0xa0] sm:$0xf]
  %v2140 = vld [vmem:[%s5 + $0xa4] sm:$0xf]
  %v2141 = vld [vmem:[%s5 + $0xa8] sm:$0xf]
  %v2142 = vld [vmem:[%s5 + $0xac] sm:$0xf]
  %v2143 = vld [vmem:[%s5 + $0xb0] sm:$0xf]
  %v2144 = vld [vmem:[%s5 + $0xb4] sm:$0xf]
  %v2145 = vld [vmem:[%s5 + $0xb8] sm:$0xf]
  %v2146 = vld [vmem:[%s5 + $0xbc] sm:$0xf]
  %v2147 = vld [vmem:[%s5 + $0xc0] sm:$0xf]
  %v2148 = vld [vmem:[%s5 + $0xc4] sm:$0xf]
  %v2149 = vld [vmem:[%s5 + $0xc8] sm:$0xf]
  %v2150 = vld [vmem:[%s5 + $0xcc] sm:$0xf]
  %v2151 = vld [vmem:[%s5 + $0xd0] sm:$0xf]
  %v2152 = vld [vmem:[%s5 + $0xd4] sm:$0xf]
  %v2153 = vld [vmem:[%s5 + $0xd8] sm:$0xf]
  %v2154 = vld [vmem:[%s5 + $0xdc] sm:$0xf]
  %v2155 = vld [vmem:[%s5 + $0xe0] sm:$0xf]
  %v2156 = vld [vmem:[%s5 + $0xe4] sm:$0xf]
  %v2157 = vld [vmem:[%s5 + $0xe8] sm:$0xf]
  %v2158 = vld [vmem:[%s5 + $0xec] sm:$0xf]
  %v2159 = vld [vmem:[%s5 + $0xf0] sm:$0xf]
  %v2160 = vld [vmem:[%s5 + $0xf4] sm:$0xf]
  %v2161 = vld [vmem:[%s5 + $0xf8] sm:$0xf]
  %v2162 = vld [vmem:[%s5 + $0xfc] sm:$0xf]
  %v2163 = vld [vmem:[%s5 + $0x100] sm:$0xf]
  %v2164 = vld [vmem:[%s5 + $0x104] sm:$0xf]
  %v2165 = vld [vmem:[%s5 + $0x108] sm:$0xf]
  %v2166 = vld [vmem:[%s5 + $0x10c] sm:$0xf]
  %v2167 = vld [vmem:[%s5 + $0x110] sm:$0xf]
  %v2168 = vld [vmem:[%s5 + $0x114] sm:$0xf]
  %v2169 = vld [vmem:[%s5 + $0x118] sm:$0xf]
  %v2170 = vld [vmem:[%s5 + $0x11c] sm:$0xf]
  %v2171 = vld [vmem:[%s5 + $0x120] sm:$0xf]
  %v2172 = vld [vmem:[%s5 + $0x124] sm:$0xf]
  %v2173 = vld [vmem:[%s5 + $0x128] sm:$0xf]
  %v2174 = vld [vmem:[%s5 + $0x12c] sm:$0xf]
  %v2175 = vld [vmem:[%s5 + $0x130] sm:$0xf]
  %v2176 = vld [vmem:[%s5 + $0x134] sm:$0xf]
  %v2177 = vld [vmem:[%s5 + $0x138] sm:$0xf]
  %v2178 = vld [vmem:[%s5 + $0x13c] sm:$0xf]
  %v2179 = vld [vmem:[%s5 + $0x140] sm:$0xf]
  %v2180 = vld [vmem:[%s5 + $0x144] sm:$0xf]
  %v2181 = vld [vmem:[%s5 + $0x148] sm:$0xf]
  %v2182 = vld [vmem:[%s5 + $0x14c] sm:$0xf]
  %v2183 = vld [vmem:[%s5 + $0x150] sm:$0xf]
  %v2184 = vld [vmem:[%s5 + $0x154] sm:$0xf]
  %v2185 = vld [vmem:[%s5 + $0x158] sm:$0xf]
  %v2186 = vld [vmem:[%s5 + $0x15c] sm:$0xf]
  %v2187 = vld [vmem:[%s5 + $0x160] sm:$0xf]
  %v2188 = vld [vmem:[%s5 + $0x164] sm:$0xf]
  %v2189 = vld [vmem:[%s5 + $0x168] sm:$0xf]
  %v2190 = vld [vmem:[%s5 + $0x16c] sm:$0xf]
  %v2191 = vld [vmem:[%s5 + $0x170] sm:$0xf]
  %v2192 = vld [vmem:[%s5 + $0x174] sm:$0xf]
  %v2193 = vld [vmem:[%s5 + $0x178] sm:$0xf]
  %v2194 = vld [vmem:[%s5 + $0x17c] sm:$0xf]
  %v2195 = vld [vmem:[%s5 + $0x180] sm:$0xf]
  %v2196 = vld [vmem:[%s5 + $0x184] sm:$0xf]
  %v2197 = vld [vmem:[%s5 + $0x188] sm:$0xf]
  %v2198 = vld [vmem:[%s5 + $0x18c] sm:$0xf]
  %v2199 = vld [vmem:[%s5 + $0x190] sm:$0xf]
  %v2200 = vld [vmem:[%s5 + $0x194] sm:$0xf]
  %v2201 = vld [vmem:[%s5 + $0x198] sm:$0xf]
  %v2202 = vld [vmem:[%s5 + $0x19c] sm:$0xf]
  %v2203 = vld [vmem:[%s5 + $0x1a0] sm:$0xf]
  %v2204 = vld [vmem:[%s5 + $0x1a4] sm:$0xf]
  %v2205 = vld [vmem:[%s5 + $0x1a8] sm:$0xf]
  %v2206 = vld [vmem:[%s5 + $0x1ac] sm:$0xf]
  %v2207 = vld [vmem:[%s5 + $0x1b0] sm:$0xf]
  %v2208 = vld [vmem:[%s5 + $0x1b4] sm:$0xf]
  %v2209 = vld [vmem:[%s5 + $0x1b8] sm:$0xf]
  %v2210 = vld [vmem:[%s5 + $0x1bc] sm:$0xf]
  %v2211 = vld [vmem:[%s5 + $0x1c0] sm:$0xf]
  %v2212 = vld [vmem:[%s5 + $0x1c4] sm:$0xf]
  %v2213 = vld [vmem:[%s5 + $0x1c8] sm:$0xf]
  %v2214 = vld [vmem:[%s5 + $0x1cc] sm:$0xf]
  %v2215 = vld [vmem:[%s5 + $0x1d0] sm:$0xf]
  %v2216 = vld [vmem:[%s5 + $0x1d4] sm:$0xf]
  %v2217 = vld [vmem:[%s5 + $0x1d8] sm:$0xf]
  %v2218 = vld [vmem:[%s5 + $0x1dc] sm:$0xf]
  %v2219 = vld [vmem:[%s5 + $0x1e0] sm:$0xf]
  %v2220 = vld [vmem:[%s5 + $0x1e4] sm:$0xf]
  %v2221 = vld [vmem:[%s5 + $0x1e8] sm:$0xf]
  %v2222 = vld [vmem:[%s5 + $0x1ec] sm:$0xf]
  %v2223 = vld [vmem:[%s5 + $0x1f0] sm:$0xf]
  %v2224 = vld [vmem:[%s5 + $0x1f4] sm:$0xf]
  %v2225 = vld [vmem:[%s5 + $0x1f8] sm:$0xf]
  %v2226 = vld [vmem:[%s5 + $0x1fc] sm:$0xf]
  %v2227 = vld [vmem:[%s5 + $0x200] sm:$0xf]
  %v2228 = vld [vmem:[%s5 + $0x204] sm:$0xf]
  %v2229 = vld [vmem:[%s5 + $0x208] sm:$0xf]
  %v2230 = vld [vmem:[%s5 + $0x20c] sm:$0xf]
  %v2231 = vld [vmem:[%s5 + $0x210] sm:$0xf]
  %v2232 = vld [vmem:[%s5 + $0x214] sm:$0xf]
  %v2233 = vld [vmem:[%s5 + $0x218] sm:$0xf]
  %v2234 = vld [vmem:[%s5 + $0x21c] sm:$0xf]
  %v2235 = vld [vmem:[%s5 + $0x220] sm:$0xf]
  %v2236 = vld [vmem:[%s5 + $0x224] sm:$0xf]
  %v2237 = vld [vmem:[%s5 + $0x228] sm:$0xf]
  %v2238 = vld [vmem:[%s5 + $0x22c] sm:$0xf]
  %v2239 = vld [vmem:[%s5 + $0x230] sm:$0xf]
  %v2240 = vld [vmem:[%s5 + $0x234] sm:$0xf]
  %v2241 = vld [vmem:[%s5 + $0x238] sm:$0xf]
  %v2242 = vld [vmem:[%s5 + $0x23c] sm:$0xf]
  %v2387 = vunpack.c.l.b16 %v2099
  %v2388 = vunpack.c.l.b16 %v2100
  %v2389 = vunpack.c.l.b16 %v2101
  %v2390 = vunpack.c.l.b16 %v2102
  %v2391 = vunpack.c.l.b16 %v2103
  %v2392 = vunpack.c.l.b16 %v2104
  %v2393 = vunpack.c.l.b16 %v2105
  %v2394 = vunpack.c.l.b16 %v2106
  %v2395 = vunpack.c.l.b16 %v2107
  %v2396 = vunpack.c.l.b16 %v2108
  %v2397 = vunpack.c.l.b16 %v2109
  %v2398 = vunpack.c.l.b16 %v2110
  %v2399 = vunpack.c.l.b16 %v2111
  %v2400 = vunpack.c.l.b16 %v2112
  %v2401 = vunpack.c.l.b16 %v2113
  %v2402 = vunpack.c.l.b16 %v2114
  %v2403 = vunpack.c.l.b16 %v2115
  %v2404 = vunpack.c.l.b16 %v2116
  %v2405 = vunpack.c.l.b16 %v2117
  %v2406 = vunpack.c.l.b16 %v2118
  %v2407 = vunpack.c.l.b16 %v2119
  %v2408 = vunpack.c.l.b16 %v2120
  %v2409 = vunpack.c.l.b16 %v2121
  %v2410 = vunpack.c.l.b16 %v2122
  %v2411 = vunpack.c.l.b16 %v2123
  %v2412 = vunpack.c.l.b16 %v2124
  %v2413 = vunpack.c.l.b16 %v2125
  %v2414 = vunpack.c.l.b16 %v2126
  %v2415 = vunpack.c.l.b16 %v2127
  %v2416 = vunpack.c.l.b16 %v2128
  %v2417 = vunpack.c.l.b16 %v2129
  %v2418 = vunpack.c.l.b16 %v2130
  %v2419 = vunpack.c.l.b16 %v2131
  %v2420 = vunpack.c.l.b16 %v2132
  %v2421 = vunpack.c.l.b16 %v2133
  %v2422 = vunpack.c.l.b16 %v2134
  %v2423 = vunpack.c.l.b16 %v2135
  %v2424 = vunpack.c.l.b16 %v2136
  %v2425 = vunpack.c.l.b16 %v2137
  %v2426 = vunpack.c.l.b16 %v2138
  %v2427 = vunpack.c.l.b16 %v2139
  %v2428 = vunpack.c.l.b16 %v2140
  %v2429 = vunpack.c.l.b16 %v2141
  %v2430 = vunpack.c.l.b16 %v2142
  %v2431 = vunpack.c.l.b16 %v2143
  %v2432 = vunpack.c.l.b16 %v2144
  %v2433 = vunpack.c.l.b16 %v2145
  %v2434 = vunpack.c.l.b16 %v2146
  %v2435 = vunpack.c.l.b16 %v2147
  %v2436 = vunpack.c.l.b16 %v2148
  %v2437 = vunpack.c.l.b16 %v2149
  %v2438 = vunpack.c.l.b16 %v2150
  %v2439 = vunpack.c.l.b16 %v2151
  %v2440 = vunpack.c.l.b16 %v2152
  %v2441 = vunpack.c.l.b16 %v2153
  %v2442 = vunpack.c.l.b16 %v2154
  %v2443 = vunpack.c.l.b16 %v2155
  %v2444 = vunpack.c.l.b16 %v2156
  %v2445 = vunpack.c.l.b16 %v2157
  %v2446 = vunpack.c.l.b16 %v2158
  %v2447 = vunpack.c.l.b16 %v2159
  %v2448 = vunpack.c.l.b16 %v2160
  %v2449 = vunpack.c.l.b16 %v2161
  %v2450 = vunpack.c.l.b16 %v2162
  %v2451 = vunpack.c.l.b16 %v2163
  %v2452 = vunpack.c.l.b16 %v2164
  %v2453 = vunpack.c.l.b16 %v2165
  %v2454 = vunpack.c.l.b16 %v2166
  %v2455 = vunpack.c.l.b16 %v2167
  %v2456 = vunpack.c.l.b16 %v2168
  %v2457 = vunpack.c.l.b16 %v2169
  %v2458 = vunpack.c.l.b16 %v2170
  %v2459 = vunpack.c.l.b16 %v2171
  %v2460 = vunpack.c.l.b16 %v2172
  %v2461 = vunpack.c.l.b16 %v2173
  %v2462 = vunpack.c.l.b16 %v2174
  %v2463 = vunpack.c.l.b16 %v2175
  %v2464 = vunpack.c.l.b16 %v2176
  %v2465 = vunpack.c.l.b16 %v2177
  %v2466 = vunpack.c.l.b16 %v2178
  %v2467 = vunpack.c.l.b16 %v2179
  %v2468 = vunpack.c.l.b16 %v2180
  %v2469 = vunpack.c.l.b16 %v2181
  %v2470 = vunpack.c.l.b16 %v2182
  %v2471 = vunpack.c.l.b16 %v2183
  %v2472 = vunpack.c.l.b16 %v2184
  %v2473 = vunpack.c.l.b16 %v2185
  %v2474 = vunpack.c.l.b16 %v2186
  %v2475 = vunpack.c.l.b16 %v2187
  %v2476 = vunpack.c.l.b16 %v2188
  %v2477 = vunpack.c.l.b16 %v2189
  %v2478 = vunpack.c.l.b16 %v2190
  %v2479 = vunpack.c.l.b16 %v2191
  %v2480 = vunpack.c.l.b16 %v2192
  %v2481 = vunpack.c.l.b16 %v2193
  %v2482 = vunpack.c.l.b16 %v2194
  %v2483 = vunpack.c.l.b16 %v2195
  %v2484 = vunpack.c.l.b16 %v2196
  %v2485 = vunpack.c.l.b16 %v2197
  %v2486 = vunpack.c.l.b16 %v2198
  %v2487 = vunpack.c.l.b16 %v2199
  %v2488 = vunpack.c.l.b16 %v2200
  %v2489 = vunpack.c.l.b16 %v2201
  %v2490 = vunpack.c.l.b16 %v2202
  %v2491 = vunpack.c.l.b16 %v2203
  %v2492 = vunpack.c.l.b16 %v2204
  %v2493 = vunpack.c.l.b16 %v2205
  %v2494 = vunpack.c.l.b16 %v2206
  %v2495 = vunpack.c.l.b16 %v2207
  %v2496 = vunpack.c.l.b16 %v2208
  %v2497 = vunpack.c.l.b16 %v2209
  %v2498 = vunpack.c.l.b16 %v2210
  %v2499 = vunpack.c.l.b16 %v2211
  %v2500 = vunpack.c.l.b16 %v2212
  %v2501 = vunpack.c.l.b16 %v2213
  %v2502 = vunpack.c.l.b16 %v2214
  %v2503 = vunpack.c.l.b16 %v2215
  %v2504 = vunpack.c.l.b16 %v2216
  %v2505 = vunpack.c.l.b16 %v2217
  %v2506 = vunpack.c.l.b16 %v2218
  %v2507 = vunpack.c.l.b16 %v2219
  %v2508 = vunpack.c.l.b16 %v2220
  %v2509 = vunpack.c.l.b16 %v2221
  %v2510 = vunpack.c.l.b16 %v2222
  %v2511 = vunpack.c.l.b16 %v2223
  %v2512 = vunpack.c.l.b16 %v2224
  %v2513 = vunpack.c.l.b16 %v2225
  %v2514 = vunpack.c.l.b16 %v2226
  %v2515 = vunpack.c.l.b16 %v2227
  %v2516 = vunpack.c.l.b16 %v2228
  %v2517 = vunpack.c.l.b16 %v2229
  %v2518 = vunpack.c.l.b16 %v2230
  %v2519 = vunpack.c.l.b16 %v2231
  %v2520 = vunpack.c.l.b16 %v2232
  %v2521 = vunpack.c.l.b16 %v2233
  %v2522 = vunpack.c.l.b16 %v2234
  %v2523 = vunpack.c.l.b16 %v2235
  %v2524 = vunpack.c.l.b16 %v2236
  %v2525 = vunpack.c.l.b16 %v2237
  %v2526 = vunpack.c.l.b16 %v2238
  %v2527 = vunpack.c.l.b16 %v2239
  %v2528 = vunpack.c.l.b16 %v2240
  %v2529 = vunpack.c.l.b16 %v2241
  %v2530 = vunpack.c.l.b16 %v2242
  %v2531 = vpack.c.b16 %v2388, %v2387
  %v2532 = vpack.c.b16 %v2390, %v2389
  %v2533 = vpack.c.b16 %v2392, %v2391
  %v2534 = vpack.c.b16 %v2394, %v2393
  %v2535 = vpack.c.b16 %v2396, %v2395
  %v2536 = vpack.c.b16 %v2398, %v2397
  %v2537 = vpack.c.b16 %v2400, %v2399
  %v2538 = vpack.c.b16 %v2402, %v2401
  %v2539 = vpack.c.b16 %v2404, %v2403
  %v2540 = vpack.c.b16 %v2406, %v2405
  %v2541 = vpack.c.b16 %v2408, %v2407
  %v2542 = vpack.c.b16 %v2410, %v2409
  %v2543 = vpack.c.b16 %v2412, %v2411
  %v2544 = vpack.c.b16 %v2414, %v2413
  %v2545 = vpack.c.b16 %v2416, %v2415
  %v2546 = vpack.c.b16 %v2418, %v2417
  %v2547 = vpack.c.b16 %v2420, %v2419
  %v2548 = vpack.c.b16 %v2422, %v2421
  %v2549 = vpack.c.b16 %v2424, %v2423
  %v2550 = vpack.c.b16 %v2426, %v2425
  %v2551 = vpack.c.b16 %v2428, %v2427
  %v2552 = vpack.c.b16 %v2430, %v2429
  %v2553 = vpack.c.b16 %v2432, %v2431
  %v2554 = vpack.c.b16 %v2434, %v2433
  %v2555 = vpack.c.b16 %v2436, %v2435
  %v2556 = vpack.c.b16 %v2438, %v2437
  %v2557 = vpack.c.b16 %v2440, %v2439
  %v2558 = vpack.c.b16 %v2442, %v2441
  %v2559 = vpack.c.b16 %v2444, %v2443
  %v2560 = vpack.c.b16 %v2446, %v2445
  %v2561 = vpack.c.b16 %v2448, %v2447
  %v2562 = vpack.c.b16 %v2450, %v2449
  %v2563 = vpack.c.b16 %v2452, %v2451
  %v2564 = vpack.c.b16 %v2454, %v2453
  %v2565 = vpack.c.b16 %v2456, %v2455
  %v2566 = vpack.c.b16 %v2458, %v2457
  %v2567 = vpack.c.b16 %v2460, %v2459
  %v2568 = vpack.c.b16 %v2462, %v2461
  %v2569 = vpack.c.b16 %v2464, %v2463
  %v2570 = vpack.c.b16 %v2466, %v2465
  %v2571 = vpack.c.b16 %v2468, %v2467
  %v2572 = vpack.c.b16 %v2470, %v2469
  %v2573 = vpack.c.b16 %v2472, %v2471
  %v2574 = vpack.c.b16 %v2474, %v2473
  %v2575 = vpack.c.b16 %v2476, %v2475
  %v2576 = vpack.c.b16 %v2478, %v2477
  %v2577 = vpack.c.b16 %v2480, %v2479
  %v2578 = vpack.c.b16 %v2482, %v2481
  %v2579 = vpack.c.b16 %v2484, %v2483
  %v2580 = vpack.c.b16 %v2486, %v2485
  %v2581 = vpack.c.b16 %v2488, %v2487
  %v2582 = vpack.c.b16 %v2490, %v2489
  %v2583 = vpack.c.b16 %v2492, %v2491
  %v2584 = vpack.c.b16 %v2494, %v2493
  %v2585 = vpack.c.b16 %v2496, %v2495
  %v2586 = vpack.c.b16 %v2498, %v2497
  %v2587 = vpack.c.b16 %v2500, %v2499
  %v2588 = vpack.c.b16 %v2502, %v2501
  %v2589 = vpack.c.b16 %v2504, %v2503
  %v2590 = vpack.c.b16 %v2506, %v2505
  %v2591 = vpack.c.b16 %v2508, %v2507
  %v2592 = vpack.c.b16 %v2510, %v2509
  %v2593 = vpack.c.b16 %v2512, %v2511
  %v2594 = vpack.c.b16 %v2514, %v2513
  %v2595 = vpack.c.b16 %v2516, %v2515
  %v2596 = vpack.c.b16 %v2518, %v2517
  %v2597 = vpack.c.b16 %v2520, %v2519
  %v2598 = vpack.c.b16 %v2522, %v2521
  %v2599 = vpack.c.b16 %v2524, %v2523
  %v2600 = vpack.c.b16 %v2526, %v2525
  %v2601 = vpack.c.b16 %v2528, %v2527
  %v2602 = vpack.c.b16 %v2530, %v2529
  %2675 = vmatprep.subr.bf16.mxu0 0
  %2676 = vmatpush1.bf16.msra.mxu0 %v2531
  %2677 = vmatprep.subr.bf16.mxu0 0
  %2678 = vmatpush1.bf16.msra.mxu0 %v2532
  %2679 = vmatprep.subr.bf16.mxu0 0
  %2680 = vmatpush1.bf16.msra.mxu0 %v2533
  %2681 = vmatprep.subr.bf16.mxu0 0
  %2682 = vmatpush1.bf16.msra.mxu0 %v2534
  %2683 = vmatprep.subr.bf16.mxu0 0
  %2684 = vmatpush1.bf16.msra.mxu0 %v2535
  %2685 = vmatprep.subr.bf16.mxu0 0
  %2686 = vmatpush1.bf16.msra.mxu0 %v2536
  %2687 = vmatprep.subr.bf16.mxu0 0
  %2688 = vmatpush1.bf16.msra.mxu0 %v2537
  %2689 = vmatprep.subr.bf16.mxu0 0
  %2690 = vmatpush1.bf16.msra.mxu0 %v2538
  %2691 = vmatprep.subr.bf16.mxu0 0
  %2692 = vmatpush1.bf16.msra.mxu0 %v2539
  %2693 = vmatprep.subr.bf16.mxu0 0
  %2694 = vmatpush1.bf16.msra.mxu0 %v2540
  %2695 = vmatprep.subr.bf16.mxu0 0
  %2696 = vmatpush1.bf16.msra.mxu0 %v2541
  %2697 = vmatprep.subr.bf16.mxu0 0
  %2698 = vmatpush1.bf16.msra.mxu0 %v2542
  %2699 = vmatprep.subr.bf16.mxu0 0
  %2700 = vmatpush1.bf16.msra.mxu0 %v2543
  %2701 = vmatprep.subr.bf16.mxu0 0
  %2702 = vmatpush1.bf16.msra.mxu0 %v2544
  %2703 = vmatprep.subr.bf16.mxu0 0
  %2704 = vmatpush1.bf16.msra.mxu0 %v2545
  %2705 = vmatprep.subr.bf16.mxu0 0
  %2706 = vmatpush1.bf16.msra.mxu0 %v2546
  %2707 = vmatprep.mubr.bf16.mxu0 %v1621
  %2708 = vmatmul.mubr.bf16.gmra.mrb[0].mxu0 %v1553
  %v2709 = vpop.f32.mrb[0].mxu0
  %v2710 = vadd.f32 0.0, %v2709
  %v2711 = vpop.f32.mrb[0].mxu0
  %v2712 = vpop.f32.mrb[0].mxu0
  %v2713 = vadd.f32 0.0, %v2712
  %v2714 = vpop.f32.mrb[0].mxu0
  %2715 = vmatprep.mubr.bf16.mxu0 %v1622
  %2716 = vmatmul.mubr.bf16.gmra.mrb[0].mxu0 %v1554
  %v2717 = vpop.f32.mrb[0].mxu0
  %v2718 = vadd.f32 0.0, %v2717
  %v2719 = vpop.f32.mrb[0].mxu0
  %v2720 = vpop.f32.mrb[0].mxu0
  %v2721 = vadd.f32 0.0, %v2720
  %v2722 = vpop.f32.mrb[0].mxu0
  %2723 = vdwg.mxu0
  %2724 = vmatprep.subr.bf16.mxu0 0
  %2725 = vmatpush1.bf16.msra.mxu0 %v2547
  %2726 = vmatprep.subr.bf16.mxu0 0
  %2727 = vmatpush1.bf16.msra.mxu0 %v2548
  %2728 = vmatprep.subr.bf16.mxu0 0
  %2729 = vmatpush1.bf16.msra.mxu0 %v2549
  %2730 = vmatprep.subr.bf16.mxu0 0
  %2731 = vmatpush1.bf16.msra.mxu0 %v2550
  %2732 = vmatprep.subr.bf16.mxu0 0
  %2733 = vmatpush1.bf16.msra.mxu0 %v2551
  %2734 = vmatprep.subr.bf16.mxu0 0
  %2735 = vmatpush1.bf16.msra.mxu0 %v2552
  %2736 = vmatprep.subr.bf16.mxu0 0
  %2737 = vmatpush1.bf16.msra.mxu0 %v2553
  %2738 = vmatprep.subr.bf16.mxu0 0
  %2739 = vmatpush1.bf16.msra.mxu0 %v2554
  %2740 = vmatprep.subr.bf16.mxu0 0
  %2741 = vmatpush1.bf16.msra.mxu0 %v2555
  %2742 = vmatprep.subr.bf16.mxu0 0
  %2743 = vmatpush1.bf16.msra.mxu0 %v2556
  %2744 = vmatprep.subr.bf16.mxu0 0
  %2745 = vmatpush1.bf16.msra.mxu0 %v2557
  %2746 = vmatprep.subr.bf16.mxu0 0
  %2747 = vmatpush1.bf16.msra.mxu0 %v2558
  %2748 = vmatprep.subr.bf16.mxu0 0
  %2749 = vmatpush1.bf16.msra.mxu0 %v2559
  %2750 = vmatprep.subr.bf16.mxu0 0
  %2751 = vmatpush1.bf16.msra.mxu0 %v2560
  %2752 = vmatprep.subr.bf16.mxu0 0
  %2753 = vmatpush1.bf16.msra.mxu0 %v2561
  %2754 = vmatprep.subr.bf16.mxu0 0
  %2755 = vmatpush1.bf16.msra.mxu0 %v2562
  %2756 = vmatprep.mubr.bf16.mxu0 %v1757
  %2757 = vmatmul.mubr.bf16.gmra.mrb[0].mxu0 %v1689
  %v2758 = vpop.f32.mrb[0].mxu0
  %v2759 = vadd.f32 %v2710, %v2758
  %v2760 = vpop.f32.mrb[0].mxu0
  %v2761 = vpop.f32.mrb[0].mxu0
  %v2762 = vadd.f32 %v2713, %v2761
  %v2763 = vpop.f32.mrb[0].mxu0
  %2764 = vmatprep.mubr.bf16.mxu0 %v1758
  %2765 = vmatmul.mubr.bf16.gmra.mrb[0].mxu0 %v1690
  %v2766 = vpop.f32.mrb[0].mxu0
  %v2767 = vadd.f32 %v2718, %v2766
  %v2768 = vpop.f32.mrb[0].mxu0
  %v2769 = vpop.f32.mrb[0].mxu0
  %v2770 = vadd.f32 %v2721, %v2769
  %v2771 = vpop.f32.mrb[0].mxu0
  %2772 = vdwg.mxu0
  %2773 = vmatprep.subr.bf16.mxu0 0
  %2774 = vmatpush1.bf16.msra.mxu0 %v2563
  %2775 = vmatprep.subr.bf16.mxu0 0
  %2776 = vmatpush1.bf16.msra.mxu0 %v2564
  %2777 = vmatprep.subr.bf16.mxu0 0
  %2778 = vmatpush1.bf16.msra.mxu0 %v2565
  %2779 = vmatprep.subr.bf16.mxu0 0
  %2780 = vmatpush1.bf16.msra.mxu0 %v2566
  %2781 = vmatprep.subr.bf16.mxu0 0
  %2782 = vmatpush1.bf16.msra.mxu0 %v2567
  %2783 = vmatprep.subr.bf16.mxu0 0
  %2784 = vmatpush1.bf16.msra.mxu0 %v2568
  %2785 = vmatprep.subr.bf16.mxu0 0
  %2786 = vmatpush1.bf16.msra.mxu0 %v2569
  %2787 = vmatprep.subr.bf16.mxu0 0
  %2788 = vmatpush1.bf16.msra.mxu0 %v2570
  %2789 = vmatprep.subr.bf16.mxu0 0
  %2790 = vmatpush1.bf16.msra.mxu0 %v2571
  %2791 = vmatprep.subr.bf16.mxu0 0
  %2792 = vmatpush1.bf16.msra.mxu0 %v2572
  %2793 = vmatprep.subr.bf16.mxu0 0
  %2794 = vmatpush1.bf16.msra.mxu0 %v2573
  %2795 = vmatprep.subr.bf16.mxu0 0
  %2796 = vmatpush1.bf16.msra.mxu0 %v2574
  %2797 = vmatprep.subr.bf16.mxu0 0
  %2798 = vmatpush1.bf16.msra.mxu0 %v2575
  %2799 = vmatprep.subr.bf16.mxu0 0
  %2800 = vmatpush1.bf16.msra.mxu0 %v2576
  %2801 = vmatprep.subr.bf16.mxu0 0
  %2802 = vmatpush1.bf16.msra.mxu0 %v2577
  %2803 = vmatprep.subr.bf16.mxu0 0
  %2804 = vmatpush1.bf16.msra.mxu0 %v2578
  %2805 = vmatprep.mubr.bf16.mxu0 %v1893
  %2806 = vmatmul.mubr.bf16.gmra.mrb[0].mxu0 %v1825
  %v2807 = vpop.f32.mrb[0].mxu0
  %v2808 = vadd.f32 %v2759, %v2807
  %v2809 = vpop.f32.mrb[0].mxu0
  %v2810 = vpop.f32.mrb[0].mxu0
  %v2811 = vadd.f32 %v2762, %v2810
  %v2812 = vpop.f32.mrb[0].mxu0
  %2813 = vmatprep.mubr.bf16.mxu0 %v1894
  %2814 = vmatmul.mubr.bf16.gmra.mrb[0].mxu0 %v1826
  %v2815 = vpop.f32.mrb[0].mxu0
  %v2816 = vadd.f32 %v2767, %v2815
  %v2817 = vpop.f32.mrb[0].mxu0
  %v2818 = vpop.f32.mrb[0].mxu0
  %v2819 = vadd.f32 %v2770, %v2818
  %v2820 = vpop.f32.mrb[0].mxu0
  %2821 = vdwg.mxu0
  %2822 = vmatprep.subr.bf16.mxu0 0
  %2823 = vmatpush1.bf16.msra.mxu0 %v2579
  %2824 = vmatprep.subr.bf16.mxu0 0
  %2825 = vmatpush1.bf16.msra.mxu0 %v2580
  %2826 = vmatprep.subr.bf16.mxu0 0
  %2827 = vmatpush1.bf16.msra.mxu0 %v2581
  %2828 = vmatprep.subr.bf16.mxu0 0
  %2829 = vmatpush1.bf16.msra.mxu0 %v2582
  %2830 = vmatprep.subr.bf16.mxu0 0
  %2831 = vmatpush1.bf16.msra.mxu0 %v2583
  %2832 = vmatprep.subr.bf16.mxu0 0
  %2833 = vmatpush1.bf16.msra.mxu0 %v2584
  %2834 = vmatprep.subr.bf16.mxu0 0
  %2835 = vmatpush1.bf16.msra.mxu0 %v2585
  %2836 = vmatprep.subr.bf16.mxu0 0
  %2837 = vmatpush1.bf16.msra.mxu0 %v2586
  %2838 = vmatprep.subr.bf16.mxu0 0
  %2839 = vmatpush1.bf16.msra.mxu0 %v2587
  %2840 = vmatprep.subr.bf16.mxu0 0
  %2841 = vmatpush1.bf16.msra.mxu0 %v2588
  %2842 = vmatprep.subr.bf16.mxu0 0
  %2843 = vmatpush1.bf16.msra.mxu0 %v2589
  %2844 = vmatprep.subr.bf16.mxu0 0
  %2845 = vmatpush1.bf16.msra.mxu0 %v2590
  %2846 = vmatprep.subr.bf16.mxu0 0
  %2847 = vmatpush1.bf16.msra.mxu0 %v2591
  %2848 = vmatprep.subr.bf16.mxu0 0
  %2849 = vmatpush1.bf16.msra.mxu0 %v2592
  %2850 = vmatprep.subr.bf16.mxu0 0
  %2851 = vmatpush1.bf16.msra.mxu0 %v2593
  %2852 = vmatprep.subr.bf16.mxu0 0
  %2853 = vmatpush1.bf16.msra.mxu0 %v2594
  %2854 = vmatprep.mubr.bf16.mxu0 %v2029
  %2855 = vmatmul.mubr.bf16.gmra.mrb[0].mxu0 %v1961
  %v2856 = vpop.f32.mrb[0].mxu0
  %v2857 = vadd.f32 %v2808, %v2856
  %v2858 = vpop.f32.mrb[0].mxu0
  %v2859 = vpop.f32.mrb[0].mxu0
  %v2860 = vadd.f32 %v2811, %v2859
  %v2861 = vpop.f32.mrb[0].mxu0
  %2862 = vmatprep.mubr.bf16.mxu0 %v2030
  %2863 = vmatmul.mubr.bf16.gmra.mrb[0].mxu0 %v1962
  %v2864 = vpop.f32.mrb[0].mxu0
  %v2865 = vadd.f32 %v2816, %v2864
  %v2866 = vpop.f32.mrb[0].mxu0
  %v2867 = vpop.f32.mrb[0].mxu0
  %v2868 = vadd.f32 %v2819, %v2867
  %v2869 = vpop.f32.mrb[0].mxu0
  %2870 = vdwg.mxu0
  %2871 = vmatprep.subr.bf16.mxu0 0
  %2872 = vmatpush1.bf16.msra.mxu0 %v2595
  %2873 = vmatprep.subr.bf16.mxu0 0
  %2874 = vmatpush1.bf16.msra.mxu0 %v2596
  %2875 = vmatprep.subr.bf16.mxu0 0
  %2876 = vmatpush1.bf16.msra.mxu0 %v2597
  %2877 = vmatprep.subr.bf16.mxu0 0
  %2878 = vmatpush1.bf16.msra.mxu0 %v2598
  %2879 = vmatprep.subr.bf16.mxu0 0
  %2880 = vmatpush1.bf16.msra.mxu0 %v2599
  %2881 = vmatprep.subr.bf16.mxu0 0
  %2882 = vmatpush1.bf16.msra.mxu0 %v2600
  %2883 = vmatprep.subr.bf16.mxu0 0
  %2884 = vmatpush1.bf16.msra.mxu0 %v2601
  %2885 = vmatprep.subr.bf16.mxu0 0
  %2886 = vmatpush1.bf16.msra.mxu0 %v2602
  %2887 = vmatprep.subr.bf16.mxu0 0
  %2888 = vmatpush1.bf16.msra.mxu0 0
  %2889 = vmatprep.subr.bf16.mxu0 0
  %2890 = vmatpush1.bf16.msra.mxu0 0
  %2891 = vmatprep.subr.bf16.mxu0 0
  %2892 = vmatpush1.bf16.msra.mxu0 0
  %2893 = vmatprep.subr.bf16.mxu0 0
  %2894 = vmatpush1.bf16.msra.mxu0 0
  %2895 = vmatprep.subr.bf16.mxu0 0
  %2896 = vmatpush1.bf16.msra.mxu0 0
  %2897 = vmatprep.subr.bf16.mxu0 0
  %2898 = vmatpush1.bf16.msra.mxu0 0
  %2899 = vmatprep.subr.bf16.mxu0 0
  %2900 = vmatpush1.bf16.msra.mxu0 0
  %2901 = vmatprep.subr.bf16.mxu0 0
  %2902 = vmatpush1.bf16.msra.mxu0 0
  %2903 = vmatprep.mubr.bf16.mxu0 0
  %2904 = vmatmul.mubr.bf16.gmra.mrb[0].mxu0 %v2097
  %v2905 = vpop.f32.mrb[0].mxu0
  %v2906 = vadd.f32 %v2857, %v2905
  %v2907 = vpop.f32.mrb[0].mxu0
  %v2908 = vpop.f32.mrb[0].mxu0
  %v2909 = vadd.f32 %v2860, %v2908
  %v2910 = vpop.f32.mrb[0].mxu0
  %2911 = vmatprep.mubr.bf16.mxu0 0
  %2912 = vmatmul.mubr.bf16.gmra.mrb[0].mxu0 %v2098
  %v2913 = vpop.f32.mrb[0].mxu0
  %v2914 = vadd.f32 %v2865, %v2913
  %v2915 = vpop.f32.mrb[0].mxu0
  %v2916 = vpop.f32.mrb[0].mxu0
  %v2917 = vadd.f32 %v2868, %v2916
  %v2918 = vpop.f32.mrb[0].mxu0
  %2919 = vdwg.mxu0
  %v2920 = vadd.f32 %v2906, %v2909
  %v2921 = vadd.f32 %v2920, %v2914
  %v2922 = vadd.f32 %v2921, %v2917
  %v2923 = vrot.slane %v2922, 4
  %v2924 = vadd.f32 %v2922, %v2923
  %v2925 = vrot.slane %v2924, 2
  %v2926 = vadd.f32 %v2924, %v2925
  %v2927 = vrot.slane %v2926, 1
  %v2928 = vadd.f32 %v2926, %v2927
  %v2929 = vrcp.pop 32.0
  %v2930 = vmul.f32 %v2928, %v2929
  %v2931 = vsub.f32 %v2906, %v2930
  %v2932 = vsub.f32 %v2909, %v2930
  %v2933 = vsub.f32 %v2914, %v2930
  %v2934 = vsub.f32 %v2917, %v2930
  %v2935 = vmul.f32 %v2931, %v2931
  %v2936 = vmul.f32 %v2932, %v2932
  %v2937 = vmul.f32 %v2933, %v2933
  %v2938 = vmul.f32 %v2934, %v2934
  %v2939 = vadd.f32 %v2935, %v2936
  %v2940 = vadd.f32 %v2939, %v2937
  %v2941 = vadd.f32 %v2940, %v2938
  %v2942 = vrot.slane %v2941, 4
  %v2943 = vadd.f32 %v2941, %v2942
  %v2944 = vrot.slane %v2943, 2
  %v2945 = vadd.f32 %v2943, %v2944
  %v2946 = vrot.slane %v2945, 1
  %v2947 = vadd.f32 %v2945, %v2946
  %v2948 = vmul.f32 %v2947, %v2929
  %v2949 = vadd.f32 %v2948, 1e-05
  %v2950 = vrsqrt.pop %v2949
  %v2951 = vld [vmem:[%s6] sm:$0x1]
  %v2952 = vmul.f32 %v2950, %v2951
  %v2953 = vlaneseq
  %v2954 = vshrl.u32 %v2953, 7
  %v2955 = vsub.s32 0, %v2954
  %v2956 = vrot.slane %v2952, %v2955
  %v2957 = vmul.f32 %v2931, %v2956
  %v2958 = vmul.f32 %v2932, %v2956
  %v2959 = vmul.f32 %v2933, %v2956
  %v2960 = vmul.f32 %v2934, %v2956
  %v2961 = vld [vmem:[%s7] sm:$0x1]
  %v2963 = vlaneseq
  %v2964 = vshrl.u32 %v2963, 7
  %v2965 = vsub.s32 0, %v2964
  %v2966 = vrot.slane %v2961, %v2965
  %v2968 = vadd.f32 %v2957, %v2966
  %v2969 = vadd.f32 %v2958, %v2966
  %v2970 = vadd.f32 %v2959, %v2966
  %v2971 = vadd.f32 %v2960, %v2966
  %v2972 = vmax.f32 %v2968, 0.0
  %v2973 = vmax.f32 %v2969, 0.0
  %v2974 = vmax.f32 %v2970, 0.0
  %v2975 = vmax.f32 %v2971, 0.0
  %v2976 = vpack.c.bf16 %v2973, %v2972
  %v2977 = vpack.c.bf16 %v2975, %v2974
  %v2978 = vld [vmem:[%s8] sm:$0xf]
  %vm2979 = vcmask 261120
  %v2981 = vsel %vm2979, %v2978, 0
  %2983 = vmatprep.subr.bf16.mxu0 0
  %2984 = vmatpush1.bf16.msra.mxu0 %v2976
  %2985 = vmatprep.subr.bf16.mxu0 0
  %2986 = vmatpush1.bf16.msra.mxu0 %v2977
  %2987 = vmatprep.subr.bf16.mxu0 0
  %2988 = vmatpush1.bf16.msra.mxu0 0
  %2989 = vmatprep.subr.bf16.mxu0 0
  %2990 = vmatpush1.bf16.msra.mxu0 0
  %2991 = vmatprep.subr.bf16.mxu0 0
  %2992 = vmatpush1.bf16.msra.mxu0 0
  %2993 = vmatprep.subr.bf16.mxu0 0
  %2994 = vmatpush1.bf16.msra.mxu0 0
  %2995 = vmatprep.subr.bf16.mxu0 0
  %2996 = vmatpush1.bf16.msra.mxu0 0
  %2997 = vmatprep.subr.bf16.mxu0 0
  %2998 = vmatpush1.bf16.msra.mxu0 0
  %2999 = vmatprep.subr.bf16.mxu0 0
  %3000 = vmatpush1.bf16.msra.mxu0 0
  %3001 = vmatprep.subr.bf16.mxu0 0
  %3002 = vmatpush1.bf16.msra.mxu0 0
  %3003 = vmatprep.subr.bf16.mxu0 0
  %3004 = vmatpush1.bf16.msra.mxu0 0
  %3005 = vmatprep.subr.bf16.mxu0 0
  %3006 = vmatpush1.bf16.msra.mxu0 0
  %3007 = vmatprep.subr.bf16.mxu0 0
  %3008 = vmatpush1.bf16.msra.mxu0 0
  %3009 = vmatprep.subr.bf16.mxu0 0
  %3010 = vmatpush1.bf16.msra.mxu0 0
  %3011 = vmatprep.subr.bf16.mxu0 0
  %3012 = vmatpush1.bf16.msra.mxu0 0
  %3013 = vmatprep.subr.bf16.mxu0 0
  %3014 = vmatpush1.bf16.msra.mxu0 0
  %3015 = vmatprep.mubr.bf16.mxu0 0
  %3016 = vmatmul.mubr.bf16.gmra.mrb[0].mxu0 %v2981
  %v3017 = vpop.f32.mrb[0].mxu0
  %v3018 = vadd.f32 0.0, %v3017
  %v3019 = vpop.f32.mrb[0].mxu0
  %v3020 = vpop.f32.mrb[0].mxu0
  %v3021 = vpop.f32.mrb[0].mxu0
  %3022 = vdwg.mxu0
  %v3023 = vpack.c.bf16 %v3018, %v3018
  %s3024 = scalar_lea.vmem %s8, 4
  %v3025 = vld [vmem:[%s3024] sm:$0xf]
  %v3027 = vsel %vm2979, %v3025, 0
  %3029 = vmatprep.subr.bf16.mxu0 0
  %3030 = vmatpush1.bf16.msra.mxu0 %v2976
  %3031 = vmatprep.subr.bf16.mxu0 0
  %3032 = vmatpush1.bf16.msra.mxu0 %v2977
  %3033 = vmatprep.subr.bf16.mxu0 0
  %3034 = vmatpush1.bf16.msra.mxu0 0
  %3035 = vmatprep.subr.bf16.mxu0 0
  %3036 = vmatpush1.bf16.msra.mxu0 0
  %3037 = vmatprep.subr.bf16.mxu0 0
  %3038 = vmatpush1.bf16.msra.mxu0 0
  %3039 = vmatprep.subr.bf16.mxu0 0
  %3040 = vmatpush1.bf16.msra.mxu0 0
  %3041 = vmatprep.subr.bf16.mxu0 0
  %3042 = vmatpush1.bf16.msra.mxu0 0
  %3043 = vmatprep.subr.bf16.mxu0 0
  %3044 = vmatpush1.bf16.msra.mxu0 0
  %3045 = vmatprep.subr.bf16.mxu0 0
  %3046 = vmatpush1.bf16.msra.mxu0 0
  %3047 = vmatprep.subr.bf16.mxu0 0
  %3048 = vmatpush1.bf16.msra.mxu0 0
  %3049 = vmatprep.subr.bf16.mxu0 0
  %3050 = vmatpush1.bf16.msra.mxu0 0
  %3051 = vmatprep.subr.bf16.mxu0 0
  %3052 = vmatpush1.bf16.msra.mxu0 0
  %3053 = vmatprep.subr.bf16.mxu0 0
  %3054 = vmatpush1.bf16.msra.mxu0 0
  %3055 = vmatprep.subr.bf16.mxu0 0
  %3056 = vmatpush1.bf16.msra.mxu0 0
  %3057 = vmatprep.subr.bf16.mxu0 0
  %3058 = vmatpush1.bf16.msra.mxu0 0
  %3059 = vmatprep.subr.bf16.mxu0 0
  %3060 = vmatpush1.bf16.msra.mxu0 0
  %3061 = vmatprep.mubr.bf16.mxu0 0
  %3062 = vmatmul.mubr.bf16.gmra.mrb[0].mxu0 %v3027
  %v3063 = vpop.f32.mrb[0].mxu0
  %v3064 = vadd.f32 0.0, %v3063
  %v3065 = vpop.f32.mrb[0].mxu0
  %v3066 = vpop.f32.mrb[0].mxu0
  %v3067 = vpop.f32.mrb[0].mxu0
  %3068 = vdwg.mxu0
  %v3069 = vpack.c.bf16 %v3064, %v3064
  %s3070 = scalar_lea.vmem %s8, 8
  %v3071 = vld [vmem:[%s3070] sm:$0xf]
  %v3073 = vsel %vm2979, %v3071, 0
  %3075 = vmatprep.subr.bf16.mxu0 0
  %3076 = vmatpush1.bf16.msra.mxu0 %v2976
  %3077 = vmatprep.subr.bf16.mxu0 0
  %3078 = vmatpush1.bf16.msra.mxu0 %v2977
  %3079 = vmatprep.subr.bf16.mxu0 0
  %3080 = vmatpush1.bf16.msra.mxu0 0
  %3081 = vmatprep.subr.bf16.mxu0 0
  %3082 = vmatpush1.bf16.msra.mxu0 0
  %3083 = vmatprep.subr.bf16.mxu0 0
  %3084 = vmatpush1.bf16.msra.mxu0 0
  %3085 = vmatprep.subr.bf16.mxu0 0
  %3086 = vmatpush1.bf16.msra.mxu0 0
  %3087 = vmatprep.subr.bf16.mxu0 0
  %3088 = vmatpush1.bf16.msra.mxu0 0
  %3089 = vmatprep.subr.bf16.mxu0 0
  %3090 = vmatpush1.bf16.msra.mxu0 0
  %3091 = vmatprep.subr.bf16.mxu0 0
  %3092 = vmatpush1.bf16.msra.mxu0 0
  %3093 = vmatprep.subr.bf16.mxu0 0
  %3094 = vmatpush1.bf16.msra.mxu0 0
  %3095 = vmatprep.subr.bf16.mxu0 0
  %3096 = vmatpush1.bf16.msra.mxu0 0
  %3097 = vmatprep.subr.bf16.mxu0 0
  %3098 = vmatpush1.bf16.msra.mxu0 0
  %3099 = vmatprep.subr.bf16.mxu0 0
  %3100 = vmatpush1.bf16.msra.mxu0 0
  %3101 = vmatprep.subr.bf16.mxu0 0
  %3102 = vmatpush1.bf16.msra.mxu0 0
  %3103 = vmatprep.subr.bf16.mxu0 0
  %3104 = vmatpush1.bf16.msra.mxu0 0
  %3105 = vmatprep.subr.bf16.mxu0 0
  %3106 = vmatpush1.bf16.msra.mxu0 0
  %3107 = vmatprep.mubr.bf16.mxu0 0
  %3108 = vmatmul.mubr.bf16.gmra.mrb[0].mxu0 %v3073
  %v3109 = vpop.f32.mrb[0].mxu0
  %v3110 = vadd.f32 0.0, %v3109
  %v3111 = vpop.f32.mrb[0].mxu0
  %v3112 = vpop.f32.mrb[0].mxu0
  %v3113 = vpop.f32.mrb[0].mxu0
  %3114 = vdwg.mxu0
  %v3115 = vpack.c.bf16 %v3110, %v3110
  %s3116 = scalar_lea.vmem %s8, 12
  %v3117 = vld [vmem:[%s3116] sm:$0xf]
  %v3119 = vsel %vm2979, %v3117, 0
  %3121 = vmatprep.subr.bf16.mxu0 0
  %3122 = vmatpush1.bf16.msra.mxu0 %v2976
  %3123 = vmatprep.subr.bf16.mxu0 0
  %3124 = vmatpush1.bf16.msra.mxu0 %v2977
  %3125 = vmatprep.subr.bf16.mxu0 0
  %3126 = vmatpush1.bf16.msra.mxu0 0
  %3127 = vmatprep.subr.bf16.mxu0 0
  %3128 = vmatpush1.bf16.msra.mxu0 0
  %3129 = vmatprep.subr.bf16.mxu0 0
  %3130 = vmatpush1.bf16.msra.mxu0 0
  %3131 = vmatprep.subr.bf16.mxu0 0
  %3132 = vmatpush1.bf16.msra.mxu0 0
  %3133 = vmatprep.subr.bf16.mxu0 0
  %3134 = vmatpush1.bf16.msra.mxu0 0
  %3135 = vmatprep.subr.bf16.mxu0 0
  %3136 = vmatpush1.bf16.msra.mxu0 0
  %3137 = vmatprep.subr.bf16.mxu0 0
  %3138 = vmatpush1.bf16.msra.mxu0 0
  %3139 = vmatprep.subr.bf16.mxu0 0
  %3140 = vmatpush1.bf16.msra.mxu0 0
  %3141 = vmatprep.subr.bf16.mxu0 0
  %3142 = vmatpush1.bf16.msra.mxu0 0
  %3143 = vmatprep.subr.bf16.mxu0 0
  %3144 = vmatpush1.bf16.msra.mxu0 0
  %3145 = vmatprep.subr.bf16.mxu0 0
  %3146 = vmatpush1.bf16.msra.mxu0 0
  %3147 = vmatprep.subr.bf16.mxu0 0
  %3148 = vmatpush1.bf16.msra.mxu0 0
  %3149 = vmatprep.subr.bf16.mxu0 0
  %3150 = vmatpush1.bf16.msra.mxu0 0
  %3151 = vmatprep.subr.bf16.mxu0 0
  %3152 = vmatpush1.bf16.msra.mxu0 0
  %3153 = vmatprep.mubr.bf16.mxu0 0
  %3154 = vmatmul.mubr.bf16.gmra.mrb[0].mxu0 %v3119
  %v3155 = vpop.f32.mrb[0].mxu0
  %v3156 = vadd.f32 0.0, %v3155
  %v3157 = vpop.f32.mrb[0].mxu0
  %v3158 = vpop.f32.mrb[0].mxu0
  %v3159 = vpop.f32.mrb[0].mxu0
  %3160 = vdwg.mxu0
  %v3161 = vpack.c.bf16 %v3156, %v3156
  %s3162 = scalar_lea.vmem %s8, 16
  %v3163 = vld [vmem:[%s3162] sm:$0xf]
  %v3165 = vsel %vm2979, %v3163, 0
  %3167 = vmatprep.subr.bf16.mxu0 0
  %3168 = vmatpush1.bf16.msra.mxu0 %v2976
  %3169 = vmatprep.subr.bf16.mxu0 0
  %3170 = vmatpush1.bf16.msra.mxu0 %v2977
  %3171 = vmatprep.subr.bf16.mxu0 0
  %3172 = vmatpush1.bf16.msra.mxu0 0
  %3173 = vmatprep.subr.bf16.mxu0 0
  %3174 = vmatpush1.bf16.msra.mxu0 0
  %3175 = vmatprep.subr.bf16.mxu0 0
  %3176 = vmatpush1.bf16.msra.mxu0 0
  %3177 = vmatprep.subr.bf16.mxu0 0
  %3178 = vmatpush1.bf16.msra.mxu0 0
  %3179 = vmatprep.subr.bf16.mxu0 0
  %3180 = vmatpush1.bf16.msra.mxu0 0
  %3181 = vmatprep.subr.bf16.mxu0 0
  %3182 = vmatpush1.bf16.msra.mxu0 0
  %3183 = vmatprep.subr.bf16.mxu0 0
  %3184 = vmatpush1.bf16.msra.mxu0 0
  %3185 = vmatprep.subr.bf16.mxu0 0
  %3186 = vmatpush1.bf16.msra.mxu0 0
  %3187 = vmatprep.subr.bf16.mxu0 0
  %3188 = vmatpush1.bf16.msra.mxu0 0
  %3189 = vmatprep.subr.bf16.mxu0 0
  %3190 = vmatpush1.bf16.msra.mxu0 0
  %3191 = vmatprep.subr.bf16.mxu0 0
  %3192 = vmatpush1.bf16.msra.mxu0 0
  %3193 = vmatprep.subr.bf16.mxu0 0
  %3194 = vmatpush1.bf16.msra.mxu0 0
  %3195 = vmatprep.subr.bf16.mxu0 0
  %3196 = vmatpush1.bf16.msra.mxu0 0
  %3197 = vmatprep.subr.bf16.mxu0 0
  %3198 = vmatpush1.bf16.msra.mxu0 0
  %3199 = vmatprep.mubr.bf16.mxu0 0
  %3200 = vmatmul.mubr.bf16.gmra.mrb[0].mxu0 %v3165
  %v3201 = vpop.f32.mrb[0].mxu0
  %v3202 = vadd.f32 0.0, %v3201
  %v3203 = vpop.f32.mrb[0].mxu0
  %v3204 = vpop.f32.mrb[0].mxu0
  %v3205 = vpop.f32.mrb[0].mxu0
  %3206 = vdwg.mxu0
  %v3207 = vpack.c.bf16 %v3202, %v3202
  %s3208 = scalar_lea.vmem %s8, 20
  %v3209 = vld [vmem:[%s3208] sm:$0xf]
  %v3211 = vsel %vm2979, %v3209, 0
  %3213 = vmatprep.subr.bf16.mxu0 0
  %3214 = vmatpush1.bf16.msra.mxu0 %v2976
  %3215 = vmatprep.subr.bf16.mxu0 0
  %3216 = vmatpush1.bf16.msra.mxu0 %v2977
  %3217 = vmatprep.subr.bf16.mxu0 0
  %3218 = vmatpush1.bf16.msra.mxu0 0
  %3219 = vmatprep.subr.bf16.mxu0 0
  %3220 = vmatpush1.bf16.msra.mxu0 0
  %3221 = vmatprep.subr.bf16.mxu0 0
  %3222 = vmatpush1.bf16.msra.mxu0 0
  %3223 = vmatprep.subr.bf16.mxu0 0
  %3224 = vmatpush1.bf16.msra.mxu0 0
  %3225 = vmatprep.subr.bf16.mxu0 0
  %3226 = vmatpush1.bf16.msra.mxu0 0
  %3227 = vmatprep.subr.bf16.mxu0 0
  %3228 = vmatpush1.bf16.msra.mxu0 0
  %3229 = vmatprep.subr.bf16.mxu0 0
  %3230 = vmatpush1.bf16.msra.mxu0 0
  %3231 = vmatprep.subr.bf16.mxu0 0
  %3232 = vmatpush1.bf16.msra.mxu0 0
  %3233 = vmatprep.subr.bf16.mxu0 0
  %3234 = vmatpush1.bf16.msra.mxu0 0
  %3235 = vmatprep.subr.bf16.mxu0 0
  %3236 = vmatpush1.bf16.msra.mxu0 0
  %3237 = vmatprep.subr.bf16.mxu0 0
  %3238 = vmatpush1.bf16.msra.mxu0 0
  %3239 = vmatprep.subr.bf16.mxu0 0
  %3240 = vmatpush1.bf16.msra.mxu0 0
  %3241 = vmatprep.subr.bf16.mxu0 0
  %3242 = vmatpush1.bf16.msra.mxu0 0
  %3243 = vmatprep.subr.bf16.mxu0 0
  %3244 = vmatpush1.bf16.msra.mxu0 0
  %3245 = vmatprep.mubr.bf16.mxu0 0
  %3246 = vmatmul.mubr.bf16.gmra.mrb[0].mxu0 %v3211
  %v3247 = vpop.f32.mrb[0].mxu0
  %v3248 = vadd.f32 0.0, %v3247
  %v3249 = vpop.f32.mrb[0].mxu0
  %v3250 = vpop.f32.mrb[0].mxu0
  %v3251 = vpop.f32.mrb[0].mxu0
  %3252 = vdwg.mxu0
  %v3253 = vpack.c.bf16 %v3248, %v3248
  %s3254 = scalar_lea.vmem %s8, 24
  %v3255 = vld [vmem:[%s3254] sm:$0xf]
  %v3257 = vsel %vm2979, %v3255, 0
  %3259 = vmatprep.subr.bf16.mxu0 0
  %3260 = vmatpush1.bf16.msra.mxu0 %v2976
  %3261 = vmatprep.subr.bf16.mxu0 0
  %3262 = vmatpush1.bf16.msra.mxu0 %v2977
  %3263 = vmatprep.subr.bf16.mxu0 0
  %3264 = vmatpush1.bf16.msra.mxu0 0
  %3265 = vmatprep.subr.bf16.mxu0 0
  %3266 = vmatpush1.bf16.msra.mxu0 0
  %3267 = vmatprep.subr.bf16.mxu0 0
  %3268 = vmatpush1.bf16.msra.mxu0 0
  %3269 = vmatprep.subr.bf16.mxu0 0
  %3270 = vmatpush1.bf16.msra.mxu0 0
  %3271 = vmatprep.subr.bf16.mxu0 0
  %3272 = vmatpush1.bf16.msra.mxu0 0
  %3273 = vmatprep.subr.bf16.mxu0 0
  %3274 = vmatpush1.bf16.msra.mxu0 0
  %3275 = vmatprep.subr.bf16.mxu0 0
  %3276 = vmatpush1.bf16.msra.mxu0 0
  %3277 = vmatprep.subr.bf16.mxu0 0
  %3278 = vmatpush1.bf16.msra.mxu0 0
  %3279 = vmatprep.subr.bf16.mxu0 0
  %3280 = vmatpush1.bf16.msra.mxu0 0
  %3281 = vmatprep.subr.bf16.mxu0 0
  %3282 = vmatpush1.bf16.msra.mxu0 0
  %3283 = vmatprep.subr.bf16.mxu0 0
  %3284 = vmatpush1.bf16.msra.mxu0 0
  %3285 = vmatprep.subr.bf16.mxu0 0
  %3286 = vmatpush1.bf16.msra.mxu0 0
  %3287 = vmatprep.subr.bf16.mxu0 0
  %3288 = vmatpush1.bf16.msra.mxu0 0
  %3289 = vmatprep.subr.bf16.mxu0 0
  %3290 = vmatpush1.bf16.msra.mxu0 0
  %3291 = vmatprep.mubr.bf16.mxu0 0
  %3292 = vmatmul.mubr.bf16.gmra.mrb[0].mxu0 %v3257
  %v3293 = vpop.f32.mrb[0].mxu0
  %v3294 = vadd.f32 0.0, %v3293
  %v3295 = vpop.f32.mrb[0].mxu0
  %v3296 = vpop.f32.mrb[0].mxu0
  %v3297 = vpop.f32.mrb[0].mxu0
  %3298 = vdwg.mxu0
  %v3299 = vpack.c.bf16 %v3294, %v3294
  %s3300 = scalar_lea.vmem %s8, 28
  %v3301 = vld [vmem:[%s3300] sm:$0xf]
  %v3303 = vsel %vm2979, %v3301, 0
  %3305 = vmatprep.subr.bf16.mxu0 0
  %3306 = vmatpush1.bf16.msra.mxu0 %v2976
  %3307 = vmatprep.subr.bf16.mxu0 0
  %3308 = vmatpush1.bf16.msra.mxu0 %v2977
  %3309 = vmatprep.subr.bf16.mxu0 0
  %3310 = vmatpush1.bf16.msra.mxu0 0
  %3311 = vmatprep.subr.bf16.mxu0 0
  %3312 = vmatpush1.bf16.msra.mxu0 0
  %3313 = vmatprep.subr.bf16.mxu0 0
  %3314 = vmatpush1.bf16.msra.mxu0 0
  %3315 = vmatprep.subr.bf16.mxu0 0
  %3316 = vmatpush1.bf16.msra.mxu0 0
  %3317 = vmatprep.subr.bf16.mxu0 0
  %3318 = vmatpush1.bf16.msra.mxu0 0
  %3319 = vmatprep.subr.bf16.mxu0 0
  %3320 = vmatpush1.bf16.msra.mxu0 0
  %3321 = vmatprep.subr.bf16.mxu0 0
  %3322 = vmatpush1.bf16.msra.mxu0 0
  %3323 = vmatprep.subr.bf16.mxu0 0
  %3324 = vmatpush1.bf16.msra.mxu0 0
  %3325 = vmatprep.subr.bf16.mxu0 0
  %3326 = vmatpush1.bf16.msra.mxu0 0
  %3327 = vmatprep.subr.bf16.mxu0 0
  %3328 = vmatpush1.bf16.msra.mxu0 0
  %3329 = vmatprep.subr.bf16.mxu0 0
  %3330 = vmatpush1.bf16.msra.mxu0 0
  %3331 = vmatprep.subr.bf16.mxu0 0
  %3332 = vmatpush1.bf16.msra.mxu0 0
  %3333 = vmatprep.subr.bf16.mxu0 0
  %3334 = vmatpush1.bf16.msra.mxu0 0
  %3335 = vmatprep.subr.bf16.mxu0 0
  %3336 = vmatpush1.bf16.msra.mxu0 0
  %3337 = vmatprep.mubr.bf16.mxu0 0
  %3338 = vmatmul.mubr.bf16.gmra.mrb[0].mxu0 %v3303
  %v3339 = vpop.f32.mrb[0].mxu0
  %v3340 = vadd.f32 0.0, %v3339
  %v3341 = vpop.f32.mrb[0].mxu0
  %v3342 = vpop.f32.mrb[0].mxu0
  %v3343 = vpop.f32.mrb[0].mxu0
  %3344 = vdwg.mxu0
  %v3345 = vpack.c.bf16 %v3340, %v3340
  %s3346 = scalar_lea.vmem %s8, 32
  %v3347 = vld [vmem:[%s3346] sm:$0xf]
  %v3349 = vsel %vm2979, %v3347, 0
  %3351 = vmatprep.subr.bf16.mxu0 0
  %3352 = vmatpush1.bf16.msra.mxu0 %v2976
  %3353 = vmatprep.subr.bf16.mxu0 0
  %3354 = vmatpush1.bf16.msra.mxu0 %v2977
  %3355 = vmatprep.subr.bf16.mxu0 0
  %3356 = vmatpush1.bf16.msra.mxu0 0
  %3357 = vmatprep.subr.bf16.mxu0 0
  %3358 = vmatpush1.bf16.msra.mxu0 0
  %3359 = vmatprep.subr.bf16.mxu0 0
  %3360 = vmatpush1.bf16.msra.mxu0 0
  %3361 = vmatprep.subr.bf16.mxu0 0
  %3362 = vmatpush1.bf16.msra.mxu0 0
  %3363 = vmatprep.subr.bf16.mxu0 0
  %3364 = vmatpush1.bf16.msra.mxu0 0
  %3365 = vmatprep.subr.bf16.mxu0 0
  %3366 = vmatpush1.bf16.msra.mxu0 0
  %3367 = vmatprep.subr.bf16.mxu0 0
  %3368 = vmatpush1.bf16.msra.mxu0 0
  %3369 = vmatprep.subr.bf16.mxu0 0
  %3370 = vmatpush1.bf16.msra.mxu0 0
  %3371 = vmatprep.subr.bf16.mxu0 0
  %3372 = vmatpush1.bf16.msra.mxu0 0
  %3373 = vmatprep.subr.bf16.mxu0 0
  %3374 = vmatpush1.bf16.msra.mxu0 0
  %3375 = vmatprep.subr.bf16.mxu0 0
  %3376 = vmatpush1.bf16.msra.mxu0 0
  %3377 = vmatprep.subr.bf16.mxu0 0
  %3378 = vmatpush1.bf16.msra.mxu0 0
  %3379 = vmatprep.subr.bf16.mxu0 0
  %3380 = vmatpush1.bf16.msra.mxu0 0
  %3381 = vmatprep.subr.bf16.mxu0 0
  %3382 = vmatpush1.bf16.msra.mxu0 0
  %3383 = vmatprep.mubr.bf16.mxu0 0
  %3384 = vmatmul.mubr.bf16.gmra.mrb[0].mxu0 %v3349
  %v3385 = vpop.f32.mrb[0].mxu0
  %v3386 = vadd.f32 0.0, %v3385
  %v3387 = vpop.f32.mrb[0].mxu0
  %v3388 = vpop.f32.mrb[0].mxu0
  %v3389 = vpop.f32.mrb[0].mxu0
  %3390 = vdwg.mxu0
  %v3391 = vpack.c.bf16 %v3386, %v3386
  %v3392 = vld [vmem:[%s9] sm:$0xff]
  %v3393 = vld [vmem:[%s9 + $0x8] sm:$0xff]
  %v3394 = vld [vmem:[%s9 + $0x10] sm:$0xff]
  %v3395 = vld [vmem:[%s9 + $0x18] sm:$0xff]
  %v3396 = vld [vmem:[%s9 + $0x20] sm:$0xff]
  %v3397 = vld [vmem:[%s9 + $0x28] sm:$0xff]
  %v3398 = vld [vmem:[%s9 + $0x30] sm:$0xff]
  %v3399 = vld [vmem:[%s9 + $0x38] sm:$0xff]
  %v3400 = vld [vmem:[%s9 + $0x40] sm:$0xff]
  %v3401 = vld [vmem:[%s9 + $0x48] sm:$0xff]
  %v3402 = vld [vmem:[%s9 + $0x50] sm:$0xff]
  %v3403 = vld [vmem:[%s9 + $0x58] sm:$0xff]
  %v3404 = vld [vmem:[%s9 + $0x60] sm:$0xff]
  %v3405 = vld [vmem:[%s9 + $0x68] sm:$0xff]
  %v3406 = vld [vmem:[%s9 + $0x70] sm:$0xff]
  %v3407 = vld [vmem:[%s9 + $0x78] sm:$0xff]
  %v3408 = vld [vmem:[%s9 + $0x80] sm:$0xff]
  %v3409 = vld [vmem:[%s9 + $0x88] sm:$0xff]
  %v3410 = vld [vmem:[%s9 + $0x90] sm:$0xff]
  %v3411 = vld [vmem:[%s9 + $0x98] sm:$0xff]
  %v3412 = vld [vmem:[%s9 + $0xa0] sm:$0xff]
  %v3413 = vld [vmem:[%s9 + $0xa8] sm:$0xff]
  %v3414 = vld [vmem:[%s9 + $0xb0] sm:$0xff]
  %v3415 = vld [vmem:[%s9 + $0xb8] sm:$0xff]
  %v3416 = vld [vmem:[%s9 + $0xc0] sm:$0xff]
  %v3417 = vld [vmem:[%s9 + $0xc8] sm:$0xff]
  %v3418 = vld [vmem:[%s9 + $0xd0] sm:$0xff]
  %v3419 = vld [vmem:[%s9 + $0xd8] sm:$0xff]
  %v3420 = vld [vmem:[%s9 + $0xe0] sm:$0xff]
  %v3421 = vld [vmem:[%s9 + $0xe8] sm:$0xff]
  %v3422 = vld [vmem:[%s9 + $0xf0] sm:$0xff]
  %v3423 = vld [vmem:[%s9 + $0xf8] sm:$0xff]
  %v3424 = vld [vmem:[%s9 + $0x100] sm:$0xff]
  %v3425 = vld [vmem:[%s9 + $0x108] sm:$0xff]
  %v3426 = vld [vmem:[%s9 + $0x110] sm:$0xff]
  %v3427 = vld [vmem:[%s9 + $0x118] sm:$0xff]
  %v3428 = vld [vmem:[%s9 + $0x120] sm:$0xff]
  %v3429 = vld [vmem:[%s9 + $0x128] sm:$0xff]
  %v3430 = vld [vmem:[%s9 + $0x130] sm:$0xff]
  %v3431 = vld [vmem:[%s9 + $0x138] sm:$0xff]
  %v3432 = vld [vmem:[%s9 + $0x140] sm:$0xff]
  %v3433 = vld [vmem:[%s9 + $0x148] sm:$0xff]
  %v3434 = vld [vmem:[%s9 + $0x150] sm:$0xff]
  %v3435 = vld [vmem:[%s9 + $0x158] sm:$0xff]
  %v3436 = vld [vmem:[%s9 + $0x160] sm:$0xff]
  %v3437 = vld [vmem:[%s9 + $0x168] sm:$0xff]
  %v3438 = vld [vmem:[%s9 + $0x170] sm:$0xff]
  %v3439 = vld [vmem:[%s9 + $0x178] sm:$0xff]
  %v3440 = vld [vmem:[%s9 + $0x180] sm:$0xff]
  %v3441 = vld [vmem:[%s9 + $0x188] sm:$0xff]
  %v3442 = vld [vmem:[%s9 + $0x190] sm:$0xff]
  %v3443 = vld [vmem:[%s9 + $0x198] sm:$0xff]
  %v3444 = vld [vmem:[%s9 + $0x1a0] sm:$0xff]
  %v3445 = vld [vmem:[%s9 + $0x1a8] sm:$0xff]
  %v3446 = vld [vmem:[%s9 + $0x1b0] sm:$0xff]
  %v3447 = vld [vmem:[%s9 + $0x1b8] sm:$0xff]
  %v3448 = vld [vmem:[%s9 + $0x1c0] sm:$0xff]
  %v3449 = vld [vmem:[%s9 + $0x1c8] sm:$0xff]
  %v3450 = vld [vmem:[%s9 + $0x1d0] sm:$0xff]
  %v3451 = vld [vmem:[%s9 + $0x1d8] sm:$0xff]
  %v3452 = vld [vmem:[%s9 + $0x1e0] sm:$0xff]
  %v3453 = vld [vmem:[%s9 + $0x1e8] sm:$0xff]
  %v3454 = vld [vmem:[%s9 + $0x1f0] sm:$0xff]
  %v3455 = vld [vmem:[%s9 + $0x1f8] sm:$0xff]
  %v3456 = vld [vmem:[%s9 + $0x200] sm:$0xff]
  %v3457 = vld [vmem:[%s9 + $0x208] sm:$0xff]
  %v3458 = vld [vmem:[%s9 + $0x210] sm:$0xff]
  %v3459 = vld [vmem:[%s9 + $0x218] sm:$0xff]
  %v3460 = vld [vmem:[%s9 + $0x220] sm:$0xff]
  %v3461 = vld [vmem:[%s9 + $0x228] sm:$0xff]
  %v3462 = vld [vmem:[%s9 + $0x230] sm:$0xff]
  %v3463 = vld [vmem:[%s9 + $0x238] sm:$0xff]
  %v3464 = vld [vmem:[%s9 + $0x240] sm:$0xff]
  %v3465 = vld [vmem:[%s9 + $0x248] sm:$0xff]
  %v3466 = vld [vmem:[%s9 + $0x250] sm:$0xff]
  %v3467 = vld [vmem:[%s9 + $0x258] sm:$0xff]
  %v3468 = vld [vmem:[%s9 + $0x260] sm:$0xff]
  %v3469 = vld [vmem:[%s9 + $0x268] sm:$0xff]
  %v3470 = vld [vmem:[%s9 + $0x270] sm:$0xff]
  %v3471 = vld [vmem:[%s9 + $0x278] sm:$0xff]
  %v3472 = vld [vmem:[%s9 + $0x280] sm:$0xff]
  %v3473 = vld [vmem:[%s9 + $0x288] sm:$0xff]
  %v3474 = vld [vmem:[%s9 + $0x290] sm:$0xff]
  %v3475 = vld [vmem:[%s9 + $0x298] sm:$0xff]
  %v3476 = vld [vmem:[%s9 + $0x2a0] sm:$0xff]
  %v3477 = vld [vmem:[%s9 + $0x2a8] sm:$0xff]
  %v3478 = vld [vmem:[%s9 + $0x2b0] sm:$0xff]
  %v3479 = vld [vmem:[%s9 + $0x2b8] sm:$0xff]
  %v3480 = vld [vmem:[%s9 + $0x2c0] sm:$0xff]
  %v3481 = vld [vmem:[%s9 + $0x2c8] sm:$0xff]
  %v3482 = vld [vmem:[%s9 + $0x2d0] sm:$0xff]
  %v3483 = vld [vmem:[%s9 + $0x2d8] sm:$0xff]
  %v3484 = vld [vmem:[%s9 + $0x2e0] sm:$0xff]
  %v3485 = vld [vmem:[%s9 + $0x2e8] sm:$0xff]
  %v3486 = vld [vmem:[%s9 + $0x2f0] sm:$0xff]
  %v3487 = vld [vmem:[%s9 + $0x2f8] sm:$0xff]
  %v3488 = vld [vmem:[%s9 + $0x300] sm:$0xff]
  %v3489 = vld [vmem:[%s9 + $0x308] sm:$0xff]
  %v3490 = vld [vmem:[%s9 + $0x310] sm:$0xff]
  %v3491 = vld [vmem:[%s9 + $0x318] sm:$0xff]
  %v3492 = vld [vmem:[%s9 + $0x320] sm:$0xff]
  %v3493 = vld [vmem:[%s9 + $0x328] sm:$0xff]
  %v3494 = vld [vmem:[%s9 + $0x330] sm:$0xff]
  %v3495 = vld [vmem:[%s9 + $0x338] sm:$0xff]
  %v3496 = vld [vmem:[%s9 + $0x340] sm:$0xff]
  %v3497 = vld [vmem:[%s9 + $0x348] sm:$0xff]
  %v3498 = vld [vmem:[%s9 + $0x350] sm:$0xff]
  %v3499 = vld [vmem:[%s9 + $0x358] sm:$0xff]
  %v3500 = vld [vmem:[%s9 + $0x360] sm:$0xff]
  %v3501 = vld [vmem:[%s9 + $0x368] sm:$0xff]
  %v3502 = vld [vmem:[%s9 + $0x370] sm:$0xff]
  %v3503 = vld [vmem:[%s9 + $0x378] sm:$0xff]
  %v3504 = vld [vmem:[%s9 + $0x380] sm:$0xff]
  %v3505 = vld [vmem:[%s9 + $0x388] sm:$0xff]
  %v3506 = vld [vmem:[%s9 + $0x390] sm:$0xff]
  %v3507 = vld [vmem:[%s9 + $0x398] sm:$0xff]
  %v3508 = vld [vmem:[%s9 + $0x3a0] sm:$0xff]
  %v3509 = vld [vmem:[%s9 + $0x3a8] sm:$0xff]
  %v3510 = vld [vmem:[%s9 + $0x3b0] sm:$0xff]
  %v3511 = vld [vmem:[%s9 + $0x3b8] sm:$0xff]
  %v3512 = vld [vmem:[%s9 + $0x3c0] sm:$0xff]
  %v3513 = vld [vmem:[%s9 + $0x3c8] sm:$0xff]
  %v3514 = vld [vmem:[%s9 + $0x3d0] sm:$0xff]
  %v3515 = vld [vmem:[%s9 + $0x3d8] sm:$0xff]
  %v3516 = vld [vmem:[%s9 + $0x3e0] sm:$0xff]
  %v3517 = vld [vmem:[%s9 + $0x3e8] sm:$0xff]
  %v3518 = vld [vmem:[%s9 + $0x3f0] sm:$0xff]
  %v3519 = vld [vmem:[%s9 + $0x3f8] sm:$0xff]
  %v3520 = vld [vmem:[%s9 + $0x400] sm:$0xff]
  %v3521 = vld [vmem:[%s9 + $0x408] sm:$0xff]
  %v3522 = vld [vmem:[%s9 + $0x410] sm:$0xff]
  %v3523 = vld [vmem:[%s9 + $0x418] sm:$0xff]
  %v3524 = vld [vmem:[%s9 + $0x420] sm:$0xff]
  %v3525 = vld [vmem:[%s9 + $0x428] sm:$0xff]
  %v3526 = vld [vmem:[%s9 + $0x430] sm:$0xff]
  %v3527 = vld [vmem:[%s9 + $0x438] sm:$0xff]
  %v3528 = vld [vmem:[%s9 + $0x440] sm:$0xff]
  %v3529 = vld [vmem:[%s9 + $0x448] sm:$0xff]
  %v3530 = vld [vmem:[%s9 + $0x450] sm:$0xff]
  %v3531 = vld [vmem:[%s9 + $0x458] sm:$0xff]
  %v3532 = vld [vmem:[%s9 + $0x460] sm:$0xff]
  %v3533 = vld [vmem:[%s9 + $0x468] sm:$0xff]
  %v3534 = vld [vmem:[%s9 + $0x470] sm:$0xff]
  %v3535 = vld [vmem:[%s9 + $0x478] sm:$0xff]
  %v3680 = vunpack.c.l.b16 %v3392
  %v3681 = vunpack.c.h.b16 %v3392
  %v3682 = vunpack.c.l.b16 %v3393
  %v3683 = vunpack.c.h.b16 %v3393
  %v3684 = vunpack.c.l.b16 %v3394
  %v3685 = vunpack.c.h.b16 %v3394
  %v3686 = vunpack.c.l.b16 %v3395
  %v3687 = vunpack.c.h.b16 %v3395
  %v3688 = vunpack.c.l.b16 %v3396
  %v3689 = vunpack.c.h.b16 %v3396
  %v3690 = vunpack.c.l.b16 %v3397
  %v3691 = vunpack.c.h.b16 %v3397
  %v3692 = vunpack.c.l.b16 %v3398
  %v3693 = vunpack.c.h.b16 %v3398
  %v3694 = vunpack.c.l.b16 %v3399
  %v3695 = vunpack.c.h.b16 %v3399
  %v3696 = vunpack.c.l.b16 %v3400
  %v3697 = vunpack.c.h.b16 %v3400
  %v3698 = vunpack.c.l.b16 %v3401
  %v3699 = vunpack.c.h.b16 %v3401
  %v3700 = vunpack.c.l.b16 %v3402
  %v3701 = vunpack.c.h.b16 %v3402
  %v3702 = vunpack.c.l.b16 %v3403
  %v3703 = vunpack.c.h.b16 %v3403
  %v3704 = vunpack.c.l.b16 %v3404
  %v3705 = vunpack.c.h.b16 %v3404
  %v3706 = vunpack.c.l.b16 %v3405
  %v3707 = vunpack.c.h.b16 %v3405
  %v3708 = vunpack.c.l.b16 %v3406
  %v3709 = vunpack.c.h.b16 %v3406
  %v3710 = vunpack.c.l.b16 %v3407
  %v3711 = vunpack.c.h.b16 %v3407
  %v3712 = vunpack.c.l.b16 %v3408
  %v3713 = vunpack.c.h.b16 %v3408
  %v3714 = vunpack.c.l.b16 %v3409
  %v3715 = vunpack.c.h.b16 %v3409
  %v3716 = vunpack.c.l.b16 %v3410
  %v3717 = vunpack.c.h.b16 %v3410
  %v3718 = vunpack.c.l.b16 %v3411
  %v3719 = vunpack.c.h.b16 %v3411
  %v3720 = vunpack.c.l.b16 %v3412
  %v3721 = vunpack.c.h.b16 %v3412
  %v3722 = vunpack.c.l.b16 %v3413
  %v3723 = vunpack.c.h.b16 %v3413
  %v3724 = vunpack.c.l.b16 %v3414
  %v3725 = vunpack.c.h.b16 %v3414
  %v3726 = vunpack.c.l.b16 %v3415
  %v3727 = vunpack.c.h.b16 %v3415
  %v3728 = vunpack.c.l.b16 %v3416
  %v3729 = vunpack.c.h.b16 %v3416
  %v3730 = vunpack.c.l.b16 %v3417
  %v3731 = vunpack.c.h.b16 %v3417
  %v3732 = vunpack.c.l.b16 %v3418
  %v3733 = vunpack.c.h.b16 %v3418
  %v3734 = vunpack.c.l.b16 %v3419
  %v3735 = vunpack.c.h.b16 %v3419
  %v3736 = vunpack.c.l.b16 %v3420
  %v3737 = vunpack.c.h.b16 %v3420
  %v3738 = vunpack.c.l.b16 %v3421
  %v3739 = vunpack.c.h.b16 %v3421
  %v3740 = vunpack.c.l.b16 %v3422
  %v3741 = vunpack.c.h.b16 %v3422
  %v3742 = vunpack.c.l.b16 %v3423
  %v3743 = vunpack.c.h.b16 %v3423
  %v3744 = vunpack.c.l.b16 %v3424
  %v3745 = vunpack.c.h.b16 %v3424
  %v3746 = vunpack.c.l.b16 %v3425
  %v3747 = vunpack.c.h.b16 %v3425
  %v3748 = vunpack.c.l.b16 %v3426
  %v3749 = vunpack.c.h.b16 %v3426
  %v3750 = vunpack.c.l.b16 %v3427
  %v3751 = vunpack.c.h.b16 %v3427
  %v3752 = vunpack.c.l.b16 %v3428
  %v3753 = vunpack.c.h.b16 %v3428
  %v3754 = vunpack.c.l.b16 %v3429
  %v3755 = vunpack.c.h.b16 %v3429
  %v3756 = vunpack.c.l.b16 %v3430
  %v3757 = vunpack.c.h.b16 %v3430
  %v3758 = vunpack.c.l.b16 %v3431
  %v3759 = vunpack.c.h.b16 %v3431
  %v3760 = vunpack.c.l.b16 %v3432
  %v3761 = vunpack.c.h.b16 %v3432
  %v3762 = vunpack.c.l.b16 %v3433
  %v3763 = vunpack.c.h.b16 %v3433
  %v3764 = vunpack.c.l.b16 %v3434
  %v3765 = vunpack.c.h.b16 %v3434
  %v3766 = vunpack.c.l.b16 %v3435
  %v3767 = vunpack.c.h.b16 %v3435
  %v3768 = vunpack.c.l.b16 %v3436
  %v3769 = vunpack.c.h.b16 %v3436
  %v3770 = vunpack.c.l.b16 %v3437
  %v3771 = vunpack.c.h.b16 %v3437
  %v3772 = vunpack.c.l.b16 %v3438
  %v3773 = vunpack.c.h.b16 %v3438
  %v3774 = vunpack.c.l.b16 %v3439
  %v3775 = vunpack.c.h.b16 %v3439
  %v3776 = vunpack.c.l.b16 %v3440
  %v3777 = vunpack.c.h.b16 %v3440
  %v3778 = vunpack.c.l.b16 %v3441
  %v3779 = vunpack.c.h.b16 %v3441
  %v3780 = vunpack.c.l.b16 %v3442
  %v3781 = vunpack.c.h.b16 %v3442
  %v3782 = vunpack.c.l.b16 %v3443
  %v3783 = vunpack.c.h.b16 %v3443
  %v3784 = vunpack.c.l.b16 %v3444
  %v3785 = vunpack.c.h.b16 %v3444
  %v3786 = vunpack.c.l.b16 %v3445
  %v3787 = vunpack.c.h.b16 %v3445
  %v3788 = vunpack.c.l.b16 %v3446
  %v3789 = vunpack.c.h.b16 %v3446
  %v3790 = vunpack.c.l.b16 %v3447
  %v3791 = vunpack.c.h.b16 %v3447
  %v3792 = vunpack.c.l.b16 %v3448
  %v3793 = vunpack.c.h.b16 %v3448
  %v3794 = vunpack.c.l.b16 %v3449
  %v3795 = vunpack.c.h.b16 %v3449
  %v3796 = vunpack.c.l.b16 %v3450
  %v3797 = vunpack.c.h.b16 %v3450
  %v3798 = vunpack.c.l.b16 %v3451
  %v3799 = vunpack.c.h.b16 %v3451
  %v3800 = vunpack.c.l.b16 %v3452
  %v3801 = vunpack.c.h.b16 %v3452
  %v3802 = vunpack.c.l.b16 %v3453
  %v3803 = vunpack.c.h.b16 %v3453
  %v3804 = vunpack.c.l.b16 %v3454
  %v3805 = vunpack.c.h.b16 %v3454
  %v3806 = vunpack.c.l.b16 %v3455
  %v3807 = vunpack.c.h.b16 %v3455
  %v3808 = vunpack.c.l.b16 %v3456
  %v3809 = vunpack.c.h.b16 %v3456
  %v3810 = vunpack.c.l.b16 %v3457
  %v3811 = vunpack.c.h.b16 %v3457
  %v3812 = vunpack.c.l.b16 %v3458
  %v3813 = vunpack.c.h.b16 %v3458
  %v3814 = vunpack.c.l.b16 %v3459
  %v3815 = vunpack.c.h.b16 %v3459
  %v3816 = vunpack.c.l.b16 %v3460
  %v3817 = vunpack.c.h.b16 %v3460
  %v3818 = vunpack.c.l.b16 %v3461
  %v3819 = vunpack.c.h.b16 %v3461
  %v3820 = vunpack.c.l.b16 %v3462
  %v3821 = vunpack.c.h.b16 %v3462
  %v3822 = vunpack.c.l.b16 %v3463
  %v3823 = vunpack.c.h.b16 %v3463
  %v3824 = vunpack.c.l.b16 %v3464
  %v3825 = vunpack.c.h.b16 %v3464
  %v3826 = vunpack.c.l.b16 %v3465
  %v3827 = vunpack.c.h.b16 %v3465
  %v3828 = vunpack.c.l.b16 %v3466
  %v3829 = vunpack.c.h.b16 %v3466
  %v3830 = vunpack.c.l.b16 %v3467
  %v3831 = vunpack.c.h.b16 %v3467
  %v3832 = vunpack.c.l.b16 %v3468
  %v3833 = vunpack.c.h.b16 %v3468
  %v3834 = vunpack.c.l.b16 %v3469
  %v3835 = vunpack.c.h.b16 %v3469
  %v3836 = vunpack.c.l.b16 %v3470
  %v3837 = vunpack.c.h.b16 %v3470
  %v3838 = vunpack.c.l.b16 %v3471
  %v3839 = vunpack.c.h.b16 %v3471
  %v3840 = vunpack.c.l.b16 %v3472
  %v3841 = vunpack.c.h.b16 %v3472
  %v3842 = vunpack.c.l.b16 %v3473
  %v3843 = vunpack.c.h.b16 %v3473
  %v3844 = vunpack.c.l.b16 %v3474
  %v3845 = vunpack.c.h.b16 %v3474
  %v3846 = vunpack.c.l.b16 %v3475
  %v3847 = vunpack.c.h.b16 %v3475
  %v3848 = vunpack.c.l.b16 %v3476
  %v3849 = vunpack.c.h.b16 %v3476
  %v3850 = vunpack.c.l.b16 %v3477
  %v3851 = vunpack.c.h.b16 %v3477
  %v3852 = vunpack.c.l.b16 %v3478
  %v3853 = vunpack.c.h.b16 %v3478
  %v3854 = vunpack.c.l.b16 %v3479
  %v3855 = vunpack.c.h.b16 %v3479
  %v3856 = vunpack.c.l.b16 %v3480
  %v3857 = vunpack.c.h.b16 %v3480
  %v3858 = vunpack.c.l.b16 %v3481
  %v3859 = vunpack.c.h.b16 %v3481
  %v3860 = vunpack.c.l.b16 %v3482
  %v3861 = vunpack.c.h.b16 %v3482
  %v3862 = vunpack.c.l.b16 %v3483
  %v3863 = vunpack.c.h.b16 %v3483
  %v3864 = vunpack.c.l.b16 %v3484
  %v3865 = vunpack.c.h.b16 %v3484
  %v3866 = vunpack.c.l.b16 %v3485
  %v3867 = vunpack.c.h.b16 %v3485
  %v3868 = vunpack.c.l.b16 %v3486
  %v3869 = vunpack.c.h.b16 %v3486
  %v3870 = vunpack.c.l.b16 %v3487
  %v3871 = vunpack.c.h.b16 %v3487
  %v3872 = vunpack.c.l.b16 %v3488
  %v3873 = vunpack.c.h.b16 %v3488
  %v3874 = vunpack.c.l.b16 %v3489
  %v3875 = vunpack.c.h.b16 %v3489
  %v3876 = vunpack.c.l.b16 %v3490
  %v3877 = vunpack.c.h.b16 %v3490
  %v3878 = vunpack.c.l.b16 %v3491
  %v3879 = vunpack.c.h.b16 %v3491
  %v3880 = vunpack.c.l.b16 %v3492
  %v3881 = vunpack.c.h.b16 %v3492
  %v3882 = vunpack.c.l.b16 %v3493
  %v3883 = vunpack.c.h.b16 %v3493
  %v3884 = vunpack.c.l.b16 %v3494
  %v3885 = vunpack.c.h.b16 %v3494
  %v3886 = vunpack.c.l.b16 %v3495
  %v3887 = vunpack.c.h.b16 %v3495
  %v3888 = vunpack.c.l.b16 %v3496
  %v3889 = vunpack.c.h.b16 %v3496
  %v3890 = vunpack.c.l.b16 %v3497
  %v3891 = vunpack.c.h.b16 %v3497
  %v3892 = vunpack.c.l.b16 %v3498
  %v3893 = vunpack.c.h.b16 %v3498
  %v3894 = vunpack.c.l.b16 %v3499
  %v3895 = vunpack.c.h.b16 %v3499
  %v3896 = vunpack.c.l.b16 %v3500
  %v3897 = vunpack.c.h.b16 %v3500
  %v3898 = vunpack.c.l.b16 %v3501
  %v3899 = vunpack.c.h.b16 %v3501
  %v3900 = vunpack.c.l.b16 %v3502
  %v3901 = vunpack.c.h.b16 %v3502
  %v3902 = vunpack.c.l.b16 %v3503
  %v3903 = vunpack.c.h.b16 %v3503
  %v3904 = vunpack.c.l.b16 %v3504
  %v3905 = vunpack.c.h.b16 %v3504
  %v3906 = vunpack.c.l.b16 %v3505
  %v3907 = vunpack.c.h.b16 %v3505
  %v3908 = vunpack.c.l.b16 %v3506
  %v3909 = vunpack.c.h.b16 %v3506
  %v3910 = vunpack.c.l.b16 %v3507
  %v3911 = vunpack.c.h.b16 %v3507
  %v3912 = vunpack.c.l.b16 %v3508
  %v3913 = vunpack.c.h.b16 %v3508
  %v3914 = vunpack.c.l.b16 %v3509
  %v3915 = vunpack.c.h.b16 %v3509
  %v3916 = vunpack.c.l.b16 %v3510
  %v3917 = vunpack.c.h.b16 %v3510
  %v3918 = vunpack.c.l.b16 %v3511
  %v3919 = vunpack.c.h.b16 %v3511
  %v3920 = vunpack.c.l.b16 %v3512
  %v3921 = vunpack.c.h.b16 %v3512
  %v3922 = vunpack.c.l.b16 %v3513
  %v3923 = vunpack.c.h.b16 %v3513
  %v3924 = vunpack.c.l.b16 %v3514
  %v3925 = vunpack.c.h.b16 %v3514
  %v3926 = vunpack.c.l.b16 %v3515
  %v3927 = vunpack.c.h.b16 %v3515
  %v3928 = vunpack.c.l.b16 %v3516
  %v3929 = vunpack.c.h.b16 %v3516
  %v3930 = vunpack.c.l.b16 %v3517
  %v3931 = vunpack.c.h.b16 %v3517
  %v3932 = vunpack.c.l.b16 %v3518
  %v3933 = vunpack.c.h.b16 %v3518
  %v3934 = vunpack.c.l.b16 %v3519
  %v3935 = vunpack.c.h.b16 %v3519
  %v3936 = vunpack.c.l.b16 %v3520
  %v3937 = vunpack.c.h.b16 %v3520
  %v3938 = vunpack.c.l.b16 %v3521
  %v3939 = vunpack.c.h.b16 %v3521
  %v3940 = vunpack.c.l.b16 %v3522
  %v3941 = vunpack.c.h.b16 %v3522
  %v3942 = vunpack.c.l.b16 %v3523
  %v3943 = vunpack.c.h.b16 %v3523
  %v3944 = vunpack.c.l.b16 %v3524
  %v3945 = vunpack.c.h.b16 %v3524
  %v3946 = vunpack.c.l.b16 %v3525
  %v3947 = vunpack.c.h.b16 %v3525
  %v3948 = vunpack.c.l.b16 %v3526
  %v3949 = vunpack.c.h.b16 %v3526
  %v3950 = vunpack.c.l.b16 %v3527
  %v3951 = vunpack.c.h.b16 %v3527
  %v3952 = vunpack.c.l.b16 %v3528
  %v3953 = vunpack.c.h.b16 %v3528
  %v3954 = vunpack.c.l.b16 %v3529
  %v3955 = vunpack.c.h.b16 %v3529
  %v3956 = vunpack.c.l.b16 %v3530
  %v3957 = vunpack.c.h.b16 %v3530
  %v3958 = vunpack.c.l.b16 %v3531
  %v3959 = vunpack.c.h.b16 %v3531
  %v3960 = vunpack.c.l.b16 %v3532
  %v3961 = vunpack.c.h.b16 %v3532
  %v3962 = vunpack.c.l.b16 %v3533
  %v3963 = vunpack.c.h.b16 %v3533
  %v3964 = vunpack.c.l.b16 %v3534
  %v3965 = vunpack.c.h.b16 %v3534
  %v3966 = vunpack.c.l.b16 %v3535
  %v3967 = vunpack.c.h.b16 %v3535
  %v3968 = vpack.c.b16 %v3682, %v3680
  %v3969 = vpack.c.b16 %v3683, %v3681
  %v3970 = vpack.c.b16 %v3686, %v3684
  %v3971 = vpack.c.b16 %v3687, %v3685
  %v3972 = vpack.c.b16 %v3690, %v3688
  %v3973 = vpack.c.b16 %v3691, %v3689
  %v3974 = vpack.c.b16 %v3694, %v3692
  %v3975 = vpack.c.b16 %v3695, %v3693
  %v3976 = vpack.c.b16 %v3698, %v3696
  %v3977 = vpack.c.b16 %v3699, %v3697
  %v3978 = vpack.c.b16 %v3702, %v3700
  %v3979 = vpack.c.b16 %v3703, %v3701
  %v3980 = vpack.c.b16 %v3706, %v3704
  %v3981 = vpack.c.b16 %v3707, %v3705
  %v3982 = vpack.c.b16 %v3710, %v3708
  %v3983 = vpack.c.b16 %v3711, %v3709
  %v3984 = vpack.c.b16 %v3714, %v3712
  %v3985 = vpack.c.b16 %v3715, %v3713
  %v3986 = vpack.c.b16 %v3718, %v3716
  %v3987 = vpack.c.b16 %v3719, %v3717
  %v3988 = vpack.c.b16 %v3722, %v3720
  %v3989 = vpack.c.b16 %v3723, %v3721
  %v3990 = vpack.c.b16 %v3726, %v3724
  %v3991 = vpack.c.b16 %v3727, %v3725
  %v3992 = vpack.c.b16 %v3730, %v3728
  %v3993 = vpack.c.b16 %v3731, %v3729
  %v3994 = vpack.c.b16 %v3734, %v3732
  %v3995 = vpack.c.b16 %v3735, %v3733
  %v3996 = vpack.c.b16 %v3738, %v3736
  %v3997 = vpack.c.b16 %v3739, %v3737
  %v3998 = vpack.c.b16 %v3742, %v3740
  %v3999 = vpack.c.b16 %v3743, %v3741
  %v4000 = vpack.c.b16 %v3746, %v3744
  %v4001 = vpack.c.b16 %v3747, %v3745
  %v4002 = vpack.c.b16 %v3750, %v3748
  %v4003 = vpack.c.b16 %v3751, %v3749
  %v4004 = vpack.c.b16 %v3754, %v3752
  %v4005 = vpack.c.b16 %v3755, %v3753
  %v4006 = vpack.c.b16 %v3758, %v3756
  %v4007 = vpack.c.b16 %v3759, %v3757
  %v4008 = vpack.c.b16 %v3762, %v3760
  %v4009 = vpack.c.b16 %v3763, %v3761
  %v4010 = vpack.c.b16 %v3766, %v3764
  %v4011 = vpack.c.b16 %v3767, %v3765
  %v4012 = vpack.c.b16 %v3770, %v3768
  %v4013 = vpack.c.b16 %v3771, %v3769
  %v4014 = vpack.c.b16 %v3774, %v3772
  %v4015 = vpack.c.b16 %v3775, %v3773
  %v4016 = vpack.c.b16 %v3778, %v3776
  %v4017 = vpack.c.b16 %v3779, %v3777
  %v4018 = vpack.c.b16 %v3782, %v3780
  %v4019 = vpack.c.b16 %v3783, %v3781
  %v4020 = vpack.c.b16 %v3786, %v3784
  %v4021 = vpack.c.b16 %v3787, %v3785
  %v4022 = vpack.c.b16 %v3790, %v3788
  %v4023 = vpack.c.b16 %v3791, %v3789
  %v4024 = vpack.c.b16 %v3794, %v3792
  %v4025 = vpack.c.b16 %v3795, %v3793
  %v4026 = vpack.c.b16 %v3798, %v3796
  %v4027 = vpack.c.b16 %v3799, %v3797
  %v4028 = vpack.c.b16 %v3802, %v3800
  %v4029 = vpack.c.b16 %v3803, %v3801
  %v4030 = vpack.c.b16 %v3806, %v3804
  %v4031 = vpack.c.b16 %v3807, %v3805
  %v4032 = vpack.c.b16 %v3810, %v3808
  %v4033 = vpack.c.b16 %v3811, %v3809
  %v4034 = vpack.c.b16 %v3814, %v3812
  %v4035 = vpack.c.b16 %v3815, %v3813
  %v4036 = vpack.c.b16 %v3818, %v3816
  %v4037 = vpack.c.b16 %v3819, %v3817
  %v4038 = vpack.c.b16 %v3822, %v3820
  %v4039 = vpack.c.b16 %v3823, %v3821
  %v4040 = vpack.c.b16 %v3826, %v3824
  %v4041 = vpack.c.b16 %v3827, %v3825
  %v4042 = vpack.c.b16 %v3830, %v3828
  %v4043 = vpack.c.b16 %v3831, %v3829
  %v4044 = vpack.c.b16 %v3834, %v3832
  %v4045 = vpack.c.b16 %v3835, %v3833
  %v4046 = vpack.c.b16 %v3838, %v3836
  %v4047 = vpack.c.b16 %v3839, %v3837
  %v4048 = vpack.c.b16 %v3842, %v3840
  %v4049 = vpack.c.b16 %v3843, %v3841
  %v4050 = vpack.c.b16 %v3846, %v3844
  %v4051 = vpack.c.b16 %v3847, %v3845
  %v4052 = vpack.c.b16 %v3850, %v3848
  %v4053 = vpack.c.b16 %v3851, %v3849
  %v4054 = vpack.c.b16 %v3854, %v3852
  %v4055 = vpack.c.b16 %v3855, %v3853
  %v4056 = vpack.c.b16 %v3858, %v3856
  %v4057 = vpack.c.b16 %v3859, %v3857
  %v4058 = vpack.c.b16 %v3862, %v3860
  %v4059 = vpack.c.b16 %v3863, %v3861
  %v4060 = vpack.c.b16 %v3866, %v3864
  %v4061 = vpack.c.b16 %v3867, %v3865
  %v4062 = vpack.c.b16 %v3870, %v3868
  %v4063 = vpack.c.b16 %v3871, %v3869
  %v4064 = vpack.c.b16 %v3874, %v3872
  %v4065 = vpack.c.b16 %v3875, %v3873
  %v4066 = vpack.c.b16 %v3878, %v3876
  %v4067 = vpack.c.b16 %v3879, %v3877
  %v4068 = vpack.c.b16 %v3882, %v3880
  %v4069 = vpack.c.b16 %v3883, %v3881
  %v4070 = vpack.c.b16 %v3886, %v3884
  %v4071 = vpack.c.b16 %v3887, %v3885
  %v4072 = vpack.c.b16 %v3890, %v3888
  %v4073 = vpack.c.b16 %v3891, %v3889
  %v4074 = vpack.c.b16 %v3894, %v3892
  %v4075 = vpack.c.b16 %v3895, %v3893
  %v4076 = vpack.c.b16 %v3898, %v3896
  %v4077 = vpack.c.b16 %v3899, %v3897
  %v4078 = vpack.c.b16 %v3902, %v3900
  %v4079 = vpack.c.b16 %v3903, %v3901
  %v4080 = vpack.c.b16 %v3906, %v3904
  %v4081 = vpack.c.b16 %v3907, %v3905
  %v4082 = vpack.c.b16 %v3910, %v3908
  %v4083 = vpack.c.b16 %v3911, %v3909
  %v4084 = vpack.c.b16 %v3914, %v3912
  %v4085 = vpack.c.b16 %v3915, %v3913
  %v4086 = vpack.c.b16 %v3918, %v3916
  %v4087 = vpack.c.b16 %v3919, %v3917
  %v4088 = vpack.c.b16 %v3922, %v3920
  %v4089 = vpack.c.b16 %v3923, %v3921
  %v4090 = vpack.c.b16 %v3926, %v3924
  %v4091 = vpack.c.b16 %v3927, %v3925
  %v4092 = vpack.c.b16 %v3930, %v3928
  %v4093 = vpack.c.b16 %v3931, %v3929
  %v4094 = vpack.c.b16 %v3934, %v3932
  %v4095 = vpack.c.b16 %v3935, %v3933
  %v4096 = vpack.c.b16 %v3938, %v3936
  %v4097 = vpack.c.b16 %v3939, %v3937
  %v4098 = vpack.c.b16 %v3942, %v3940
  %v4099 = vpack.c.b16 %v3943, %v3941
  %v4100 = vpack.c.b16 %v3946, %v3944
  %v4101 = vpack.c.b16 %v3947, %v3945
  %v4102 = vpack.c.b16 %v3950, %v3948
  %v4103 = vpack.c.b16 %v3951, %v3949
  %v4104 = vpack.c.b16 %v3954, %v3952
  %v4105 = vpack.c.b16 %v3955, %v3953
  %v4106 = vpack.c.b16 %v3958, %v3956
  %v4107 = vpack.c.b16 %v3959, %v3957
  %v4108 = vpack.c.b16 %v3962, %v3960
  %v4109 = vpack.c.b16 %v3963, %v3961
  %v4110 = vpack.c.b16 %v3966, %v3964
  %v4111 = vpack.c.b16 %v3967, %v3965
  %4256 = vmatprep.subr.bf16.mxu0 %v3969
  %4257 = vmatpush1.bf16.msra.mxu0 %v3968
  %4258 = vmatprep.subr.bf16.mxu0 %v3971
  %4259 = vmatpush1.bf16.msra.mxu0 %v3970
  %4260 = vmatprep.subr.bf16.mxu0 %v3973
  %4261 = vmatpush1.bf16.msra.mxu0 %v3972
  %4262 = vmatprep.subr.bf16.mxu0 %v3975
  %4263 = vmatpush1.bf16.msra.mxu0 %v3974
  %4264 = vmatprep.subr.bf16.mxu0 %v3977
  %4265 = vmatpush1.bf16.msra.mxu0 %v3976
  %4266 = vmatprep.subr.bf16.mxu0 %v3979
  %4267 = vmatpush1.bf16.msra.mxu0 %v3978
  %4268 = vmatprep.subr.bf16.mxu0 %v3981
  %4269 = vmatpush1.bf16.msra.mxu0 %v3980
  %4270 = vmatprep.subr.bf16.mxu0 %v3983
  %4271 = vmatpush1.bf16.msra.mxu0 %v3982
  %4272 = vmatprep.subr.bf16.mxu0 %v3985
  %4273 = vmatpush1.bf16.msra.mxu0 %v3984
  %4274 = vmatprep.subr.bf16.mxu0 %v3987
  %4275 = vmatpush1.bf16.msra.mxu0 %v3986
  %4276 = vmatprep.subr.bf16.mxu0 %v3989
  %4277 = vmatpush1.bf16.msra.mxu0 %v3988
  %4278 = vmatprep.subr.bf16.mxu0 %v3991
  %4279 = vmatpush1.bf16.msra.mxu0 %v3990
  %4280 = vmatprep.subr.bf16.mxu0 %v3993
  %4281 = vmatpush1.bf16.msra.mxu0 %v3992
  %4282 = vmatprep.subr.bf16.mxu0 %v3995
  %4283 = vmatpush1.bf16.msra.mxu0 %v3994
  %4284 = vmatprep.subr.bf16.mxu0 %v3997
  %4285 = vmatpush1.bf16.msra.mxu0 %v3996
  %4286 = vmatprep.subr.bf16.mxu0 %v3999
  %4287 = vmatpush1.bf16.msra.mxu0 %v3998
  %4288 = vmatprep.mubr.bf16.mxu0 %v3069
  %4289 = vmatmul.mubr.bf16.gmra.mrb[0].mxu0 %v3023
  %v4290 = vpop.f32.mrb[0].mxu0
  %v4291 = vadd.f32 0.0, %v4290
  %v4292 = vpop.f32.mrb[0].mxu0
  %v4293 = vadd.f32 0.0, %v4292
  %v4294 = vpop.f32.mrb[0].mxu0
  %v4295 = vpop.f32.mrb[0].mxu0
  %4296 = vdwg.mxu0
  %4297 = vmatprep.subr.bf16.mxu0 %v4001
  %4298 = vmatpush1.bf16.msra.mxu0 %v4000
  %4299 = vmatprep.subr.bf16.mxu0 %v4003
  %4300 = vmatpush1.bf16.msra.mxu0 %v4002
  %4301 = vmatprep.subr.bf16.mxu0 %v4005
  %4302 = vmatpush1.bf16.msra.mxu0 %v4004
  %4303 = vmatprep.subr.bf16.mxu0 %v4007
  %4304 = vmatpush1.bf16.msra.mxu0 %v4006
  %4305 = vmatprep.subr.bf16.mxu0 %v4009
  %4306 = vmatpush1.bf16.msra.mxu0 %v4008
  %4307 = vmatprep.subr.bf16.mxu0 %v4011
  %4308 = vmatpush1.bf16.msra.mxu0 %v4010
  %4309 = vmatprep.subr.bf16.mxu0 %v4013
  %4310 = vmatpush1.bf16.msra.mxu0 %v4012
  %4311 = vmatprep.subr.bf16.mxu0 %v4015
  %4312 = vmatpush1.bf16.msra.mxu0 %v4014
  %4313 = vmatprep.subr.bf16.mxu0 %v4017
  %4314 = vmatpush1.bf16.msra.mxu0 %v4016
  %4315 = vmatprep.subr.bf16.mxu0 %v4019
  %4316 = vmatpush1.bf16.msra.mxu0 %v4018
  %4317 = vmatprep.subr.bf16.mxu0 %v4021
  %4318 = vmatpush1.bf16.msra.mxu0 %v4020
  %4319 = vmatprep.subr.bf16.mxu0 %v4023
  %4320 = vmatpush1.bf16.msra.mxu0 %v4022
  %4321 = vmatprep.subr.bf16.mxu0 %v4025
  %4322 = vmatpush1.bf16.msra.mxu0 %v4024
  %4323 = vmatprep.subr.bf16.mxu0 %v4027
  %4324 = vmatpush1.bf16.msra.mxu0 %v4026
  %4325 = vmatprep.subr.bf16.mxu0 %v4029
  %4326 = vmatpush1.bf16.msra.mxu0 %v4028
  %4327 = vmatprep.subr.bf16.mxu0 %v4031
  %4328 = vmatpush1.bf16.msra.mxu0 %v4030
  %4329 = vmatprep.mubr.bf16.mxu0 %v3161
  %4330 = vmatmul.mubr.bf16.gmra.mrb[0].mxu0 %v3115
  %v4331 = vpop.f32.mrb[0].mxu0
  %v4332 = vadd.f32 %v4291, %v4331
  %v4333 = vpop.f32.mrb[0].mxu0
  %v4334 = vadd.f32 %v4293, %v4333
  %v4335 = vpop.f32.mrb[0].mxu0
  %v4336 = vpop.f32.mrb[0].mxu0
  %4337 = vdwg.mxu0
  %4338 = vmatprep.subr.bf16.mxu0 %v4033
  %4339 = vmatpush1.bf16.msra.mxu0 %v4032
  %4340 = vmatprep.subr.bf16.mxu0 %v4035
  %4341 = vmatpush1.bf16.msra.mxu0 %v4034
  %4342 = vmatprep.subr.bf16.mxu0 %v4037
  %4343 = vmatpush1.bf16.msra.mxu0 %v4036
  %4344 = vmatprep.subr.bf16.mxu0 %v4039
  %4345 = vmatpush1.bf16.msra.mxu0 %v4038
  %4346 = vmatprep.subr.bf16.mxu0 %v4041
  %4347 = vmatpush1.bf16.msra.mxu0 %v4040
  %4348 = vmatprep.subr.bf16.mxu0 %v4043
  %4349 = vmatpush1.bf16.msra.mxu0 %v4042
  %4350 = vmatprep.subr.bf16.mxu0 %v4045
  %4351 = vmatpush1.bf16.msra.mxu0 %v4044
  %4352 = vmatprep.subr.bf16.mxu0 %v4047
  %4353 = vmatpush1.bf16.msra.mxu0 %v4046
  %4354 = vmatprep.subr.bf16.mxu0 %v4049
  %4355 = vmatpush1.bf16.msra.mxu0 %v4048
  %4356 = vmatprep.subr.bf16.mxu0 %v4051
  %4357 = vmatpush1.bf16.msra.mxu0 %v4050
  %4358 = vmatprep.subr.bf16.mxu0 %v4053
  %4359 = vmatpush1.bf16.msra.mxu0 %v4052
  %4360 = vmatprep.subr.bf16.mxu0 %v4055
  %4361 = vmatpush1.bf16.msra.mxu0 %v4054
  %4362 = vmatprep.subr.bf16.mxu0 %v4057
  %4363 = vmatpush1.bf16.msra.mxu0 %v4056
  %4364 = vmatprep.subr.bf16.mxu0 %v4059
  %4365 = vmatpush1.bf16.msra.mxu0 %v4058
  %4366 = vmatprep.subr.bf16.mxu0 %v4061
  %4367 = vmatpush1.bf16.msra.mxu0 %v4060
  %4368 = vmatprep.subr.bf16.mxu0 %v4063
  %4369 = vmatpush1.bf16.msra.mxu0 %v4062
  %4370 = vmatprep.mubr.bf16.mxu0 %v3253
  %4371 = vmatmul.mubr.bf16.gmra.mrb[0].mxu0 %v3207
  %v4372 = vpop.f32.mrb[0].mxu0
  %v4373 = vadd.f32 %v4332, %v4372
  %v4374 = vpop.f32.mrb[0].mxu0
  %v4375 = vadd.f32 %v4334, %v4374
  %v4376 = vpop.f32.mrb[0].mxu0
  %v4377 = vpop.f32.mrb[0].mxu0
  %4378 = vdwg.mxu0
  %4379 = vmatprep.subr.bf16.mxu0 %v4065
  %4380 = vmatpush1.bf16.msra.mxu0 %v4064
  %4381 = vmatprep.subr.bf16.mxu0 %v4067
  %4382 = vmatpush1.bf16.msra.mxu0 %v4066
  %4383 = vmatprep.subr.bf16.mxu0 %v4069
  %4384 = vmatpush1.bf16.msra.mxu0 %v4068
  %4385 = vmatprep.subr.bf16.mxu0 %v4071
  %4386 = vmatpush1.bf16.msra.mxu0 %v4070
  %4387 = vmatprep.subr.bf16.mxu0 %v4073
  %4388 = vmatpush1.bf16.msra.mxu0 %v4072
  %4389 = vmatprep.subr.bf16.mxu0 %v4075
  %4390 = vmatpush1.bf16.msra.mxu0 %v4074
  %4391 = vmatprep.subr.bf16.mxu0 %v4077
  %4392 = vmatpush1.bf16.msra.mxu0 %v4076
  %4393 = vmatprep.subr.bf16.mxu0 %v4079
  %4394 = vmatpush1.bf16.msra.mxu0 %v4078
  %4395 = vmatprep.subr.bf16.mxu0 %v4081
  %4396 = vmatpush1.bf16.msra.mxu0 %v4080
  %4397 = vmatprep.subr.bf16.mxu0 %v4083
  %4398 = vmatpush1.bf16.msra.mxu0 %v4082
  %4399 = vmatprep.subr.bf16.mxu0 %v4085
  %4400 = vmatpush1.bf16.msra.mxu0 %v4084
  %4401 = vmatprep.subr.bf16.mxu0 %v4087
  %4402 = vmatpush1.bf16.msra.mxu0 %v4086
  %4403 = vmatprep.subr.bf16.mxu0 %v4089
  %4404 = vmatpush1.bf16.msra.mxu0 %v4088
  %4405 = vmatprep.subr.bf16.mxu0 %v4091
  %4406 = vmatpush1.bf16.msra.mxu0 %v4090
  %4407 = vmatprep.subr.bf16.mxu0 %v4093
  %4408 = vmatpush1.bf16.msra.mxu0 %v4092
  %4409 = vmatprep.subr.bf16.mxu0 %v4095
  %4410 = vmatpush1.bf16.msra.mxu0 %v4094
  %4411 = vmatprep.mubr.bf16.mxu0 %v3345
  %4412 = vmatmul.mubr.bf16.gmra.mrb[0].mxu0 %v3299
  %v4413 = vpop.f32.mrb[0].mxu0
  %v4414 = vadd.f32 %v4373, %v4413
  %v4415 = vpop.f32.mrb[0].mxu0
  %v4416 = vadd.f32 %v4375, %v4415
  %v4417 = vpop.f32.mrb[0].mxu0
  %v4418 = vpop.f32.mrb[0].mxu0
  %4419 = vdwg.mxu0
  %4420 = vmatprep.subr.bf16.mxu0 %v4097
  %4421 = vmatpush1.bf16.msra.mxu0 %v4096
  %4422 = vmatprep.subr.bf16.mxu0 %v4099
  %4423 = vmatpush1.bf16.msra.mxu0 %v4098
  %4424 = vmatprep.subr.bf16.mxu0 %v4101
  %4425 = vmatpush1.bf16.msra.mxu0 %v4100
  %4426 = vmatprep.subr.bf16.mxu0 %v4103
  %4427 = vmatpush1.bf16.msra.mxu0 %v4102
  %4428 = vmatprep.subr.bf16.mxu0 %v4105
  %4429 = vmatpush1.bf16.msra.mxu0 %v4104
  %4430 = vmatprep.subr.bf16.mxu0 %v4107
  %4431 = vmatpush1.bf16.msra.mxu0 %v4106
  %4432 = vmatprep.subr.bf16.mxu0 %v4109
  %4433 = vmatpush1.bf16.msra.mxu0 %v4108
  %4434 = vmatprep.subr.bf16.mxu0 %v4111
  %4435 = vmatpush1.bf16.msra.mxu0 %v4110
  %4436 = vmatprep.subr.bf16.mxu0 0
  %4437 = vmatpush1.bf16.msra.mxu0 0
  %4438 = vmatprep.subr.bf16.mxu0 0
  %4439 = vmatpush1.bf16.msra.mxu0 0
  %4440 = vmatprep.subr.bf16.mxu0 0
  %4441 = vmatpush1.bf16.msra.mxu0 0
  %4442 = vmatprep.subr.bf16.mxu0 0
  %4443 = vmatpush1.bf16.msra.mxu0 0
  %4444 = vmatprep.subr.bf16.mxu0 0
  %4445 = vmatpush1.bf16.msra.mxu0 0
  %4446 = vmatprep.subr.bf16.mxu0 0
  %4447 = vmatpush1.bf16.msra.mxu0 0
  %4448 = vmatprep.subr.bf16.mxu0 0
  %4449 = vmatpush1.bf16.msra.mxu0 0
  %4450 = vmatprep.subr.bf16.mxu0 0
  %4451 = vmatpush1.bf16.msra.mxu0 0
  %4452 = vmatprep.mubr.bf16.mxu0 0
  %4453 = vmatmul.mubr.bf16.gmra.mrb[0].mxu0 %v3391
  %v4454 = vpop.f32.mrb[0].mxu0
  %v4455 = vadd.f32 %v4414, %v4454
  %v4456 = vpop.f32.mrb[0].mxu0
  %v4457 = vadd.f32 %v4416, %v4456
  %v4458 = vpop.f32.mrb[0].mxu0
  %v4459 = vpop.f32.mrb[0].mxu0
  %4460 = vdwg.mxu0
  %v4461 = vrot.slane %v4455, 4
  %v4462 = vadd.f32 %v4455, %v4461
  %v4463 = vrot.slane %v4462, 2
  %v4464 = vadd.f32 %v4462, %v4463
  %v4465 = vrot.slane %v4464, 1
  %v4466 = vadd.f32 %v4464, %v4465
  %v4467 = vrot.slane %v4457, 4
  %v4468 = vadd.f32 %v4457, %v4467
  %v4469 = vrot.slane %v4468, 2
  %v4470 = vadd.f32 %v4468, %v4469
  %v4471 = vrot.slane %v4470, 1
  %v4472 = vadd.f32 %v4470, %v4471
  %v4473 = vrcp.pop 8.0
  %v4474 = vmul.f32 %v4466, %v4473
  %v4475 = vmul.f32 %v4472, %v4473
  %v4476 = vsub.f32 %v4455, %v4474
  %v4477 = vsub.f32 %v4457, %v4475
  %v4478 = vmul.f32 %v4476, %v4476
  %v4479 = vmul.f32 %v4477, %v4477
  %v4480 = vrot.slane %v4478, 4
  %v4481 = vadd.f32 %v4478, %v4480
  %v4482 = vrot.slane %v4481, 2
  %v4483 = vadd.f32 %v4481, %v4482
  %v4484 = vrot.slane %v4483, 1
  %v4485 = vadd.f32 %v4483, %v4484
  %v4486 = vrot.slane %v4479, 4
  %v4487 = vadd.f32 %v4479, %v4486
  %v4488 = vrot.slane %v4487, 2
  %v4489 = vadd.f32 %v4487, %v4488
  %v4490 = vrot.slane %v4489, 1
  %v4491 = vadd.f32 %v4489, %v4490
  %v4492 = vmul.f32 %v4485, %v4473
  %v4493 = vmul.f32 %v4491, %v4473
  %v4494 = vadd.f32 %v4492, 1e-05
  %v4495 = vadd.f32 %v4493, 1e-05
  %v4496 = vrsqrt.pop %v4494
  %v4497 = vrsqrt.pop %v4495
  %v4498 = vld [vmem:[%s10] sm:$0x3]
  %v4500 = vlaneseq
  %v4501 = vshrl.u32 %v4500, 7
  %v4502 = vsub.s32 0, %v4501
  %v4503 = vrot.slane %v4498, %v4502
  %v4504 = vlaneseq
  %v4505 = vshrl.u32 %v4504, 7
  %v4506 = vsub.s32 1, %v4505
  %v4507 = vrot.slane %v4498, %v4506
  %v4510 = vmul.f32 %v4496, %v4503
  %v4511 = vmul.f32 %v4497, %v4507
  %v4512 = vlaneseq
  %v4513 = vshrl.u32 %v4512, 7
  %v4514 = vsub.s32 0, %v4513
  %v4515 = vrot.slane %v4510, %v4514
  %v4516 = vlaneseq
  %v4517 = vshrl.u32 %v4516, 7
  %v4518 = vsub.s32 0, %v4517
  %v4519 = vrot.slane %v4511, %v4518
  %v4520 = vmul.f32 %v4476, %v4515
  %v4521 = vmul.f32 %v4477, %v4519
  %v4522 = vld [vmem:[%s11] sm:$0x3]
  %v4524 = vlaneseq
  %v4525 = vshrl.u32 %v4524, 7
  %v4526 = vsub.s32 0, %v4525
  %v4527 = vrot.slane %v4522, %v4526
  %v4528 = vlaneseq
  %v4529 = vshrl.u32 %v4528, 7
  %v4530 = vsub.s32 1, %v4529
  %v4531 = vrot.slane %v4522, %v4530
  %v4534 = vadd.f32 %v4520, %v4527
  %v4535 = vadd.f32 %v4521, %v4531
  %v4536 = vmax.f32 %v4534, 0.0
  %v4537 = vmax.f32 %v4535, 0.0
  %vm4538 = vcmask 1043456
  %v4539 = vsel %vm4538, %v4536, 0.0
  %v4540 = vrot.slane %v4539, 4
  %v4541 = vadd.f32 %v4539, %v4540
  %v4542 = vrot.slane %v4541, 2
  %v4543 = vadd.f32 %v4541, %v4542
  %v4544 = vrot.slane %v4543, 1
  %v4545 = vadd.f32 %v4543, %v4544
  %v4546 = vsel %vm4538, %v4537, 0.0
  %v4547 = vrot.slane %v4546, 4
  %v4548 = vadd.f32 %v4546, %v4547
  %v4549 = vrot.slane %v4548, 2
  %v4550 = vadd.f32 %v4548, %v4549
  %v4551 = vrot.slane %v4550, 1
  %v4552 = vadd.f32 %v4550, %v4551
  %v4553 = vrcp.pop 4.0
  %v4554 = vmul.f32 %v4545, %v4553
  %v4555 = vmul.f32 %v4552, %v4553
  %v4558 = vrot.slane %v4536, 4
  %v4559 = vrot.slane %v4537, 4
  %v4562 = vsel %vm4538, %v4558, 0.0
  %v4563 = vrot.slane %v4562, 4
  %v4564 = vadd.f32 %v4562, %v4563
  %v4565 = vrot.slane %v4564, 2
  %v4566 = vadd.f32 %v4564, %v4565
  %v4567 = vrot.slane %v4566, 1
  %v4568 = vadd.f32 %v4566, %v4567
  %v4569 = vsel %vm4538, %v4559, 0.0
  %v4570 = vrot.slane %v4569, 4
  %v4571 = vadd.f32 %v4569, %v4570
  %v4572 = vrot.slane %v4571, 2
  %v4573 = vadd.f32 %v4571, %v4572
  %v4574 = vrot.slane %v4573, 1
  %v4575 = vadd.f32 %v4573, %v4574
  %v4576 = vmul.f32 %v4568, %v4553
  %v4577 = vmul.f32 %v4575, %v4553
  %v4578 = vsel %vm1447, %v4554, %v4576
  %v4579 = vsel %vm1447, %v4555, %v4577
  %v4582 = vcombine.low %v4578, %v4579
  %v4584 = vunpack.c.l.s4 1983009808
  %v4585 = vunpack.c.0.s8 %v4584
  %v4586 = vlaneseq
  %v4587 = vshrl.u32 %v4586, 7
  %v4588 = vsub.s32 %v4585, %v4587
  %v4589 = vrot.slane %v4582, %v4588
  %4591 = vst [vmem:[%s12] sm:$0xf] %v4589
  // Predicated region
  $region50: #{custom_cnn_forward.1} parent=0 // pred_check
    _
  $region51: #{custom_cnn_forward.1} parent=0 // pred_check_branch
    %4593 = sbr.rel (0) target = $region53
  $region52: #{custom_cnn_forward.1} parent=0 // pred_region
    _
  $region53: #{custom_cnn_forward.1} parent=0 // pred_fallthru
    _
  // Predicated region
  $region54: #{custom_cnn_forward.1} parent=0 // pred_check
    _
  $region55: #{custom_cnn_forward.1} parent=0 // pred_check_branch
    %4595 = sbr.rel (0) target = $region57
  $region56: #{custom_cnn_forward.1} parent=0 // pred_region
    _
  $region57: #{custom_cnn_forward.1} parent=0 // pred_fallthru
    _

</llo_original>
